<compile_context>
chip_gen: v6e
topology: v6e:2x2x1
jax: 0.10.0
libtpu: 0.0.40
codegen_flags: <defaults>
</compile_context>

<pallas_src>
from functools import partial

import jax
import jax.numpy as jnp
from jax.experimental import pallas as pl
from jax.experimental.pallas import tpu as pltpu


def _scan_linear_kernel(xc_ref, wt_ref, b_ref, o_ref):
    """One block of WN windows for all M = B*C rows.

    xc_ref: (M, window, WN)  im2col block (window on sublanes, WN on lanes)
    wt_ref: (H, window)      Linear weight, torch layout, grid-resident
    b_ref:  (H, 1)           bias, grid-resident, f32
    o_ref:  (M, H, WN)       output block in the final layout (lane-dense)
    """
    m_dim = xc_ref.shape[0]
    w_t = wt_ref[...]          # small, loaded once per grid step
    b = b_ref[...]
    for m in range(m_dim):     # static Python loop; M is small (B*C)
        y = jnp.dot(w_t, xc_ref[m], preferred_element_type=jnp.float32)
        o_ref[m, :, :] = (y + b).astype(o_ref.dtype)


def _pick_wn(n):
    """Windows per grid step."""
    if n <= 128:
        return n                                    # single (lane-masked) block
    # >= 2 blocks so the "parallel" grid axis feeds both v7x TensorCores;
    # lane-aligned (multiple of 128) blocks, capped at 512 so double-buffered
    # x/out blocks stay at a few MiB even on v7x's 64 MiB VMEM.
    half_up = -(-((n + 1) // 2) // 128) * 128       # ceil(ceil(n/2)/128)*128
    return max(128, min(512, half_up))


def _build_xcol_t(x2d, window, hop, n):
    """Transposed im2col: x_col[m, k, j] = x2d[m, j*hop + k]  -> (M, window, n)."""
    m_rows, _ = x2d.shape
    if window % hop == 0:
        # No gather: r shifted hop-strided slices of a pure reshape.
        r = window // hop
        p = n + r - 1                               # p*hop == (n-1)*hop + window <= T
        xr = x2d[:, :p * hop].reshape(m_rows, p, hop)
        parts = [jnp.swapaxes(xr[:, a:a + n, :], 1, 2) for a in range(r)]  # (M, hop, n)
        return jnp.concatenate(parts, axis=1)       # (M, r*hop = window, n)
    # General hop: gather fallback.
    idx = (jnp.arange(n, dtype=jnp.int32) * hop)[None, :] \
        + jnp.arange(window, dtype=jnp.int32)[:, None]          # (window, n)
    return x2d[:, idx]                              # (M, window, n)


@partial(jax.jit, static_argnames=("window", "hop", "input_dtype"))
def scan_linear(inputs, weight_hk, bias, *, window, hop, input_dtype=None):
    """Pallas Scan(Linear(window, hidden), window, hop).

    inputs:    (B, C, T) f32
    weight_hk: (H, window) f32   (native torch Linear weight layout)
    bias:      (H,) f32
    input_dtype: optionally jnp.bfloat16 to halve input-side HBM traffic
                 (f32 accumulation, bias and output stay f32).
    returns (B, C, H, n_windows) f32
    """
    B, C, T = inputs.shape
    H, wsz = weight_hk.shape
    assert wsz == window, (wsz, window)
    M = B * C
    if T < window:
        raise ValueError("sequence shorter than window")
    n = (T - window) // hop + 1                     # full windows only

    wn = _pick_wn(n)
    n_blocks = pl.cdiv(n, wn)

    x2d = inputs.reshape(M, T)
    w_t = weight_hk
    if input_dtype is not None:
        x2d = x2d.astype(input_dtype)
        w_t = w_t.astype(input_dtype)
    x_col = _build_xcol_t(x2d, window, hop, n)      # (M, window, n)
    b2d = bias.reshape(H, 1).astype(jnp.float32)

    out = pl.pallas_call(
        _scan_linear_kernel,
        out_shape=jax.ShapeDtypeStruct((M, H, n), jnp.float32),
        grid_spec=pltpu.PrefetchScalarGridSpec(
            num_scalar_prefetch=0,
            grid=(n_blocks,),
            in_specs=[
                pl.BlockSpec((M, window, wn), lambda w: (0, 0, w)),  # window block
                pl.BlockSpec((H, window), lambda w: (0, 0)),         # weight resident
                pl.BlockSpec((H, 1), lambda w: (0, 0)),              # bias resident
            ],
            out_specs=pl.BlockSpec((M, H, wn), lambda w: (0, 0, w)),
        ),
        compiler_params=pltpu.CompilerParams(
            dimension_semantics=("parallel",)),
    )(x_col, w_t, b2d)

    return out.reshape(B, C, H, n)                  # free reshape (M,H,n)->(B,C,H,n)


def _reference_scan(inputs, weight_hk, bias, *, window, hop):
    T = inputs.shape[-1]
    n = (T - window) // hop + 1
    outs = []
    for j in range(n):
        xw = inputs[..., j * hop:j * hop + window]
        outs.append(xw @ weight_hk.T + bias)
    return jnp.stack(outs, axis=-1)


if __name__ == "__main__":
    root_key = jax.random.PRNGKey(0)

    def run_case(case_id, B, C, window, hop, hidden, n_windows,
                 input_dtype=None, atol=1e-5, rtol=1e-5):
        T = window + (n_windows - 1) * hop
        k = jax.random.fold_in(root_key, case_id)
        kx, kw, kb = jax.random.split(k, 3)
        x = jax.random.normal(kx, (B, C, T), dtype=jnp.float32)
        weight = (jax.random.normal(kw, (hidden, window), dtype=jnp.float32)
                  / jnp.sqrt(jnp.float32(window)))
        bias = jax.random.normal(kb, (hidden,), dtype=jnp.float32) * 0.01

        out = scan_linear(x, weight, bias, window=window, hop=hop,
                          input_dtype=input_dtype)
        out = jax.block_until_ready(out)

        ref = _reference_scan(x, weight, bias, window=window, hop=hop)
        assert out.shape == (B, C, hidden, n_windows), (case_id, out.shape)
        assert jnp.allclose(out, ref, atol=atol, rtol=rtol), \
            f"case {case_id}: mismatch vs reference"

    # multi-block path (wn=256, 2 blocks) with a masked ragged last block, f32
    run_case(0, B=2, C=4, window=32, hop=16, hidden=128, n_windows=300)
    # tiny-n single masked block, hop == window (r = 1, non-overlapping)
    run_case(1, B=2, C=4, window=32, hop=32, hidden=128, n_windows=20)
    # hop does not divide window -> gather-fallback im2col path
    run_case(2, B=2, C=4, window=32, hop=12, hidden=64, n_windows=40)
    # bf16 inputs (v5e/v6e traffic optimization), f32 accumulation & output
    run_case(3, B=2, C=4, window=32, hop=16, hidden=128, n_windows=300,
             input_dtype=jnp.bfloat16, atol=8e-2, rtol=8e-2)

    print("KERNEL_OK")
</pallas_src>

<mosaic_0001>
module attributes {stable_mosaic.version = 11 : i64} {
  func.func @_scan_linear_kernel(%arg0: i32, %arg1: memref<8x32x256xf32, #tpu.memory_space<vmem>>, %arg2: memref<128x32xf32, #tpu.memory_space<vmem>>, %arg3: memref<128x1xf32, #tpu.memory_space<vmem>>, %arg4: memref<8x128x256xf32, #tpu.memory_space<vmem>>) attributes {dimension_semantics = [#tpu.dimension_semantics<parallel>], iteration_bounds = array<i64: 2>, scalar_prefetch = 0 : i64, scratch_operands = 0 : i64, tpu.core_type = #tpu.core_type<tc>, window_params = [{transform_indices = @transform_0, window_bounds = array<i64: 8, 32, 256>}, {pipeline_mode = #tpu.pipeline_mode<synchronous>, transform_indices = @transform_1, window_bounds = array<i64: 128, 32>}, {pipeline_mode = #tpu.pipeline_mode<synchronous>, transform_indices = @transform_2, window_bounds = array<i64: 128, 1>}, {transform_indices = @transform_3, window_bounds = array<i64: 8, 128, 256>}]} {
    %c0 = arith.constant 0 : index
    %c0_0 = arith.constant 0 : index
    %0 = vector.load %arg2[%c0, %c0_0] : memref<128x32xf32, #tpu.memory_space<vmem>>, vector<128x32xf32>
    %c0_1 = arith.constant 0 : index
    %c0_2 = arith.constant 0 : index
    %1 = vector.load %arg3[%c0_1, %c0_2] : memref<128x1xf32, #tpu.memory_space<vmem>>, vector<128x1xf32>
    %c0_3 = arith.constant 0 : index
    %c0_4 = arith.constant 0 : index
    %c0_5 = arith.constant 0 : index
    %2 = vector.load %arg1[%c0_3, %c0_4, %c0_5] : memref<8x32x256xf32, #tpu.memory_space<vmem>>, vector<1x32x256xf32>
    %3 = vector.shape_cast %2 : vector<1x32x256xf32> to vector<32x256xf32>
    %cst = arith.constant dense<0.000000e+00> : vector<128x256xf32>
    %4 = tpu.matmul %0, %3, %cst {dimension_numbers = #tpu.dot_dimension_numbers<[1], [0], [0], [1], [0, 0, 1, 1], [], []>} : vector<128x32xf32>, vector<32x256xf32>, vector<128x256xf32> -> vector<128x256xf32>
    %5 = vector.broadcast %1 : vector<128x1xf32> to vector<128x256xf32>
    %6 = arith.addf %4, %5 : vector<128x256xf32>
    %c0_6 = arith.constant 0 : index
    %c0_7 = arith.constant 0 : index
    %c0_8 = arith.constant 0 : index
    %7 = vector.load %arg4[%c0_6, %c0_7, %c0_8] : memref<8x128x256xf32, #tpu.memory_space<vmem>>, vector<1x128x256xf32>
    %8 = vector.shape_cast %7 : vector<1x128x256xf32> to vector<128x256xf32>
    %9 = vector.shape_cast %6 : vector<128x256xf32> to vector<1x128x256xf32>
    tpu.vector_store %arg4[%c0_6, %c0_7, %c0_8], %9 {strides = array<i32>} : memref<8x128x256xf32, #tpu.memory_space<vmem>>, vector<1x128x256xf32>,
    %c1 = arith.constant 1 : index
    %c0_9 = arith.constant 0 : index
    %c0_10 = arith.constant 0 : index
    %10 = vector.load %arg1[%c1, %c0_9, %c0_10] : memref<8x32x256xf32, #tpu.memory_space<vmem>>, vector<1x32x256xf32>
    %11 = vector.shape_cast %10 : vector<1x32x256xf32> to vector<32x256xf32>
    %cst_11 = arith.constant dense<0.000000e+00> : vector<128x256xf32>
    %12 = tpu.matmul %0, %11, %cst_11 {dimension_numbers = #tpu.dot_dimension_numbers<[1], [0], [0], [1], [0, 0, 1, 1], [], []>} : vector<128x32xf32>, vector<32x256xf32>, vector<128x256xf32> -> vector<128x256xf32>
    %13 = vector.broadcast %1 : vector<128x1xf32> to vector<128x256xf32>
    %14 = arith.addf %12, %13 : vector<128x256xf32>
    %c1_12 = arith.constant 1 : index
    %c0_13 = arith.constant 0 : index
    %c0_14 = arith.constant 0 : index
    %15 = vector.load %arg4[%c1_12, %c0_13, %c0_14] : memref<8x128x256xf32, #tpu.memory_space<vmem>>, vector<1x128x256xf32>
    %16 = vector.shape_cast %15 : vector<1x128x256xf32> to vector<128x256xf32>
    %17 = vector.shape_cast %14 : vector<128x256xf32> to vector<1x128x256xf32>
    tpu.vector_store %arg4[%c1_12, %c0_13, %c0_14], %17 {strides = array<i32>} : memref<8x128x256xf32, #tpu.memory_space<vmem>>, vector<1x128x256xf32>,
    %c2 = arith.constant 2 : index
    %c0_15 = arith.constant 0 : index
    %c0_16 = arith.constant 0 : index
    %18 = vector.load %arg1[%c2, %c0_15, %c0_16] : memref<8x32x256xf32, #tpu.memory_space<vmem>>, vector<1x32x256xf32>
    %19 = vector.shape_cast %18 : vector<1x32x256xf32> to vector<32x256xf32>
    %cst_17 = arith.constant dense<0.000000e+00> : vector<128x256xf32>
    %20 = tpu.matmul %0, %19, %cst_17 {dimension_numbers = #tpu.dot_dimension_numbers<[1], [0], [0], [1], [0, 0, 1, 1], [], []>} : vector<128x32xf32>, vector<32x256xf32>, vector<128x256xf32> -> vector<128x256xf32>
    %21 = vector.broadcast %1 : vector<128x1xf32> to vector<128x256xf32>
    %22 = arith.addf %20, %21 : vector<128x256xf32>
    %c2_18 = arith.constant 2 : index
    %c0_19 = arith.constant 0 : index
    %c0_20 = arith.constant 0 : index
    %23 = vector.load %arg4[%c2_18, %c0_19, %c0_20] : memref<8x128x256xf32, #tpu.memory_space<vmem>>, vector<1x128x256xf32>
    %24 = vector.shape_cast %23 : vector<1x128x256xf32> to vector<128x256xf32>
    %25 = vector.shape_cast %22 : vector<128x256xf32> to vector<1x128x256xf32>
    tpu.vector_store %arg4[%c2_18, %c0_19, %c0_20], %25 {strides = array<i32>} : memref<8x128x256xf32, #tpu.memory_space<vmem>>, vector<1x128x256xf32>,
    %c3 = arith.constant 3 : index
    %c0_21 = arith.constant 0 : index
    %c0_22 = arith.constant 0 : index
    %26 = vector.load %arg1[%c3, %c0_21, %c0_22] : memref<8x32x256xf32, #tpu.memory_space<vmem>>, vector<1x32x256xf32>
    %27 = vector.shape_cast %26 : vector<1x32x256xf32> to vector<32x256xf32>
    %cst_23 = arith.constant dense<0.000000e+00> : vector<128x256xf32>
    %28 = tpu.matmul %0, %27, %cst_23 {dimension_numbers = #tpu.dot_dimension_numbers<[1], [0], [0], [1], [0, 0, 1, 1], [], []>} : vector<128x32xf32>, vector<32x256xf32>, vector<128x256xf32> -> vector<128x256xf32>
    %29 = vector.broadcast %1 : vector<128x1xf32> to vector<128x256xf32>
    %30 = arith.addf %28, %29 : vector<128x256xf32>
    %c3_24 = arith.constant 3 : index
    %c0_25 = arith.constant 0 : index
    %c0_26 = arith.constant 0 : index
    %31 = vector.load %arg4[%c3_24, %c0_25, %c0_26] : memref<8x128x256xf32, #tpu.memory_space<vmem>>, vector<1x128x256xf32>
    %32 = vector.shape_cast %31 : vector<1x128x256xf32> to vector<128x256xf32>
    %33 = vector.shape_cast %30 : vector<128x256xf32> to vector<1x128x256xf32>
    tpu.vector_store %arg4[%c3_24, %c0_25, %c0_26], %33 {strides = array<i32>} : memref<8x128x256xf32, #tpu.memory_space<vmem>>, vector<1x128x256xf32>,
    %c4 = arith.constant 4 : index
    %c0_27 = arith.constant 0 : index
    %c0_28 = arith.constant 0 : index
    %34 = vector.load %arg1[%c4, %c0_27, %c0_28] : memref<8x32x256xf32, #tpu.memory_space<vmem>>, vector<1x32x256xf32>
    %35 = vector.shape_cast %34 : vector<1x32x256xf32> to vector<32x256xf32>
    %cst_29 = arith.constant dense<0.000000e+00> : vector<128x256xf32>
    %36 = tpu.matmul %0, %35, %cst_29 {dimension_numbers = #tpu.dot_dimension_numbers<[1], [0], [0], [1], [0, 0, 1, 1], [], []>} : vector<128x32xf32>, vector<32x256xf32>, vector<128x256xf32> -> vector<128x256xf32>
    %37 = vector.broadcast %1 : vector<128x1xf32> to vector<128x256xf32>
    %38 = arith.addf %36, %37 : vector<128x256xf32>
    %c4_30 = arith.constant 4 : index
    %c0_31 = arith.constant 0 : index
    %c0_32 = arith.constant 0 : index
    %39 = vector.load %arg4[%c4_30, %c0_31, %c0_32] : memref<8x128x256xf32, #tpu.memory_space<vmem>>, vector<1x128x256xf32>
    %40 = vector.shape_cast %39 : vector<1x128x256xf32> to vector<128x256xf32>
    %41 = vector.shape_cast %38 : vector<128x256xf32> to vector<1x128x256xf32>
    tpu.vector_store %arg4[%c4_30, %c0_31, %c0_32], %41 {strides = array<i32>} : memref<8x128x256xf32, #tpu.memory_space<vmem>>, vector<1x128x256xf32>,
    %c5 = arith.constant 5 : index
    %c0_33 = arith.constant 0 : index
    %c0_34 = arith.constant 0 : index
    %42 = vector.load %arg1[%c5, %c0_33, %c0_34] : memref<8x32x256xf32, #tpu.memory_space<vmem>>, vector<1x32x256xf32>
    %43 = vector.shape_cast %42 : vector<1x32x256xf32> to vector<32x256xf32>
    %cst_35 = arith.constant dense<0.000000e+00> : vector<128x256xf32>
    %44 = tpu.matmul %0, %43, %cst_35 {dimension_numbers = #tpu.dot_dimension_numbers<[1], [0], [0], [1], [0, 0, 1, 1], [], []>} : vector<128x32xf32>, vector<32x256xf32>, vector<128x256xf32> -> vector<128x256xf32>
    %45 = vector.broadcast %1 : vector<128x1xf32> to vector<128x256xf32>
    %46 = arith.addf %44, %45 : vector<128x256xf32>
    %c5_36 = arith.constant 5 : index
    %c0_37 = arith.constant 0 : index
    %c0_38 = arith.constant 0 : index
    %47 = vector.load %arg4[%c5_36, %c0_37, %c0_38] : memref<8x128x256xf32, #tpu.memory_space<vmem>>, vector<1x128x256xf32>
    %48 = vector.shape_cast %47 : vector<1x128x256xf32> to vector<128x256xf32>
    %49 = vector.shape_cast %46 : vector<128x256xf32> to vector<1x128x256xf32>
    tpu.vector_store %arg4[%c5_36, %c0_37, %c0_38], %49 {strides = array<i32>} : memref<8x128x256xf32, #tpu.memory_space<vmem>>, vector<1x128x256xf32>,
    %c6 = arith.constant 6 : index
    %c0_39 = arith.constant 0 : index
    %c0_40 = arith.constant 0 : index
    %50 = vector.load %arg1[%c6, %c0_39, %c0_40] : memref<8x32x256xf32, #tpu.memory_space<vmem>>, vector<1x32x256xf32>
    %51 = vector.shape_cast %50 : vector<1x32x256xf32> to vector<32x256xf32>
    %cst_41 = arith.constant dense<0.000000e+00> : vector<128x256xf32>
    %52 = tpu.matmul %0, %51, %cst_41 {dimension_numbers = #tpu.dot_dimension_numbers<[1], [0], [0], [1], [0, 0, 1, 1], [], []>} : vector<128x32xf32>, vector<32x256xf32>, vector<128x256xf32> -> vector<128x256xf32>
    %53 = vector.broadcast %1 : vector<128x1xf32> to vector<128x256xf32>
    %54 = arith.addf %52, %53 : vector<128x256xf32>
    %c6_42 = arith.constant 6 : index
    %c0_43 = arith.constant 0 : index
    %c0_44 = arith.constant 0 : index
    %55 = vector.load %arg4[%c6_42, %c0_43, %c0_44] : memref<8x128x256xf32, #tpu.memory_space<vmem>>, vector<1x128x256xf32>
    %56 = vector.shape_cast %55 : vector<1x128x256xf32> to vector<128x256xf32>
    %57 = vector.shape_cast %54 : vector<128x256xf32> to vector<1x128x256xf32>
    tpu.vector_store %arg4[%c6_42, %c0_43, %c0_44], %57 {strides = array<i32>} : memref<8x128x256xf32, #tpu.memory_space<vmem>>, vector<1x128x256xf32>,
    %c7 = arith.constant 7 : index
    %c0_45 = arith.constant 0 : index
    %c0_46 = arith.constant 0 : index
    %58 = vector.load %arg1[%c7, %c0_45, %c0_46] : memref<8x32x256xf32, #tpu.memory_space<vmem>>, vector<1x32x256xf32>
    %59 = vector.shape_cast %58 : vector<1x32x256xf32> to vector<32x256xf32>
    %cst_47 = arith.constant dense<0.000000e+00> : vector<128x256xf32>
    %60 = tpu.matmul %0, %59, %cst_47 {dimension_numbers = #tpu.dot_dimension_numbers<[1], [0], [0], [1], [0, 0, 1, 1], [], []>} : vector<128x32xf32>, vector<32x256xf32>, vector<128x256xf32> -> vector<128x256xf32>
    %61 = vector.broadcast %1 : vector<128x1xf32> to vector<128x256xf32>
    %62 = arith.addf %60, %61 : vector<128x256xf32>
    %c7_48 = arith.constant 7 : index
    %c0_49 = arith.constant 0 : index
    %c0_50 = arith.constant 0 : index
    %63 = vector.load %arg4[%c7_48, %c0_49, %c0_50] : memref<8x128x256xf32, #tpu.memory_space<vmem>>, vector<1x128x256xf32>
    %64 = vector.shape_cast %63 : vector<1x128x256xf32> to vector<128x256xf32>
    %65 = vector.shape_cast %62 : vector<128x256xf32> to vector<1x128x256xf32>
    tpu.vector_store %arg4[%c7_48, %c0_49, %c0_50], %65 {strides = array<i32>} : memref<8x128x256xf32, #tpu.memory_space<vmem>>, vector<1x128x256xf32>,
    return
  }
  func.func @transform_0(%arg0: i32) -> (i32, i32, i32) {
    %c0_i32 = arith.constant 0 : i32
    %c0_i32_0 = arith.constant 0 : i32
    %c0_i32_1 = arith.constant 0 : i32
    return %c0_i32, %c0_i32_0, %arg0 : i32, i32, i32
  }
  func.func @transform_1(%arg0: i32) -> (i32, i32) {
    %c0_i32 = arith.constant 0 : i32
    %c0_i32_0 = arith.constant 0 : i32
    %c0_i32_1 = arith.constant 0 : i32
    return %c0_i32, %c0_i32_0 : i32, i32
  }
  func.func @transform_2(%arg0: i32) -> (i32, i32) {
    %c0_i32 = arith.constant 0 : i32
    %c0_i32_0 = arith.constant 0 : i32
    %c0_i32_1 = arith.constant 0 : i32
    return %c0_i32, %c0_i32_0 : i32, i32
  }
  func.func @transform_3(%arg0: i32) -> (i32, i32, i32) {
    %c0_i32 = arith.constant 0 : i32
    %c0_i32_0 = arith.constant 0 : i32
    %c0_i32_1 = arith.constant 0 : i32
    return %c0_i32, %c0_i32_0, %arg0 : i32, i32, i32
  }
}

</mosaic_0001>

<llo_original>
// kernel: scan_linear.1
$region0: #{scan_linear.1}
  #allocation0 [shape = 'u32[]', space=smem, size = 0x4, offset = 0x4, fixed_abs, tag = 'smem constant byte address 0x4 - core index']
  #allocation1 [shape = 'u32[144,128]{1,0:T(1,128)}', space=vmem, size = 0x12000, scoped, tag = 'internal scratch']
  %s0 = inlined_call_operand.vmem [shape: f32[8,32,300], index: 0, kind: input, shape index: {}]
  %s1 = inlined_call_operand.vmem [shape: f32[128,32], index: 1, kind: input, shape index: {}]
  %s2 = inlined_call_operand.vmem [shape: f32[128,1], index: 2, kind: input, shape index: {}]
  %s3 = inlined_call_operand.vmem [shape: f32[8,128,300], index: 3, kind: output, shape index: {}]
  %s4 = sld [smem:[#allocation0]]
  $region159: #{scan_linear.1} parent=0
    _
  %s6 = ssub.s32 1, %s4
  %s7 = scalar_select 0, %s6, %s4
  $region1: #{scan_linear.1} parent=0
    #allocation2 [shape = 'u8[524288]{0}', space=vmem, size = 0x80000, scoped, tag = 'input window, operand 0']
    #allocation3 [shape = 'u8[2097152]{0}', space=vmem, size = 0x200000, scoped, tag = 'output window, operand 0']
    loop: start=0, step=1, limit=4
    $region2: #{scan_linear.1} parent=1 // loop_pre_header
      _
    $region3: #{scan_linear.1} parent=1 // loop_header
      %s9 = sphi 0, %s13
      %p10 = scmp.ge.s32.totalorder %s9, 4
      %s19 = sphi 0, %s21
      %s22 = sphi 0, %s19
      %s23 = sphi 0, %s22
      %s39 = sphi 0, %s23
      %s43 = sphi 0, %s43
      %s45 = sphi 0, %s43
      %s46 = sphi 0, %s45
      %s60 = sphi 0, %s46
      %s64 = sphi 0, %s64
      %s66 = sphi 0, %s64
      %s67 = sphi 0, %s66
      %s81 = sphi 0, %s67
      %s87 = sphi 0, %s89
      %s90 = sphi 0, %s87
      %s91 = sphi 0, %s90
      %s107 = sphi 0, %s91
    $region4: #{scan_linear.1} parent=1 // loop_header_branch
      %12 = sbr.rel (%p10) target = $region8
    $region5: #{scan_linear.1} parent=1 // loop_body
      %s14 = ssub.s32 %s9, 1
      %s15 = ssub.s32 %s9, 2
      %s16 = sadd.s32 %s9, 1
      %s17 = ssub.s32 %s9, %s16
      %p18 = scmp.eq.s32.totalorder %s17, 0
      %s20 = sadd.s32 %s19, 1
      %s21 = scalar_select %p18, %s19, %s20
      %p24 = pneg %p18
      %p25 = scmp.eq.s32.totalorder %s9, 1
      %p26 = por %p24, %p25
      %p27 = scmp.ne.s32.totalorder %s19, %s22
      %p28 = scmp.eq.s32.totalorder %s9, 0
      %p29 = por %p27, %p28
      %p30 = scmp.ne.s32.totalorder %s19, %s22
      %p31 = scmp.eq.s32.totalorder %s14, 1
      %p32 = por %p30, %p31
      %p33 = scmp.ne.s32.totalorder %s22, %s23
      %p34 = scmp.eq.s32.totalorder %s14, 0
      %p35 = por %p33, %p34
      %p36 = scmp.ne.s32.totalorder %s22, %s23
      %p37 = scmp.eq.s32.totalorder %s15, 1
      %p38 = por %p36, %p37
      %p40 = scmp.ne.s32.totalorder %s23, %s39
      %p41 = scmp.eq.s32.totalorder %s15, 0
      %p42 = por %p40, %p41
      %s44 = sadd.s32 %s43, 1
      %p47 = scmp.eq.s32.totalorder %s9, 1
      %p48 = scmp.ne.s32.totalorder %s43, %s45
      %p49 = scmp.eq.s32.totalorder %s9, 0
      %p50 = por %p48, %p49
      %p51 = scmp.ne.s32.totalorder %s43, %s45
      %p52 = scmp.eq.s32.totalorder %s14, 1
      %p53 = por %p51, %p52
      %p54 = scmp.ne.s32.totalorder %s45, %s46
      %p55 = scmp.eq.s32.totalorder %s14, 0
      %p56 = por %p54, %p55
      %p57 = scmp.ne.s32.totalorder %s45, %s46
      %p58 = scmp.eq.s32.totalorder %s15, 1
      %p59 = por %p57, %p58
      %p61 = scmp.ne.s32.totalorder %s46, %s60
      %p62 = scmp.eq.s32.totalorder %s15, 0
      %p63 = por %p61, %p62
      %s65 = sadd.s32 %s64, 1
      %p68 = scmp.eq.s32.totalorder %s9, 1
      %p69 = scmp.ne.s32.totalorder %s64, %s66
      %p70 = scmp.eq.s32.totalorder %s9, 0
      %p71 = por %p69, %p70
      %p72 = scmp.ne.s32.totalorder %s64, %s66
      %p73 = scmp.eq.s32.totalorder %s14, 1
      %p74 = por %p72, %p73
      %p75 = scmp.ne.s32.totalorder %s66, %s67
      %p76 = scmp.eq.s32.totalorder %s14, 0
      %p77 = por %p75, %p76
      %p78 = scmp.ne.s32.totalorder %s66, %s67
      %p79 = scmp.eq.s32.totalorder %s15, 1
      %p80 = por %p78, %p79
      %p82 = scmp.ne.s32.totalorder %s67, %s81
      %p83 = scmp.eq.s32.totalorder %s15, 0
      %p84 = por %p82, %p83
      %s85 = ssub.s32 %s9, %s16
      %p86 = scmp.eq.s32.totalorder %s85, 0
      %s88 = sadd.s32 %s87, 1
      %s89 = scalar_select %p86, %s87, %s88
      %p92 = pneg %p86
      %p93 = scmp.eq.s32.totalorder %s9, 1
      %p94 = por %p92, %p93
      %p95 = scmp.ne.s32.totalorder %s87, %s90
      %p96 = scmp.eq.s32.totalorder %s9, 0
      %p97 = por %p95, %p96
      %p98 = scmp.ne.s32.totalorder %s87, %s90
      %p99 = scmp.eq.s32.totalorder %s14, 1
      %p100 = por %p98, %p99
      %p101 = scmp.ne.s32.totalorder %s90, %s91
      %p102 = scmp.eq.s32.totalorder %s14, 0
      %p103 = por %p101, %p102
      %p104 = scmp.ne.s32.totalorder %s90, %s91
      %p105 = scmp.eq.s32.totalorder %s15, 1
      %p106 = por %p104, %p105
      %p108 = scmp.ne.s32.totalorder %s91, %s107
      %p109 = scmp.eq.s32.totalorder %s15, 0
      %p110 = por %p108, %p109
      %p111 = scmp.le.s32.totalorder 1, %s9
      %p112 = scmp.lt.s32.totalorder %s9, 3
      %p113 = pnand %p111, %p112
      %p114 = pneg %p113
      // Predicated region
      $region9: #{scan_linear.1} parent=5 // pred_check
        _
      $region10: #{scan_linear.1} parent=5 // pred_check_branch
        %116 = sbr.rel (%p113) target = $region12
      $region11: #{scan_linear.1} parent=5 // pred_region
        %s117 = ssub.s32 %s9, 1
        // Predicated region
        $region13: #{scan_linear.1} parent=11 // pred_check
          %p118 = pneg %p56
        $region14: #{scan_linear.1} parent=11 // pred_check_branch
          %120 = sbr.rel (%p118) target = $region16
        $region15: #{scan_linear.1} parent=11 // pred_region
          _
        $region16: #{scan_linear.1} parent=11 // pred_fallthru
          _
        // Predicated region
        $region17: #{scan_linear.1} parent=11 // pred_check
          %p121 = pneg %p77
        $region18: #{scan_linear.1} parent=11 // pred_check_branch
          %123 = sbr.rel (%p121) target = $region20
        $region19: #{scan_linear.1} parent=11 // pred_region
          _
        $region20: #{scan_linear.1} parent=11 // pred_fallthru
          _
      $region12: #{scan_linear.1} parent=5 // pred_fallthru
        _
      %p124 = scmp.lt.s32.totalorder %s9, 2
      // Predicated region
      $region21: #{scan_linear.1} parent=5 // pred_check
        %p125 = pneg %p124
      $region22: #{scan_linear.1} parent=5 // pred_check_branch
        %127 = sbr.rel (%p125) target = $region24
      $region23: #{scan_linear.1} parent=5 // pred_region
        // Predicated region
        $region25: #{scan_linear.1} parent=23 // pred_check
          %p128 = pneg %p29
        $region26: #{scan_linear.1} parent=23 // pred_check_branch
          %130 = sbr.rel (%p128) target = $region28
        $region27: #{scan_linear.1} parent=23 // pred_region
          %s131 = sand.u32 %s19, 1
          %s132 = sand.u32 %s19, 1
          %s133 = smul.addr %s132, 512
          %s134 = scalar_lea.vmem [#allocation2], %s133
          %s135 = smul.u32 2, %s9
          %s136 = ssub.s32 3, %s135
          %p137 = scmp.lt.s32.totalorder %s136, 2
          %s138 = scalar_select %p137, %s136, 2
          %s139 = smul.u32 4096, %s138
          %p140 = scmp.ne.s32.totalorder 0, %s139
          %s141 = smul.addr %s135, 8
          %s142 = scalar_lea.vmem %s0, %s141
          %s143 = smul.u32 %s138, 8
          // Predicated region
          $region29: #{scan_linear.1} parent=27 // pred_check
            %p144 = pneg %p140
          $region30: #{scan_linear.1} parent=27 // pred_check_branch
            %146 = sbr.rel (%p144) target = $region32
          $region31: #{scan_linear.1} parent=27 // pred_region
            %p147 = scmp.lt.u32.totalorder %s143, 8
            %p148 = pneg %p147
            // Predicated region
            $region33: #{scan_linear.1} parent=31 // pred_check
              _
            $region34: #{scan_linear.1} parent=31 // pred_check_branch
              %150 = sbr.rel (%p147) target = $region36
            $region35: #{scan_linear.1} parent=31 // pred_region
              %s228 = sand.u32 %s143, 7
              %p229 = scmp.eq.s32.totalorder %s228, 0
              // Predicated region
              $region48: #{scan_linear.1} parent=35 // pred_check
                %p230 = pneg %p229
              $region49: #{scan_linear.1} parent=35 // pred_check_branch
                %232 = sbr.rel (%p230) target = $region51
              $region50: #{scan_linear.1} parent=35 // pred_region
                %s233 = sshrl.u32 %s143, 3
                %s234 = sshrl.u32 %s233, 1
                // While loop
                $region52: #{scan_linear.1} parent=50 // loop_pre_header
                  _
                $region53: #{scan_linear.1} parent=50 // loop_header
                  %s238 = sphi 0, %s240
                  %p239 = scmp.ge.s32.totalorder %s238, %s234
                  %s243 = sphi 0, %s376
                  %s244 = sphi %s142, %s379
                  %s245 = sphi %s134, %s380
                $region54: #{scan_linear.1} parent=50 // loop_header_branch
                  %242 = sbr.rel (%p239) target = $region58
                $region55: #{scan_linear.1} parent=50 // loop_body
                  %v246 = vld [vmem:[%s244] sm:$0xff]
                  %247 = vst [vmem:[%s245] sm:$0xff] %v246
                  %v248 = vld [vmem:[%s244 + $0x8] sm:$0xff]
                  %249 = vst [vmem:[%s245 + $0x8] sm:$0xff] %v248
                  %v250 = vld [vmem:[%s244 + $0x18] sm:$0xff]
                  %251 = vst [vmem:[%s245 + $0x10] sm:$0xff] %v250
                  %v252 = vld [vmem:[%s244 + $0x20] sm:$0xff]
                  %253 = vst [vmem:[%s245 + $0x18] sm:$0xff] %v252
                  %v254 = vld [vmem:[%s244 + $0x30] sm:$0xff]
                  %255 = vst [vmem:[%s245 + $0x20] sm:$0xff] %v254
                  %v256 = vld [vmem:[%s244 + $0x38] sm:$0xff]
                  %257 = vst [vmem:[%s245 + $0x28] sm:$0xff] %v256
                  %v258 = vld [vmem:[%s244 + $0x48] sm:$0xff]
                  %259 = vst [vmem:[%s245 + $0x30] sm:$0xff] %v258
                  %v260 = vld [vmem:[%s244 + $0x50] sm:$0xff]
                  %261 = vst [vmem:[%s245 + $0x38] sm:$0xff] %v260
                  %v262 = vld [vmem:[%s244 + $0x60] sm:$0xff]
                  %263 = vst [vmem:[%s245 + $0x40] sm:$0xff] %v262
                  %v264 = vld [vmem:[%s244 + $0x68] sm:$0xff]
                  %265 = vst [vmem:[%s245 + $0x48] sm:$0xff] %v264
                  %v266 = vld [vmem:[%s244 + $0x78] sm:$0xff]
                  %267 = vst [vmem:[%s245 + $0x50] sm:$0xff] %v266
                  %v268 = vld [vmem:[%s244 + $0x80] sm:$0xff]
                  %269 = vst [vmem:[%s245 + $0x58] sm:$0xff] %v268
                  %v270 = vld [vmem:[%s244 + $0x90] sm:$0xff]
                  %271 = vst [vmem:[%s245 + $0x60] sm:$0xff] %v270
                  %v272 = vld [vmem:[%s244 + $0x98] sm:$0xff]
                  %273 = vst [vmem:[%s245 + $0x68] sm:$0xff] %v272
                  %v274 = vld [vmem:[%s244 + $0xa8] sm:$0xff]
                  %275 = vst [vmem:[%s245 + $0x70] sm:$0xff] %v274
                  %v276 = vld [vmem:[%s244 + $0xb0] sm:$0xff]
                  %277 = vst [vmem:[%s245 + $0x78] sm:$0xff] %v276
                  %v278 = vld [vmem:[%s244 + $0xc0] sm:$0xff]
                  %279 = vst [vmem:[%s245 + $0x80] sm:$0xff] %v278
                  %v280 = vld [vmem:[%s244 + $0xc8] sm:$0xff]
                  %281 = vst [vmem:[%s245 + $0x88] sm:$0xff] %v280
                  %v282 = vld [vmem:[%s244 + $0xd8] sm:$0xff]
                  %283 = vst [vmem:[%s245 + $0x90] sm:$0xff] %v282
                  %v284 = vld [vmem:[%s244 + $0xe0] sm:$0xff]
                  %285 = vst [vmem:[%s245 + $0x98] sm:$0xff] %v284
                  %v286 = vld [vmem:[%s244 + $0xf0] sm:$0xff]
                  %287 = vst [vmem:[%s245 + $0xa0] sm:$0xff] %v286
                  %v288 = vld [vmem:[%s244 + $0xf8] sm:$0xff]
                  %289 = vst [vmem:[%s245 + $0xa8] sm:$0xff] %v288
                  %v290 = vld [vmem:[%s244 + $0x108] sm:$0xff]
                  %291 = vst [vmem:[%s245 + $0xb0] sm:$0xff] %v290
                  %v292 = vld [vmem:[%s244 + $0x110] sm:$0xff]
                  %293 = vst [vmem:[%s245 + $0xb8] sm:$0xff] %v292
                  %v294 = vld [vmem:[%s244 + $0x120] sm:$0xff]
                  %295 = vst [vmem:[%s245 + $0xc0] sm:$0xff] %v294
                  %v296 = vld [vmem:[%s244 + $0x128] sm:$0xff]
                  %297 = vst [vmem:[%s245 + $0xc8] sm:$0xff] %v296
                  %v298 = vld [vmem:[%s244 + $0x138] sm:$0xff]
                  %299 = vst [vmem:[%s245 + $0xd0] sm:$0xff] %v298
                  %v300 = vld [vmem:[%s244 + $0x140] sm:$0xff]
                  %301 = vst [vmem:[%s245 + $0xd8] sm:$0xff] %v300
                  %v302 = vld [vmem:[%s244 + $0x150] sm:$0xff]
                  %303 = vst [vmem:[%s245 + $0xe0] sm:$0xff] %v302
                  %v304 = vld [vmem:[%s244 + $0x158] sm:$0xff]
                  %305 = vst [vmem:[%s245 + $0xe8] sm:$0xff] %v304
                  %v306 = vld [vmem:[%s244 + $0x168] sm:$0xff]
                  %307 = vst [vmem:[%s245 + $0xf0] sm:$0xff] %v306
                  %v308 = vld [vmem:[%s244 + $0x170] sm:$0xff]
                  %309 = vst [vmem:[%s245 + $0xf8] sm:$0xff] %v308
                  %v310 = vld [vmem:[%s244 + $0x180] sm:$0xff]
                  %311 = vst [vmem:[%s245 + $0x100] sm:$0xff] %v310
                  %v312 = vld [vmem:[%s244 + $0x188] sm:$0xff]
                  %313 = vst [vmem:[%s245 + $0x108] sm:$0xff] %v312
                  %v314 = vld [vmem:[%s244 + $0x198] sm:$0xff]
                  %315 = vst [vmem:[%s245 + $0x110] sm:$0xff] %v314
                  %v316 = vld [vmem:[%s244 + $0x1a0] sm:$0xff]
                  %317 = vst [vmem:[%s245 + $0x118] sm:$0xff] %v316
                  %v318 = vld [vmem:[%s244 + $0x1b0] sm:$0xff]
                  %319 = vst [vmem:[%s245 + $0x120] sm:$0xff] %v318
                  %v320 = vld [vmem:[%s244 + $0x1b8] sm:$0xff]
                  %321 = vst [vmem:[%s245 + $0x128] sm:$0xff] %v320
                  %v322 = vld [vmem:[%s244 + $0x1c8] sm:$0xff]
                  %323 = vst [vmem:[%s245 + $0x130] sm:$0xff] %v322
                  %v324 = vld [vmem:[%s244 + $0x1d0] sm:$0xff]
                  %325 = vst [vmem:[%s245 + $0x138] sm:$0xff] %v324
                  %v326 = vld [vmem:[%s244 + $0x1e0] sm:$0xff]
                  %327 = vst [vmem:[%s245 + $0x140] sm:$0xff] %v326
                  %v328 = vld [vmem:[%s244 + $0x1e8] sm:$0xff]
                  %329 = vst [vmem:[%s245 + $0x148] sm:$0xff] %v328
                  %v330 = vld [vmem:[%s244 + $0x1f8] sm:$0xff]
                  %331 = vst [vmem:[%s245 + $0x150] sm:$0xff] %v330
                  %v332 = vld [vmem:[%s244 + $0x200] sm:$0xff]
                  %333 = vst [vmem:[%s245 + $0x158] sm:$0xff] %v332
                  %v334 = vld [vmem:[%s244 + $0x210] sm:$0xff]
                  %335 = vst [vmem:[%s245 + $0x160] sm:$0xff] %v334
                  %v336 = vld [vmem:[%s244 + $0x218] sm:$0xff]
                  %337 = vst [vmem:[%s245 + $0x168] sm:$0xff] %v336
                  %v338 = vld [vmem:[%s244 + $0x228] sm:$0xff]
                  %339 = vst [vmem:[%s245 + $0x170] sm:$0xff] %v338
                  %v340 = vld [vmem:[%s244 + $0x230] sm:$0xff]
                  %341 = vst [vmem:[%s245 + $0x178] sm:$0xff] %v340
                  %v342 = vld [vmem:[%s244 + $0x240] sm:$0xff]
                  %343 = vst [vmem:[%s245 + $0x180] sm:$0xff] %v342
                  %v344 = vld [vmem:[%s244 + $0x248] sm:$0xff]
                  %345 = vst [vmem:[%s245 + $0x188] sm:$0xff] %v344
                  %v346 = vld [vmem:[%s244 + $0x258] sm:$0xff]
                  %347 = vst [vmem:[%s245 + $0x190] sm:$0xff] %v346
                  %v348 = vld [vmem:[%s244 + $0x260] sm:$0xff]
                  %349 = vst [vmem:[%s245 + $0x198] sm:$0xff] %v348
                  %v350 = vld [vmem:[%s244 + $0x270] sm:$0xff]
                  %351 = vst [vmem:[%s245 + $0x1a0] sm:$0xff] %v350
                  %v352 = vld [vmem:[%s244 + $0x278] sm:$0xff]
                  %353 = vst [vmem:[%s245 + $0x1a8] sm:$0xff] %v352
                  %v354 = vld [vmem:[%s244 + $0x288] sm:$0xff]
                  %355 = vst [vmem:[%s245 + $0x1b0] sm:$0xff] %v354
                  %v356 = vld [vmem:[%s244 + $0x290] sm:$0xff]
                  %357 = vst [vmem:[%s245 + $0x1b8] sm:$0xff] %v356
                  %v358 = vld [vmem:[%s244 + $0x2a0] sm:$0xff]
                  %359 = vst [vmem:[%s245 + $0x1c0] sm:$0xff] %v358
                  %v360 = vld [vmem:[%s244 + $0x2a8] sm:$0xff]
                  %361 = vst [vmem:[%s245 + $0x1c8] sm:$0xff] %v360
                  %v362 = vld [vmem:[%s244 + $0x2b8] sm:$0xff]
                  %363 = vst [vmem:[%s245 + $0x1d0] sm:$0xff] %v362
                  %v364 = vld [vmem:[%s244 + $0x2c0] sm:$0xff]
                  %365 = vst [vmem:[%s245 + $0x1d8] sm:$0xff] %v364
                  %v366 = vld [vmem:[%s244 + $0x2d0] sm:$0xff]
                  %367 = vst [vmem:[%s245 + $0x1e0] sm:$0xff] %v366
                  %v368 = vld [vmem:[%s244 + $0x2d8] sm:$0xff]
                  %369 = vst [vmem:[%s245 + $0x1e8] sm:$0xff] %v368
                  %v370 = vld [vmem:[%s244 + $0x2e8] sm:$0xff]
                  %371 = vst [vmem:[%s245 + $0x1f0] sm:$0xff] %v370
                  %v372 = vld [vmem:[%s244 + $0x2f0] sm:$0xff]
                  %373 = vst [vmem:[%s245 + $0x1f8] sm:$0xff] %v372
                  %s374 = sadd.s32 1, %s243
                  %p375 = scmp.ge.s32.totalorder %s374, %s234
                  %s376 = scalar_select %p375, 0, %s374
                  %s377 = smul.u32 %s376, 16
                  %s378 = smul.u32 %s376, 16
                  %s379 = scalar_lea.vmem %s142, %s377
                  %s380 = scalar_lea.vmem %s134, %s378 [#allocation2]
                $region56: #{scan_linear.1} parent=50 // loop_footer
                  %s240 = sadd.s32 %s238, 1
                $region57: #{scan_linear.1} parent=50 // loop_footer_branch
                  %237 = sbr.rel target = $region53
                $region58: #{scan_linear.1} parent=50 // loop_exit
                  _
                %s381 = sshrl.u32 %s233, 1
                %s382 = sand.u32 %s233, 1
                %s383 = smul.u32 %s381, 2
                %s384 = smul.u32 128, %s383
                %s385 = sshra.s32 %s384, 4
                %s386 = scalar_lea.vmem %s142, %s385
                %s387 = smul.u32 128, %s383
                %s388 = sshra.s32 %s387, 4
                %s389 = scalar_lea.vmem %s134, %s388 [#allocation2]
                // While loop
                $region59: #{scan_linear.1} parent=50 // loop_pre_header
                  _
                $region60: #{scan_linear.1} parent=50 // loop_header
                  %s393 = sphi 0, %s395
                  %p394 = scmp.ge.s32.totalorder %s393, %s382
                  %s398 = sphi 0, %s467
                  %s399 = sphi %s386, %s470
                  %s400 = sphi %s389, %s471
                $region61: #{scan_linear.1} parent=50 // loop_header_branch
                  %397 = sbr.rel (%p394) target = $region65
                $region62: #{scan_linear.1} parent=50 // loop_body
                  %v401 = vld [vmem:[%s399] sm:$0xff]
                  %402 = vst [vmem:[%s400] sm:$0xff] %v401
                  %v403 = vld [vmem:[%s399 + $0x18] sm:$0xff]
                  %404 = vst [vmem:[%s400 + $0x10] sm:$0xff] %v403
                  %v405 = vld [vmem:[%s399 + $0x30] sm:$0xff]
                  %406 = vst [vmem:[%s400 + $0x20] sm:$0xff] %v405
                  %v407 = vld [vmem:[%s399 + $0x48] sm:$0xff]
                  %408 = vst [vmem:[%s400 + $0x30] sm:$0xff] %v407
                  %v409 = vld [vmem:[%s399 + $0x60] sm:$0xff]
                  %410 = vst [vmem:[%s400 + $0x40] sm:$0xff] %v409
                  %v411 = vld [vmem:[%s399 + $0x78] sm:$0xff]
                  %412 = vst [vmem:[%s400 + $0x50] sm:$0xff] %v411
                  %v413 = vld [vmem:[%s399 + $0x90] sm:$0xff]
                  %414 = vst [vmem:[%s400 + $0x60] sm:$0xff] %v413
                  %v415 = vld [vmem:[%s399 + $0xa8] sm:$0xff]
                  %416 = vst [vmem:[%s400 + $0x70] sm:$0xff] %v415
                  %v417 = vld [vmem:[%s399 + $0xc0] sm:$0xff]
                  %418 = vst [vmem:[%s400 + $0x80] sm:$0xff] %v417
                  %v419 = vld [vmem:[%s399 + $0xd8] sm:$0xff]
                  %420 = vst [vmem:[%s400 + $0x90] sm:$0xff] %v419
                  %v421 = vld [vmem:[%s399 + $0xf0] sm:$0xff]
                  %422 = vst [vmem:[%s400 + $0xa0] sm:$0xff] %v421
                  %v423 = vld [vmem:[%s399 + $0x108] sm:$0xff]
                  %424 = vst [vmem:[%s400 + $0xb0] sm:$0xff] %v423
                  %v425 = vld [vmem:[%s399 + $0x120] sm:$0xff]
                  %426 = vst [vmem:[%s400 + $0xc0] sm:$0xff] %v425
                  %v427 = vld [vmem:[%s399 + $0x138] sm:$0xff]
                  %428 = vst [vmem:[%s400 + $0xd0] sm:$0xff] %v427
                  %v429 = vld [vmem:[%s399 + $0x150] sm:$0xff]
                  %430 = vst [vmem:[%s400 + $0xe0] sm:$0xff] %v429
                  %v431 = vld [vmem:[%s399 + $0x168] sm:$0xff]
                  %432 = vst [vmem:[%s400 + $0xf0] sm:$0xff] %v431
                  %v433 = vld [vmem:[%s399 + $0x180] sm:$0xff]
                  %434 = vst [vmem:[%s400 + $0x100] sm:$0xff] %v433
                  %v435 = vld [vmem:[%s399 + $0x198] sm:$0xff]
                  %436 = vst [vmem:[%s400 + $0x110] sm:$0xff] %v435
                  %v437 = vld [vmem:[%s399 + $0x1b0] sm:$0xff]
                  %438 = vst [vmem:[%s400 + $0x120] sm:$0xff] %v437
                  %v439 = vld [vmem:[%s399 + $0x1c8] sm:$0xff]
                  %440 = vst [vmem:[%s400 + $0x130] sm:$0xff] %v439
                  %v441 = vld [vmem:[%s399 + $0x1e0] sm:$0xff]
                  %442 = vst [vmem:[%s400 + $0x140] sm:$0xff] %v441
                  %v443 = vld [vmem:[%s399 + $0x1f8] sm:$0xff]
                  %444 = vst [vmem:[%s400 + $0x150] sm:$0xff] %v443
                  %v445 = vld [vmem:[%s399 + $0x210] sm:$0xff]
                  %446 = vst [vmem:[%s400 + $0x160] sm:$0xff] %v445
                  %v447 = vld [vmem:[%s399 + $0x228] sm:$0xff]
                  %448 = vst [vmem:[%s400 + $0x170] sm:$0xff] %v447
                  %v449 = vld [vmem:[%s399 + $0x240] sm:$0xff]
                  %450 = vst [vmem:[%s400 + $0x180] sm:$0xff] %v449
                  %v451 = vld [vmem:[%s399 + $0x258] sm:$0xff]
                  %452 = vst [vmem:[%s400 + $0x190] sm:$0xff] %v451
                  %v453 = vld [vmem:[%s399 + $0x270] sm:$0xff]
                  %454 = vst [vmem:[%s400 + $0x1a0] sm:$0xff] %v453
                  %v455 = vld [vmem:[%s399 + $0x288] sm:$0xff]
                  %456 = vst [vmem:[%s400 + $0x1b0] sm:$0xff] %v455
                  %v457 = vld [vmem:[%s399 + $0x2a0] sm:$0xff]
                  %458 = vst [vmem:[%s400 + $0x1c0] sm:$0xff] %v457
                  %v459 = vld [vmem:[%s399 + $0x2b8] sm:$0xff]
                  %460 = vst [vmem:[%s400 + $0x1d0] sm:$0xff] %v459
                  %v461 = vld [vmem:[%s399 + $0x2d0] sm:$0xff]
                  %462 = vst [vmem:[%s400 + $0x1e0] sm:$0xff] %v461
                  %v463 = vld [vmem:[%s399 + $0x2e8] sm:$0xff]
                  %464 = vst [vmem:[%s400 + $0x1f0] sm:$0xff] %v463
                  %s465 = sadd.s32 1, %s398
                  %p466 = scmp.ge.s32.totalorder %s465, %s382
                  %s467 = scalar_select %p466, 0, %s465
                  %s468 = smul.u32 %s467, 8
                  %s469 = smul.u32 %s467, 8
                  %s470 = scalar_lea.vmem %s386, %s468
                  %s471 = scalar_lea.vmem %s389, %s469 [#allocation2]
                $region63: #{scan_linear.1} parent=50 // loop_footer
                  %s395 = sadd.s32 %s393, 1
                $region64: #{scan_linear.1} parent=50 // loop_footer_branch
                  %392 = sbr.rel target = $region60
                $region65: #{scan_linear.1} parent=50 // loop_exit
                  _
              $region51: #{scan_linear.1} parent=35 // pred_fallthru
                _
              %p472 = pneg %p229
              // Predicated region
              $region66: #{scan_linear.1} parent=35 // pred_check
                _
              $region67: #{scan_linear.1} parent=35 // pred_check_branch
                %474 = sbr.rel (%p229) target = $region69
              $region68: #{scan_linear.1} parent=35 // pred_region
                %s475 = sand.u32 %s143, 7
                %s476 = ssub.s32 %s143, %s475
                %s477 = scalar_lea.vmem %s142, %s476
                %s478 = ssub.s32 %s143, %s475
                %s479 = scalar_lea.vmem %s134, %s478 [#allocation2]
                %s480 = sshrl.u32 %s143, 3
                %s481 = sshrl.u32 %s480, 1
                // While loop
                $region70: #{scan_linear.1} parent=68 // loop_pre_header
                  _
                $region71: #{scan_linear.1} parent=68 // loop_header
                  %s485 = sphi 0, %s487
                  %p486 = scmp.ge.s32.totalorder %s485, %s481
                  %s490 = sphi 0, %s623
                  %s491 = sphi %s142, %s626
                  %s492 = sphi %s134, %s627
                $region72: #{scan_linear.1} parent=68 // loop_header_branch
                  %489 = sbr.rel (%p486) target = $region76
                $region73: #{scan_linear.1} parent=68 // loop_body
                  %v493 = vld [vmem:[%s491] sm:$0xff]
                  %494 = vst [vmem:[%s492] sm:$0xff] %v493
                  %v495 = vld [vmem:[%s491 + $0x8] sm:$0xff]
                  %496 = vst [vmem:[%s492 + $0x8] sm:$0xff] %v495
                  %v497 = vld [vmem:[%s491 + $0x18] sm:$0xff]
                  %498 = vst [vmem:[%s492 + $0x10] sm:$0xff] %v497
                  %v499 = vld [vmem:[%s491 + $0x20] sm:$0xff]
                  %500 = vst [vmem:[%s492 + $0x18] sm:$0xff] %v499
                  %v501 = vld [vmem:[%s491 + $0x30] sm:$0xff]
                  %502 = vst [vmem:[%s492 + $0x20] sm:$0xff] %v501
                  %v503 = vld [vmem:[%s491 + $0x38] sm:$0xff]
                  %504 = vst [vmem:[%s492 + $0x28] sm:$0xff] %v503
                  %v505 = vld [vmem:[%s491 + $0x48] sm:$0xff]
                  %506 = vst [vmem:[%s492 + $0x30] sm:$0xff] %v505
                  %v507 = vld [vmem:[%s491 + $0x50] sm:$0xff]
                  %508 = vst [vmem:[%s492 + $0x38] sm:$0xff] %v507
                  %v509 = vld [vmem:[%s491 + $0x60] sm:$0xff]
                  %510 = vst [vmem:[%s492 + $0x40] sm:$0xff] %v509
                  %v511 = vld [vmem:[%s491 + $0x68] sm:$0xff]
                  %512 = vst [vmem:[%s492 + $0x48] sm:$0xff] %v511
                  %v513 = vld [vmem:[%s491 + $0x78] sm:$0xff]
                  %514 = vst [vmem:[%s492 + $0x50] sm:$0xff] %v513
                  %v515 = vld [vmem:[%s491 + $0x80] sm:$0xff]
                  %516 = vst [vmem:[%s492 + $0x58] sm:$0xff] %v515
                  %v517 = vld [vmem:[%s491 + $0x90] sm:$0xff]
                  %518 = vst [vmem:[%s492 + $0x60] sm:$0xff] %v517
                  %v519 = vld [vmem:[%s491 + $0x98] sm:$0xff]
                  %520 = vst [vmem:[%s492 + $0x68] sm:$0xff] %v519
                  %v521 = vld [vmem:[%s491 + $0xa8] sm:$0xff]
                  %522 = vst [vmem:[%s492 + $0x70] sm:$0xff] %v521
                  %v523 = vld [vmem:[%s491 + $0xb0] sm:$0xff]
                  %524 = vst [vmem:[%s492 + $0x78] sm:$0xff] %v523
                  %v525 = vld [vmem:[%s491 + $0xc0] sm:$0xff]
                  %526 = vst [vmem:[%s492 + $0x80] sm:$0xff] %v525
                  %v527 = vld [vmem:[%s491 + $0xc8] sm:$0xff]
                  %528 = vst [vmem:[%s492 + $0x88] sm:$0xff] %v527
                  %v529 = vld [vmem:[%s491 + $0xd8] sm:$0xff]
                  %530 = vst [vmem:[%s492 + $0x90] sm:$0xff] %v529
                  %v531 = vld [vmem:[%s491 + $0xe0] sm:$0xff]
                  %532 = vst [vmem:[%s492 + $0x98] sm:$0xff] %v531
                  %v533 = vld [vmem:[%s491 + $0xf0] sm:$0xff]
                  %534 = vst [vmem:[%s492 + $0xa0] sm:$0xff] %v533
                  %v535 = vld [vmem:[%s491 + $0xf8] sm:$0xff]
                  %536 = vst [vmem:[%s492 + $0xa8] sm:$0xff] %v535
                  %v537 = vld [vmem:[%s491 + $0x108] sm:$0xff]
                  %538 = vst [vmem:[%s492 + $0xb0] sm:$0xff] %v537
                  %v539 = vld [vmem:[%s491 + $0x110] sm:$0xff]
                  %540 = vst [vmem:[%s492 + $0xb8] sm:$0xff] %v539
                  %v541 = vld [vmem:[%s491 + $0x120] sm:$0xff]
                  %542 = vst [vmem:[%s492 + $0xc0] sm:$0xff] %v541
                  %v543 = vld [vmem:[%s491 + $0x128] sm:$0xff]
                  %544 = vst [vmem:[%s492 + $0xc8] sm:$0xff] %v543
                  %v545 = vld [vmem:[%s491 + $0x138] sm:$0xff]
                  %546 = vst [vmem:[%s492 + $0xd0] sm:$0xff] %v545
                  %v547 = vld [vmem:[%s491 + $0x140] sm:$0xff]
                  %548 = vst [vmem:[%s492 + $0xd8] sm:$0xff] %v547
                  %v549 = vld [vmem:[%s491 + $0x150] sm:$0xff]
                  %550 = vst [vmem:[%s492 + $0xe0] sm:$0xff] %v549
                  %v551 = vld [vmem:[%s491 + $0x158] sm:$0xff]
                  %552 = vst [vmem:[%s492 + $0xe8] sm:$0xff] %v551
                  %v553 = vld [vmem:[%s491 + $0x168] sm:$0xff]
                  %554 = vst [vmem:[%s492 + $0xf0] sm:$0xff] %v553
                  %v555 = vld [vmem:[%s491 + $0x170] sm:$0xff]
                  %556 = vst [vmem:[%s492 + $0xf8] sm:$0xff] %v555
                  %v557 = vld [vmem:[%s491 + $0x180] sm:$0xff]
                  %558 = vst [vmem:[%s492 + $0x100] sm:$0xff] %v557
                  %v559 = vld [vmem:[%s491 + $0x188] sm:$0xff]
                  %560 = vst [vmem:[%s492 + $0x108] sm:$0xff] %v559
                  %v561 = vld [vmem:[%s491 + $0x198] sm:$0xff]
                  %562 = vst [vmem:[%s492 + $0x110] sm:$0xff] %v561
                  %v563 = vld [vmem:[%s491 + $0x1a0] sm:$0xff]
                  %564 = vst [vmem:[%s492 + $0x118] sm:$0xff] %v563
                  %v565 = vld [vmem:[%s491 + $0x1b0] sm:$0xff]
                  %566 = vst [vmem:[%s492 + $0x120] sm:$0xff] %v565
                  %v567 = vld [vmem:[%s491 + $0x1b8] sm:$0xff]
                  %568 = vst [vmem:[%s492 + $0x128] sm:$0xff] %v567
                  %v569 = vld [vmem:[%s491 + $0x1c8] sm:$0xff]
                  %570 = vst [vmem:[%s492 + $0x130] sm:$0xff] %v569
                  %v571 = vld [vmem:[%s491 + $0x1d0] sm:$0xff]
                  %572 = vst [vmem:[%s492 + $0x138] sm:$0xff] %v571
                  %v573 = vld [vmem:[%s491 + $0x1e0] sm:$0xff]
                  %574 = vst [vmem:[%s492 + $0x140] sm:$0xff] %v573
                  %v575 = vld [vmem:[%s491 + $0x1e8] sm:$0xff]
                  %576 = vst [vmem:[%s492 + $0x148] sm:$0xff] %v575
                  %v577 = vld [vmem:[%s491 + $0x1f8] sm:$0xff]
                  %578 = vst [vmem:[%s492 + $0x150] sm:$0xff] %v577
                  %v579 = vld [vmem:[%s491 + $0x200] sm:$0xff]
                  %580 = vst [vmem:[%s492 + $0x158] sm:$0xff] %v579
                  %v581 = vld [vmem:[%s491 + $0x210] sm:$0xff]
                  %582 = vst [vmem:[%s492 + $0x160] sm:$0xff] %v581
                  %v583 = vld [vmem:[%s491 + $0x218] sm:$0xff]
                  %584 = vst [vmem:[%s492 + $0x168] sm:$0xff] %v583
                  %v585 = vld [vmem:[%s491 + $0x228] sm:$0xff]
                  %586 = vst [vmem:[%s492 + $0x170] sm:$0xff] %v585
                  %v587 = vld [vmem:[%s491 + $0x230] sm:$0xff]
                  %588 = vst [vmem:[%s492 + $0x178] sm:$0xff] %v587
                  %v589 = vld [vmem:[%s491 + $0x240] sm:$0xff]
                  %590 = vst [vmem:[%s492 + $0x180] sm:$0xff] %v589
                  %v591 = vld [vmem:[%s491 + $0x248] sm:$0xff]
                  %592 = vst [vmem:[%s492 + $0x188] sm:$0xff] %v591
                  %v593 = vld [vmem:[%s491 + $0x258] sm:$0xff]
                  %594 = vst [vmem:[%s492 + $0x190] sm:$0xff] %v593
                  %v595 = vld [vmem:[%s491 + $0x260] sm:$0xff]
                  %596 = vst [vmem:[%s492 + $0x198] sm:$0xff] %v595
                  %v597 = vld [vmem:[%s491 + $0x270] sm:$0xff]
                  %598 = vst [vmem:[%s492 + $0x1a0] sm:$0xff] %v597
                  %v599 = vld [vmem:[%s491 + $0x278] sm:$0xff]
                  %600 = vst [vmem:[%s492 + $0x1a8] sm:$0xff] %v599
                  %v601 = vld [vmem:[%s491 + $0x288] sm:$0xff]
                  %602 = vst [vmem:[%s492 + $0x1b0] sm:$0xff] %v601
                  %v603 = vld [vmem:[%s491 + $0x290] sm:$0xff]
                  %604 = vst [vmem:[%s492 + $0x1b8] sm:$0xff] %v603
                  %v605 = vld [vmem:[%s491 + $0x2a0] sm:$0xff]
                  %606 = vst [vmem:[%s492 + $0x1c0] sm:$0xff] %v605
                  %v607 = vld [vmem:[%s491 + $0x2a8] sm:$0xff]
                  %608 = vst [vmem:[%s492 + $0x1c8] sm:$0xff] %v607
                  %v609 = vld [vmem:[%s491 + $0x2b8] sm:$0xff]
                  %610 = vst [vmem:[%s492 + $0x1d0] sm:$0xff] %v609
                  %v611 = vld [vmem:[%s491 + $0x2c0] sm:$0xff]
                  %612 = vst [vmem:[%s492 + $0x1d8] sm:$0xff] %v611
                  %v613 = vld [vmem:[%s491 + $0x2d0] sm:$0xff]
                  %614 = vst [vmem:[%s492 + $0x1e0] sm:$0xff] %v613
                  %v615 = vld [vmem:[%s491 + $0x2d8] sm:$0xff]
                  %616 = vst [vmem:[%s492 + $0x1e8] sm:$0xff] %v615
                  %v617 = vld [vmem:[%s491 + $0x2e8] sm:$0xff]
                  %618 = vst [vmem:[%s492 + $0x1f0] sm:$0xff] %v617
                  %v619 = vld [vmem:[%s491 + $0x2f0] sm:$0xff]
                  %620 = vst [vmem:[%s492 + $0x1f8] sm:$0xff] %v619
                  %s621 = sadd.s32 1, %s490
                  %p622 = scmp.ge.s32.totalorder %s621, %s481
                  %s623 = scalar_select %p622, 0, %s621
                  %s624 = smul.u32 %s623, 16
                  %s625 = smul.u32 %s623, 16
                  %s626 = scalar_lea.vmem %s142, %s624
                  %s627 = scalar_lea.vmem %s134, %s625 [#allocation2]
                $region74: #{scan_linear.1} parent=68 // loop_footer
                  %s487 = sadd.s32 %s485, 1
                $region75: #{scan_linear.1} parent=68 // loop_footer_branch
                  %484 = sbr.rel target = $region71
                $region76: #{scan_linear.1} parent=68 // loop_exit
                  _
                %s628 = sshrl.u32 %s480, 1
                %s629 = sand.u32 %s480, 1
                %s630 = smul.u32 %s628, 2
                %s631 = smul.u32 128, %s630
                %s632 = sshra.s32 %s631, 4
                %s633 = scalar_lea.vmem %s142, %s632
                %s634 = smul.u32 128, %s630
                %s635 = sshra.s32 %s634, 4
                %s636 = scalar_lea.vmem %s134, %s635 [#allocation2]
                // While loop
                $region77: #{scan_linear.1} parent=68 // loop_pre_header
                  _
                $region78: #{scan_linear.1} parent=68 // loop_header
                  %s640 = sphi 0, %s642
                  %p641 = scmp.ge.s32.totalorder %s640, %s629
                  %s645 = sphi 0, %s714
                  %s646 = sphi %s633, %s717
                  %s647 = sphi %s636, %s718
                $region79: #{scan_linear.1} parent=68 // loop_header_branch
                  %644 = sbr.rel (%p641) target = $region83
                $region80: #{scan_linear.1} parent=68 // loop_body
                  %v648 = vld [vmem:[%s646] sm:$0xff]
                  %649 = vst [vmem:[%s647] sm:$0xff] %v648
                  %v650 = vld [vmem:[%s646 + $0x18] sm:$0xff]
                  %651 = vst [vmem:[%s647 + $0x10] sm:$0xff] %v650
                  %v652 = vld [vmem:[%s646 + $0x30] sm:$0xff]
                  %653 = vst [vmem:[%s647 + $0x20] sm:$0xff] %v652
                  %v654 = vld [vmem:[%s646 + $0x48] sm:$0xff]
                  %655 = vst [vmem:[%s647 + $0x30] sm:$0xff] %v654
                  %v656 = vld [vmem:[%s646 + $0x60] sm:$0xff]
                  %657 = vst [vmem:[%s647 + $0x40] sm:$0xff] %v656
                  %v658 = vld [vmem:[%s646 + $0x78] sm:$0xff]
                  %659 = vst [vmem:[%s647 + $0x50] sm:$0xff] %v658
                  %v660 = vld [vmem:[%s646 + $0x90] sm:$0xff]
                  %661 = vst [vmem:[%s647 + $0x60] sm:$0xff] %v660
                  %v662 = vld [vmem:[%s646 + $0xa8] sm:$0xff]
                  %663 = vst [vmem:[%s647 + $0x70] sm:$0xff] %v662
                  %v664 = vld [vmem:[%s646 + $0xc0] sm:$0xff]
                  %665 = vst [vmem:[%s647 + $0x80] sm:$0xff] %v664
                  %v666 = vld [vmem:[%s646 + $0xd8] sm:$0xff]
                  %667 = vst [vmem:[%s647 + $0x90] sm:$0xff] %v666
                  %v668 = vld [vmem:[%s646 + $0xf0] sm:$0xff]
                  %669 = vst [vmem:[%s647 + $0xa0] sm:$0xff] %v668
                  %v670 = vld [vmem:[%s646 + $0x108] sm:$0xff]
                  %671 = vst [vmem:[%s647 + $0xb0] sm:$0xff] %v670
                  %v672 = vld [vmem:[%s646 + $0x120] sm:$0xff]
                  %673 = vst [vmem:[%s647 + $0xc0] sm:$0xff] %v672
                  %v674 = vld [vmem:[%s646 + $0x138] sm:$0xff]
                  %675 = vst [vmem:[%s647 + $0xd0] sm:$0xff] %v674
                  %v676 = vld [vmem:[%s646 + $0x150] sm:$0xff]
                  %677 = vst [vmem:[%s647 + $0xe0] sm:$0xff] %v676
                  %v678 = vld [vmem:[%s646 + $0x168] sm:$0xff]
                  %679 = vst [vmem:[%s647 + $0xf0] sm:$0xff] %v678
                  %v680 = vld [vmem:[%s646 + $0x180] sm:$0xff]
                  %681 = vst [vmem:[%s647 + $0x100] sm:$0xff] %v680
                  %v682 = vld [vmem:[%s646 + $0x198] sm:$0xff]
                  %683 = vst [vmem:[%s647 + $0x110] sm:$0xff] %v682
                  %v684 = vld [vmem:[%s646 + $0x1b0] sm:$0xff]
                  %685 = vst [vmem:[%s647 + $0x120] sm:$0xff] %v684
                  %v686 = vld [vmem:[%s646 + $0x1c8] sm:$0xff]
                  %687 = vst [vmem:[%s647 + $0x130] sm:$0xff] %v686
                  %v688 = vld [vmem:[%s646 + $0x1e0] sm:$0xff]
                  %689 = vst [vmem:[%s647 + $0x140] sm:$0xff] %v688
                  %v690 = vld [vmem:[%s646 + $0x1f8] sm:$0xff]
                  %691 = vst [vmem:[%s647 + $0x150] sm:$0xff] %v690
                  %v692 = vld [vmem:[%s646 + $0x210] sm:$0xff]
                  %693 = vst [vmem:[%s647 + $0x160] sm:$0xff] %v692
                  %v694 = vld [vmem:[%s646 + $0x228] sm:$0xff]
                  %695 = vst [vmem:[%s647 + $0x170] sm:$0xff] %v694
                  %v696 = vld [vmem:[%s646 + $0x240] sm:$0xff]
                  %697 = vst [vmem:[%s647 + $0x180] sm:$0xff] %v696
                  %v698 = vld [vmem:[%s646 + $0x258] sm:$0xff]
                  %699 = vst [vmem:[%s647 + $0x190] sm:$0xff] %v698
                  %v700 = vld [vmem:[%s646 + $0x270] sm:$0xff]
                  %701 = vst [vmem:[%s647 + $0x1a0] sm:$0xff] %v700
                  %v702 = vld [vmem:[%s646 + $0x288] sm:$0xff]
                  %703 = vst [vmem:[%s647 + $0x1b0] sm:$0xff] %v702
                  %v704 = vld [vmem:[%s646 + $0x2a0] sm:$0xff]
                  %705 = vst [vmem:[%s647 + $0x1c0] sm:$0xff] %v704
                  %v706 = vld [vmem:[%s646 + $0x2b8] sm:$0xff]
                  %707 = vst [vmem:[%s647 + $0x1d0] sm:$0xff] %v706
                  %v708 = vld [vmem:[%s646 + $0x2d0] sm:$0xff]
                  %709 = vst [vmem:[%s647 + $0x1e0] sm:$0xff] %v708
                  %v710 = vld [vmem:[%s646 + $0x2e8] sm:$0xff]
                  %711 = vst [vmem:[%s647 + $0x1f0] sm:$0xff] %v710
                  %s712 = sadd.s32 1, %s645
                  %p713 = scmp.ge.s32.totalorder %s712, %s629
                  %s714 = scalar_select %p713, 0, %s712
                  %s715 = smul.u32 %s714, 8
                  %s716 = smul.u32 %s714, 8
                  %s717 = scalar_lea.vmem %s633, %s715
                  %s718 = scalar_lea.vmem %s636, %s716 [#allocation2]
                $region81: #{scan_linear.1} parent=68 // loop_footer
                  %s642 = sadd.s32 %s640, 1
                $region82: #{scan_linear.1} parent=68 // loop_footer_branch
                  %639 = sbr.rel target = $region78
                $region83: #{scan_linear.1} parent=68 // loop_exit
                  _
                %s719 = sshll.u32 1, %s475
                %s720 = ssub.s32 %s719, 1
                loop: start=0, step=1, limit=1
                $region84: #{scan_linear.1} parent=68 // loop_pre_header
                  _
                $region85: #{scan_linear.1} parent=68 // loop_header
                  %s722 = sphi 0, %s726
                  %p723 = scmp.ge.s32.totalorder %s722, 1
                  %s727 = sphi %s477, %s477
                  %s728 = sphi %s479, %s479
                $region86: #{scan_linear.1} parent=68 // loop_header_branch
                  %725 = sbr.rel (%p723) target = $region90
                $region87: #{scan_linear.1} parent=68 // loop_body
                  %v729 = vld [vmem:[%s727] sm:%s720]
                  %730 = vst [vmem:[%s728] sm:%s720] %v729
                  %v731 = vld [vmem:[%s727 + $0x18] sm:%s720]
                  %732 = vst [vmem:[%s728 + $0x10] sm:%s720] %v731
                  %v733 = vld [vmem:[%s727 + $0x30] sm:%s720]
                  %734 = vst [vmem:[%s728 + $0x20] sm:%s720] %v733
                  %v735 = vld [vmem:[%s727 + $0x48] sm:%s720]
                  %736 = vst [vmem:[%s728 + $0x30] sm:%s720] %v735
                  %v737 = vld [vmem:[%s727 + $0x60] sm:%s720]
                  %738 = vst [vmem:[%s728 + $0x40] sm:%s720] %v737
                  %v739 = vld [vmem:[%s727 + $0x78] sm:%s720]
                  %740 = vst [vmem:[%s728 + $0x50] sm:%s720] %v739
                  %v741 = vld [vmem:[%s727 + $0x90] sm:%s720]
                  %742 = vst [vmem:[%s728 + $0x60] sm:%s720] %v741
                  %v743 = vld [vmem:[%s727 + $0xa8] sm:%s720]
                  %744 = vst [vmem:[%s728 + $0x70] sm:%s720] %v743
                  %v745 = vld [vmem:[%s727 + $0xc0] sm:%s720]
                  %746 = vst [vmem:[%s728 + $0x80] sm:%s720] %v745
                  %v747 = vld [vmem:[%s727 + $0xd8] sm:%s720]
                  %748 = vst [vmem:[%s728 + $0x90] sm:%s720] %v747
                  %v749 = vld [vmem:[%s727 + $0xf0] sm:%s720]
                  %750 = vst [vmem:[%s728 + $0xa0] sm:%s720] %v749
                  %v751 = vld [vmem:[%s727 + $0x108] sm:%s720]
                  %752 = vst [vmem:[%s728 + $0xb0] sm:%s720] %v751
                  %v753 = vld [vmem:[%s727 + $0x120] sm:%s720]
                  %754 = vst [vmem:[%s728 + $0xc0] sm:%s720] %v753
                  %v755 = vld [vmem:[%s727 + $0x138] sm:%s720]
                  %756 = vst [vmem:[%s728 + $0xd0] sm:%s720] %v755
                  %v757 = vld [vmem:[%s727 + $0x150] sm:%s720]
                  %758 = vst [vmem:[%s728 + $0xe0] sm:%s720] %v757
                  %v759 = vld [vmem:[%s727 + $0x168] sm:%s720]
                  %760 = vst [vmem:[%s728 + $0xf0] sm:%s720] %v759
                  %v761 = vld [vmem:[%s727 + $0x180] sm:%s720]
                  %762 = vst [vmem:[%s728 + $0x100] sm:%s720] %v761
                  %v763 = vld [vmem:[%s727 + $0x198] sm:%s720]
                  %764 = vst [vmem:[%s728 + $0x110] sm:%s720] %v763
                  %v765 = vld [vmem:[%s727 + $0x1b0] sm:%s720]
                  %766 = vst [vmem:[%s728 + $0x120] sm:%s720] %v765
                  %v767 = vld [vmem:[%s727 + $0x1c8] sm:%s720]
                  %768 = vst [vmem:[%s728 + $0x130] sm:%s720] %v767
                  %v769 = vld [vmem:[%s727 + $0x1e0] sm:%s720]
                  %770 = vst [vmem:[%s728 + $0x140] sm:%s720] %v769
                  %v771 = vld [vmem:[%s727 + $0x1f8] sm:%s720]
                  %772 = vst [vmem:[%s728 + $0x150] sm:%s720] %v771
                  %v773 = vld [vmem:[%s727 + $0x210] sm:%s720]
                  %774 = vst [vmem:[%s728 + $0x160] sm:%s720] %v773
                  %v775 = vld [vmem:[%s727 + $0x228] sm:%s720]
                  %776 = vst [vmem:[%s728 + $0x170] sm:%s720] %v775
                  %v777 = vld [vmem:[%s727 + $0x240] sm:%s720]
                  %778 = vst [vmem:[%s728 + $0x180] sm:%s720] %v777
                  %v779 = vld [vmem:[%s727 + $0x258] sm:%s720]
                  %780 = vst [vmem:[%s728 + $0x190] sm:%s720] %v779
                  %v781 = vld [vmem:[%s727 + $0x270] sm:%s720]
                  %782 = vst [vmem:[%s728 + $0x1a0] sm:%s720] %v781
                  %v783 = vld [vmem:[%s727 + $0x288] sm:%s720]
                  %784 = vst [vmem:[%s728 + $0x1b0] sm:%s720] %v783
                  %v785 = vld [vmem:[%s727 + $0x2a0] sm:%s720]
                  %786 = vst [vmem:[%s728 + $0x1c0] sm:%s720] %v785
                  %v787 = vld [vmem:[%s727 + $0x2b8] sm:%s720]
                  %788 = vst [vmem:[%s728 + $0x1d0] sm:%s720] %v787
                  %v789 = vld [vmem:[%s727 + $0x2d0] sm:%s720]
                  %790 = vst [vmem:[%s728 + $0x1e0] sm:%s720] %v789
                  %v791 = vld [vmem:[%s727 + $0x2e8] sm:%s720]
                  %792 = vst [vmem:[%s728 + $0x1f0] sm:%s720] %v791
                $region88: #{scan_linear.1} parent=68 // loop_footer
                  %s726 = sadd.s32 1, %s722
                $region89: #{scan_linear.1} parent=68 // loop_footer_branch
                  %721 = sbr.rel target = $region85
                $region90: #{scan_linear.1} parent=68 // loop_exit
                  _
              $region69: #{scan_linear.1} parent=35 // pred_fallthru
                _
            $region36: #{scan_linear.1} parent=31 // pred_fallthru
              _
            // Predicated region
            $region37: #{scan_linear.1} parent=31 // pred_check
              %p151 = pneg %p147
            $region38: #{scan_linear.1} parent=31 // pred_check_branch
              %153 = sbr.rel (%p151) target = $region40
            $region39: #{scan_linear.1} parent=31 // pred_region
              %s154 = sshll.u32 1, %s143
              %s155 = ssub.s32 %s154, 1
              loop: start=0, step=1, limit=1
              $region41: #{scan_linear.1} parent=39 // loop_pre_header
                _
              $region42: #{scan_linear.1} parent=39 // loop_header
                %s157 = sphi 0, %s161
                %p158 = scmp.ge.s32.totalorder %s157, 1
                %s162 = sphi %s142, %s142
                %s163 = sphi %s134, %s134
              $region43: #{scan_linear.1} parent=39 // loop_header_branch
                %160 = sbr.rel (%p158) target = $region47
              $region44: #{scan_linear.1} parent=39 // loop_body
                %v164 = vld [vmem:[%s162] sm:%s155]
                %165 = vst [vmem:[%s163] sm:%s155] %v164
                %v166 = vld [vmem:[%s162 + $0x18] sm:%s155]
                %167 = vst [vmem:[%s163 + $0x10] sm:%s155] %v166
                %v168 = vld [vmem:[%s162 + $0x30] sm:%s155]
                %169 = vst [vmem:[%s163 + $0x20] sm:%s155] %v168
                %v170 = vld [vmem:[%s162 + $0x48] sm:%s155]
                %171 = vst [vmem:[%s163 + $0x30] sm:%s155] %v170
                %v172 = vld [vmem:[%s162 + $0x60] sm:%s155]
                %173 = vst [vmem:[%s163 + $0x40] sm:%s155] %v172
                %v174 = vld [vmem:[%s162 + $0x78] sm:%s155]
                %175 = vst [vmem:[%s163 + $0x50] sm:%s155] %v174
                %v176 = vld [vmem:[%s162 + $0x90] sm:%s155]
                %177 = vst [vmem:[%s163 + $0x60] sm:%s155] %v176
                %v178 = vld [vmem:[%s162 + $0xa8] sm:%s155]
                %179 = vst [vmem:[%s163 + $0x70] sm:%s155] %v178
                %v180 = vld [vmem:[%s162 + $0xc0] sm:%s155]
                %181 = vst [vmem:[%s163 + $0x80] sm:%s155] %v180
                %v182 = vld [vmem:[%s162 + $0xd8] sm:%s155]
                %183 = vst [vmem:[%s163 + $0x90] sm:%s155] %v182
                %v184 = vld [vmem:[%s162 + $0xf0] sm:%s155]
                %185 = vst [vmem:[%s163 + $0xa0] sm:%s155] %v184
                %v186 = vld [vmem:[%s162 + $0x108] sm:%s155]
                %187 = vst [vmem:[%s163 + $0xb0] sm:%s155] %v186
                %v188 = vld [vmem:[%s162 + $0x120] sm:%s155]
                %189 = vst [vmem:[%s163 + $0xc0] sm:%s155] %v188
                %v190 = vld [vmem:[%s162 + $0x138] sm:%s155]
                %191 = vst [vmem:[%s163 + $0xd0] sm:%s155] %v190
                %v192 = vld [vmem:[%s162 + $0x150] sm:%s155]
                %193 = vst [vmem:[%s163 + $0xe0] sm:%s155] %v192
                %v194 = vld [vmem:[%s162 + $0x168] sm:%s155]
                %195 = vst [vmem:[%s163 + $0xf0] sm:%s155] %v194
                %v196 = vld [vmem:[%s162 + $0x180] sm:%s155]
                %197 = vst [vmem:[%s163 + $0x100] sm:%s155] %v196
                %v198 = vld [vmem:[%s162 + $0x198] sm:%s155]
                %199 = vst [vmem:[%s163 + $0x110] sm:%s155] %v198
                %v200 = vld [vmem:[%s162 + $0x1b0] sm:%s155]
                %201 = vst [vmem:[%s163 + $0x120] sm:%s155] %v200
                %v202 = vld [vmem:[%s162 + $0x1c8] sm:%s155]
                %203 = vst [vmem:[%s163 + $0x130] sm:%s155] %v202
                %v204 = vld [vmem:[%s162 + $0x1e0] sm:%s155]
                %205 = vst [vmem:[%s163 + $0x140] sm:%s155] %v204
                %v206 = vld [vmem:[%s162 + $0x1f8] sm:%s155]
                %207 = vst [vmem:[%s163 + $0x150] sm:%s155] %v206
                %v208 = vld [vmem:[%s162 + $0x210] sm:%s155]
                %209 = vst [vmem:[%s163 + $0x160] sm:%s155] %v208
                %v210 = vld [vmem:[%s162 + $0x228] sm:%s155]
                %211 = vst [vmem:[%s163 + $0x170] sm:%s155] %v210
                %v212 = vld [vmem:[%s162 + $0x240] sm:%s155]
                %213 = vst [vmem:[%s163 + $0x180] sm:%s155] %v212
                %v214 = vld [vmem:[%s162 + $0x258] sm:%s155]
                %215 = vst [vmem:[%s163 + $0x190] sm:%s155] %v214
                %v216 = vld [vmem:[%s162 + $0x270] sm:%s155]
                %217 = vst [vmem:[%s163 + $0x1a0] sm:%s155] %v216
                %v218 = vld [vmem:[%s162 + $0x288] sm:%s155]
                %219 = vst [vmem:[%s163 + $0x1b0] sm:%s155] %v218
                %v220 = vld [vmem:[%s162 + $0x2a0] sm:%s155]
                %221 = vst [vmem:[%s163 + $0x1c0] sm:%s155] %v220
                %v222 = vld [vmem:[%s162 + $0x2b8] sm:%s155]
                %223 = vst [vmem:[%s163 + $0x1d0] sm:%s155] %v222
                %v224 = vld [vmem:[%s162 + $0x2d0] sm:%s155]
                %225 = vst [vmem:[%s163 + $0x1e0] sm:%s155] %v224
                %v226 = vld [vmem:[%s162 + $0x2e8] sm:%s155]
                %227 = vst [vmem:[%s163 + $0x1f0] sm:%s155] %v226
              $region45: #{scan_linear.1} parent=39 // loop_footer
                %s161 = sadd.s32 1, %s157
              $region46: #{scan_linear.1} parent=39 // loop_footer_branch
                %156 = sbr.rel target = $region42
              $region47: #{scan_linear.1} parent=39 // loop_exit
                _
            $region40: #{scan_linear.1} parent=31 // pred_fallthru
              _
          $region32: #{scan_linear.1} parent=27 // pred_fallthru
            _
          %793 = vnop
        $region28: #{scan_linear.1} parent=23 // pred_fallthru
          _
      $region24: #{scan_linear.1} parent=5 // pred_fallthru
        _
      %p794 = scmp.le.s32.totalorder 1, %s9
      %p795 = scmp.lt.s32.totalorder %s9, 3
      %p796 = pnand %p794, %p795
      %p797 = pneg %p796
      // Predicated region
      $region91: #{scan_linear.1} parent=5 // pred_check
        _
      $region92: #{scan_linear.1} parent=5 // pred_check_branch
        %799 = sbr.rel (%p796) target = $region94
      $region93: #{scan_linear.1} parent=5 // pred_region
        %s800 = ssub.s32 %s9, 1
        %s801 = sand.u32 %s22, 1
        %s802 = sand.u32 %s22, 1
        %s803 = smul.addr %s802, 512
        %s804 = scalar_lea.vmem [#allocation2], %s803
        // Predicated region
        $region95: #{scan_linear.1} parent=93 // pred_check
          %p805 = pneg %p35
        $region96: #{scan_linear.1} parent=93 // pred_check_branch
          %807 = sbr.rel (%p805) target = $region98
        $region97: #{scan_linear.1} parent=93 // pred_region
          _
        $region98: #{scan_linear.1} parent=93 // pred_fallthru
          _
        %s808 = sand.u32 %s22, 1
        %s809 = sand.u32 %s22, 1
        %s810 = smul.addr %s809, 512
        %s811 = scalar_lea.vmem [#allocation2], %s810
        %p812 = pneg %p35
        %p813 = pneg %p32
        %p814 = pneg %p56
        %p815 = pneg %p53
        %p816 = pneg %p77
        %p817 = pneg %p74
        %p818 = pneg %p103
        %p819 = pneg %p100
        %s820 = sand.u32 %s90, 1
        %s821 = sand.u32 %s90, 1
        %s822 = smul.addr %s821, 2048
        %s823 = scalar_lea.vmem [#allocation3], %s822
        %s824 = smul.u32 2, %s14
        %s825 = ssub.s32 3, %s824
        %p826 = scmp.lt.s32.totalorder %s825, 2
        %s827 = scalar_select %p826, %s825, 2
        %s828 = smul.u32 4096, %s827
        %s829 = smul.u32 2, %s14
        %s830 = ssub.s32 3, %s829
        %p831 = scmp.lt.s32.totalorder %s830, 2
        %s832 = scalar_select %p831, %s830, 2
        %s833 = smul.u32 16384, %s832
        %v834 = vld [vmem:[%s1] sm:$0xff]
        %v835 = vld [vmem:[%s1 + $0x8] sm:$0xff]
        %v836 = vld [vmem:[%s1 + $0x10] sm:$0xff]
        %v837 = vld [vmem:[%s1 + $0x18] sm:$0xff]
        %v838 = vld [vmem:[%s1 + $0x20] sm:$0xff]
        %v839 = vld [vmem:[%s1 + $0x28] sm:$0xff]
        %v840 = vld [vmem:[%s1 + $0x30] sm:$0xff]
        %v841 = vld [vmem:[%s1 + $0x38] sm:$0xff]
        %v842 = vld [vmem:[%s1 + $0x40] sm:$0xff]
        %v843 = vld [vmem:[%s1 + $0x48] sm:$0xff]
        %v844 = vld [vmem:[%s1 + $0x50] sm:$0xff]
        %v845 = vld [vmem:[%s1 + $0x58] sm:$0xff]
        %v846 = vld [vmem:[%s1 + $0x60] sm:$0xff]
        %v847 = vld [vmem:[%s1 + $0x68] sm:$0xff]
        %v848 = vld [vmem:[%s1 + $0x70] sm:$0xff]
        %v849 = vld [vmem:[%s1 + $0x78] sm:$0xff]
        %v850 = vld [vmem:[%s2] sm:$0xff]
        %v851 = vld [vmem:[%s2 + $0x8] sm:$0xff]
        %v852 = vld [vmem:[%s2 + $0x10] sm:$0xff]
        %v853 = vld [vmem:[%s2 + $0x18] sm:$0xff]
        %v854 = vld [vmem:[%s2 + $0x20] sm:$0xff]
        %v855 = vld [vmem:[%s2 + $0x28] sm:$0xff]
        %v856 = vld [vmem:[%s2 + $0x30] sm:$0xff]
        %v857 = vld [vmem:[%s2 + $0x38] sm:$0xff]
        %v858 = vld [vmem:[%s2 + $0x40] sm:$0xff]
        %v859 = vld [vmem:[%s2 + $0x48] sm:$0xff]
        %v860 = vld [vmem:[%s2 + $0x50] sm:$0xff]
        %v861 = vld [vmem:[%s2 + $0x58] sm:$0xff]
        %v862 = vld [vmem:[%s2 + $0x60] sm:$0xff]
        %v863 = vld [vmem:[%s2 + $0x68] sm:$0xff]
        %v864 = vld [vmem:[%s2 + $0x70] sm:$0xff]
        %v865 = vld [vmem:[%s2 + $0x78] sm:$0xff]
        %v866 = vld [vmem:[%s804] sm:$0xff]
        %v867 = vld [vmem:[%s804 + $0x8] sm:$0xff]
        %v868 = vld [vmem:[%s804 + $0x10] sm:$0xff]
        %v869 = vld [vmem:[%s804 + $0x18] sm:$0xff]
        %v870 = vld [vmem:[%s804 + $0x20] sm:$0xff]
        %v871 = vld [vmem:[%s804 + $0x28] sm:$0xff]
        %v872 = vld [vmem:[%s804 + $0x30] sm:$0xff]
        %v873 = vld [vmem:[%s804 + $0x38] sm:$0xff]
        %875 = vset.pattern.permute.xlu0 0
        %876 = vperm.xlu0 %875, %v850
        %v877 = vpop.permute.xlu0 %876
        %880 = vset.pattern.permute.xlu0 0
        %881 = vperm.xlu0 %880, %v851
        %v882 = vpop.permute.xlu0 %881
        %885 = vset.pattern.permute.xlu0 0
        %886 = vperm.xlu0 %885, %v852
        %v887 = vpop.permute.xlu0 %886
        %890 = vset.pattern.permute.xlu0 0
        %891 = vperm.xlu0 %890, %v853
        %v892 = vpop.permute.xlu0 %891
        %895 = vset.pattern.permute.xlu0 0
        %896 = vperm.xlu0 %895, %v854
        %v897 = vpop.permute.xlu0 %896
        %900 = vset.pattern.permute.xlu0 0
        %901 = vperm.xlu0 %900, %v855
        %v902 = vpop.permute.xlu0 %901
        %905 = vset.pattern.permute.xlu0 0
        %906 = vperm.xlu0 %905, %v856
        %v907 = vpop.permute.xlu0 %906
        %910 = vset.pattern.permute.xlu0 0
        %911 = vperm.xlu0 %910, %v857
        %v912 = vpop.permute.xlu0 %911
        %915 = vset.pattern.permute.xlu0 0
        %916 = vperm.xlu0 %915, %v858
        %v917 = vpop.permute.xlu0 %916
        %920 = vset.pattern.permute.xlu0 0
        %921 = vperm.xlu0 %920, %v859
        %v922 = vpop.permute.xlu0 %921
        %925 = vset.pattern.permute.xlu0 0
        %926 = vperm.xlu0 %925, %v860
        %v927 = vpop.permute.xlu0 %926
        %930 = vset.pattern.permute.xlu0 0
        %931 = vperm.xlu0 %930, %v861
        %v932 = vpop.permute.xlu0 %931
        %935 = vset.pattern.permute.xlu0 0
        %936 = vperm.xlu0 %935, %v862
        %v937 = vpop.permute.xlu0 %936
        %940 = vset.pattern.permute.xlu0 0
        %941 = vperm.xlu0 %940, %v863
        %v942 = vpop.permute.xlu0 %941
        %945 = vset.pattern.permute.xlu0 0
        %946 = vperm.xlu0 %945, %v864
        %v947 = vpop.permute.xlu0 %946
        %950 = vset.pattern.permute.xlu0 0
        %951 = vperm.xlu0 %950, %v865
        %v952 = vpop.permute.xlu0 %951
        %vm954 = vcmask 261120
        %v956 = vsel %vm954, %v834, 0
        %v959 = vsel %vm954, %v835, 0
        %v962 = vsel %vm954, %v836, 0
        %v965 = vsel %vm954, %v837, 0
        %v968 = vsel %vm954, %v838, 0
        %v971 = vsel %vm954, %v839, 0
        %v974 = vsel %vm954, %v840, 0
        %v977 = vsel %vm954, %v841, 0
        %v980 = vsel %vm954, %v842, 0
        %v983 = vsel %vm954, %v843, 0
        %v986 = vsel %vm954, %v844, 0
        %v989 = vsel %vm954, %v845, 0
        %v992 = vsel %vm954, %v846, 0
        %v995 = vsel %vm954, %v847, 0
        %v998 = vsel %vm954, %v848, 0
        %v1001 = vsel %vm954, %v849, 0
        %1003 = vmatprep.subr.mxu0 0.0
        %1004 = vmatpush1.msra.mxu0 0.0
        %1005 = vmatprep.subr.mxu0 0.0
        %1006 = vmatpush1.msra.mxu0 0.0
        %1007 = vmatprep.subr.mxu0 0.0
        %1008 = vmatpush1.msra.mxu0 0.0
        %1009 = vmatprep.subr.mxu0 0.0
        %1010 = vmatpush1.msra.mxu0 0.0
        %1011 = vmatprep.subr.mxu0 0.0
        %1012 = vmatpush1.msra.mxu0 0.0
        %1013 = vmatprep.subr.mxu0 0.0
        %1014 = vmatpush1.msra.mxu0 0.0
        %1015 = vmatprep.subr.mxu0 0.0
        %1016 = vmatpush1.msra.mxu0 0.0
        %1017 = vmatprep.subr.mxu0 0.0
        %1018 = vmatpush1.msra.mxu0 0.0
        %1019 = vmatprep.subr.mxu0 0.0
        %1020 = vmatpush1.msra.mxu0 0.0
        %1021 = vmatprep.subr.mxu0 0.0
        %1022 = vmatpush1.msra.mxu0 0.0
        %1023 = vmatprep.subr.mxu0 0.0
        %1024 = vmatpush1.msra.mxu0 0.0
        %1025 = vmatprep.subr.mxu0 0.0
        %1026 = vmatpush1.msra.mxu0 0.0
        %1027 = vmatprep.subr.mxu0 %v873
        %1028 = vmatpush1.msra.mxu0 %v872
        %1029 = vmatprep.subr.mxu0 %v871
        %1030 = vmatpush1.msra.mxu0 %v870
        %1031 = vmatprep.subr.mxu0 %v869
        %1032 = vmatpush1.msra.mxu0 %v868
        %1033 = vmatprep.subr.mxu0 %v867
        %1034 = vmatpush1.msra.mxu0 %v866
        %1035 = vmatprep.subr.mxu0 0.0
        %1036 = vmatpush2.msra.mxu0 0.0
        %1037 = vmatprep.subr.mxu0 0.0
        %1038 = vmatpush2.msra.mxu0 0.0
        %1039 = vmatprep.subr.mxu0 0.0
        %1040 = vmatpush2.msra.mxu0 0.0
        %1041 = vmatprep.subr.mxu0 0.0
        %1042 = vmatpush2.msra.mxu0 0.0
        %1043 = vmatprep.subr.mxu0 0.0
        %1044 = vmatpush2.msra.mxu0 0.0
        %1045 = vmatprep.subr.mxu0 0.0
        %1046 = vmatpush2.msra.mxu0 0.0
        %1047 = vmatprep.subr.mxu0 0.0
        %1048 = vmatpush2.msra.mxu0 0.0
        %1049 = vmatprep.subr.mxu0 0.0
        %1050 = vmatpush2.msra.mxu0 0.0
        %1051 = vmatprep.subr.mxu0 0.0
        %1052 = vmatpush2.msra.mxu0 0.0
        %1053 = vmatprep.subr.mxu0 0.0
        %1054 = vmatpush2.msra.mxu0 0.0
        %1055 = vmatprep.subr.mxu0 0.0
        %1056 = vmatpush2.msra.mxu0 0.0
        %1057 = vmatprep.subr.mxu0 0.0
        %1058 = vmatpush2.msra.mxu0 0.0
        %1059 = vmatprep.subr.mxu0 0.0
        %1060 = vmatpush2.msra.mxu0 0.0
        %1061 = vmatprep.subr.mxu0 0.0
        %1062 = vmatpush2.msra.mxu0 0.0
        %1063 = vmatprep.subr.mxu0 0.0
        %1064 = vmatpush2.msra.mxu0 0.0
        %1065 = vmatprep.subr.mxu0 0.0
        %1066 = vmatpush2.msra.mxu0 0.0
        %1067 = vmatprep.mubr.f32.mxu0 0.0
        %1068 = vmatmul.mubr.f32.gmra.mxu0 %v956
        %v1069 = vpop.f32.mrf.mxu0
        %v1070 = vadd.f32 %v877, %v1069
        %v1071 = vpop.f32.mrf.mxu0
        %v1072 = vadd.f32 %v877, %v1071
        %1073 = vmatprep.mubr.f32.mxu0 0.0
        %1074 = vmatmul.mubr.f32.gmra.mxu0 %v959
        %v1075 = vpop.f32.mrf.mxu0
        %v1076 = vadd.f32 %v882, %v1075
        %v1077 = vpop.f32.mrf.mxu0
        %v1078 = vadd.f32 %v882, %v1077
        %1079 = vmatprep.mubr.f32.mxu0 0.0
        %1080 = vmatmul.mubr.f32.gmra.mxu0 %v962
        %v1081 = vpop.f32.mrf.mxu0
        %v1082 = vadd.f32 %v887, %v1081
        %v1083 = vpop.f32.mrf.mxu0
        %v1084 = vadd.f32 %v887, %v1083
        %1085 = vmatprep.mubr.f32.mxu0 0.0
        %1086 = vmatmul.mubr.f32.gmra.mxu0 %v965
        %v1087 = vpop.f32.mrf.mxu0
        %v1088 = vadd.f32 %v892, %v1087
        %v1089 = vpop.f32.mrf.mxu0
        %v1090 = vadd.f32 %v892, %v1089
        %1091 = vmatprep.mubr.f32.mxu0 0.0
        %1092 = vmatmul.mubr.f32.gmra.mxu0 %v968
        %v1093 = vpop.f32.mrf.mxu0
        %v1094 = vadd.f32 %v897, %v1093
        %v1095 = vpop.f32.mrf.mxu0
        %v1096 = vadd.f32 %v897, %v1095
        %1097 = vmatprep.mubr.f32.mxu0 0.0
        %1098 = vmatmul.mubr.f32.gmra.mxu0 %v971
        %v1099 = vpop.f32.mrf.mxu0
        %v1100 = vadd.f32 %v902, %v1099
        %v1101 = vpop.f32.mrf.mxu0
        %v1102 = vadd.f32 %v902, %v1101
        %1103 = vmatprep.mubr.f32.mxu0 0.0
        %1104 = vmatmul.mubr.f32.gmra.mxu0 %v974
        %v1105 = vpop.f32.mrf.mxu0
        %v1106 = vadd.f32 %v907, %v1105
        %v1107 = vpop.f32.mrf.mxu0
        %v1108 = vadd.f32 %v907, %v1107
        %1109 = vmatprep.mubr.f32.mxu0 0.0
        %1110 = vmatmul.mubr.f32.gmra.mxu0 %v977
        %v1111 = vpop.f32.mrf.mxu0
        %v1112 = vadd.f32 %v912, %v1111
        %v1113 = vpop.f32.mrf.mxu0
        %v1114 = vadd.f32 %v912, %v1113
        %1115 = vmatprep.mubr.f32.mxu0 0.0
        %1116 = vmatmul.mubr.f32.gmra.mxu0 %v980
        %v1117 = vpop.f32.mrf.mxu0
        %v1118 = vadd.f32 %v917, %v1117
        %v1119 = vpop.f32.mrf.mxu0
        %v1120 = vadd.f32 %v917, %v1119
        %1121 = vmatprep.mubr.f32.mxu0 0.0
        %1122 = vmatmul.mubr.f32.gmra.mxu0 %v983
        %v1123 = vpop.f32.mrf.mxu0
        %v1124 = vadd.f32 %v922, %v1123
        %v1125 = vpop.f32.mrf.mxu0
        %v1126 = vadd.f32 %v922, %v1125
        %1127 = vmatprep.mubr.f32.mxu0 0.0
        %1128 = vmatmul.mubr.f32.gmra.mxu0 %v986
        %v1129 = vpop.f32.mrf.mxu0
        %v1130 = vadd.f32 %v927, %v1129
        %v1131 = vpop.f32.mrf.mxu0
        %v1132 = vadd.f32 %v927, %v1131
        %1133 = vmatprep.mubr.f32.mxu0 0.0
        %1134 = vmatmul.mubr.f32.gmra.mxu0 %v989
        %v1135 = vpop.f32.mrf.mxu0
        %v1136 = vadd.f32 %v932, %v1135
        %v1137 = vpop.f32.mrf.mxu0
        %v1138 = vadd.f32 %v932, %v1137
        %1139 = vmatprep.mubr.f32.mxu0 0.0
        %1140 = vmatmul.mubr.f32.gmra.mxu0 %v992
        %v1141 = vpop.f32.mrf.mxu0
        %v1142 = vadd.f32 %v937, %v1141
        %v1143 = vpop.f32.mrf.mxu0
        %v1144 = vadd.f32 %v937, %v1143
        %1145 = vmatprep.mubr.f32.mxu0 0.0
        %1146 = vmatmul.mubr.f32.gmra.mxu0 %v995
        %v1147 = vpop.f32.mrf.mxu0
        %v1148 = vadd.f32 %v942, %v1147
        %v1149 = vpop.f32.mrf.mxu0
        %v1150 = vadd.f32 %v942, %v1149
        %1151 = vmatprep.mubr.f32.mxu0 0.0
        %1152 = vmatmul.mubr.f32.gmra.mxu0 %v998
        %v1153 = vpop.f32.mrf.mxu0
        %v1154 = vadd.f32 %v947, %v1153
        %v1155 = vpop.f32.mrf.mxu0
        %v1156 = vadd.f32 %v947, %v1155
        %1157 = vmatprep.mubr.f32.mxu0 0.0
        %1158 = vmatmul.mubr.f32.gmra.mxu0 %v1001
        %v1159 = vpop.f32.mrf.mxu0
        %v1160 = vadd.f32 %v952, %v1159
        %v1161 = vpop.f32.mrf.mxu0
        %v1162 = vadd.f32 %v952, %v1161
        %1163 = vdwg.mxu0
        %1164 = vst [vmem:[%s823] sm:$0xff] %v1070
        %1165 = vst [vmem:[%s823 + $0x8] sm:$0xff] %v1072
        %1166 = vst [vmem:[%s823 + $0x10] sm:$0xff] %v1076
        %1167 = vst [vmem:[%s823 + $0x18] sm:$0xff] %v1078
        %1168 = vst [vmem:[%s823 + $0x20] sm:$0xff] %v1082
        %1169 = vst [vmem:[%s823 + $0x28] sm:$0xff] %v1084
        %1170 = vst [vmem:[%s823 + $0x30] sm:$0xff] %v1088
        %1171 = vst [vmem:[%s823 + $0x38] sm:$0xff] %v1090
        %1172 = vst [vmem:[%s823 + $0x40] sm:$0xff] %v1094
        %1173 = vst [vmem:[%s823 + $0x48] sm:$0xff] %v1096
        %1174 = vst [vmem:[%s823 + $0x50] sm:$0xff] %v1100
        %1175 = vst [vmem:[%s823 + $0x58] sm:$0xff] %v1102
        %1176 = vst [vmem:[%s823 + $0x60] sm:$0xff] %v1106
        %1177 = vst [vmem:[%s823 + $0x68] sm:$0xff] %v1108
        %1178 = vst [vmem:[%s823 + $0x70] sm:$0xff] %v1112
        %1179 = vst [vmem:[%s823 + $0x78] sm:$0xff] %v1114
        %1180 = vst [vmem:[%s823 + $0x80] sm:$0xff] %v1118
        %1181 = vst [vmem:[%s823 + $0x88] sm:$0xff] %v1120
        %1182 = vst [vmem:[%s823 + $0x90] sm:$0xff] %v1124
        %1183 = vst [vmem:[%s823 + $0x98] sm:$0xff] %v1126
        %1184 = vst [vmem:[%s823 + $0xa0] sm:$0xff] %v1130
        %1185 = vst [vmem:[%s823 + $0xa8] sm:$0xff] %v1132
        %1186 = vst [vmem:[%s823 + $0xb0] sm:$0xff] %v1136
        %1187 = vst [vmem:[%s823 + $0xb8] sm:$0xff] %v1138
        %1188 = vst [vmem:[%s823 + $0xc0] sm:$0xff] %v1142
        %1189 = vst [vmem:[%s823 + $0xc8] sm:$0xff] %v1144
        %1190 = vst [vmem:[%s823 + $0xd0] sm:$0xff] %v1148
        %1191 = vst [vmem:[%s823 + $0xd8] sm:$0xff] %v1150
        %1192 = vst [vmem:[%s823 + $0xe0] sm:$0xff] %v1154
        %1193 = vst [vmem:[%s823 + $0xe8] sm:$0xff] %v1156
        %1194 = vst [vmem:[%s823 + $0xf0] sm:$0xff] %v1160
        %1195 = vst [vmem:[%s823 + $0xf8] sm:$0xff] %v1162
        %s1196 = scalar_lea.vmem %s804, 64 [#allocation2]
        %v1197 = vld [vmem:[%s1196] sm:$0xff]
        %v1198 = vld [vmem:[%s1196 + $0x8] sm:$0xff]
        %v1199 = vld [vmem:[%s1196 + $0x10] sm:$0xff]
        %v1200 = vld [vmem:[%s1196 + $0x18] sm:$0xff]
        %v1201 = vld [vmem:[%s1196 + $0x20] sm:$0xff]
        %v1202 = vld [vmem:[%s1196 + $0x28] sm:$0xff]
        %v1203 = vld [vmem:[%s1196 + $0x30] sm:$0xff]
        %v1204 = vld [vmem:[%s1196 + $0x38] sm:$0xff]
        %1205 = vmatprep.subr.mxu0 0.0
        %1206 = vmatpush1.msra.mxu0 0.0
        %1207 = vmatprep.subr.mxu0 0.0
        %1208 = vmatpush1.msra.mxu0 0.0
        %1209 = vmatprep.subr.mxu0 0.0
        %1210 = vmatpush1.msra.mxu0 0.0
        %1211 = vmatprep.subr.mxu0 0.0
        %1212 = vmatpush1.msra.mxu0 0.0
        %1213 = vmatprep.subr.mxu0 0.0
        %1214 = vmatpush1.msra.mxu0 0.0
        %1215 = vmatprep.subr.mxu0 0.0
        %1216 = vmatpush1.msra.mxu0 0.0
        %1217 = vmatprep.subr.mxu0 0.0
        %1218 = vmatpush1.msra.mxu0 0.0
        %1219 = vmatprep.subr.mxu0 0.0
        %1220 = vmatpush1.msra.mxu0 0.0
        %1221 = vmatprep.subr.mxu0 0.0
        %1222 = vmatpush1.msra.mxu0 0.0
        %1223 = vmatprep.subr.mxu0 0.0
        %1224 = vmatpush1.msra.mxu0 0.0
        %1225 = vmatprep.subr.mxu0 0.0
        %1226 = vmatpush1.msra.mxu0 0.0
        %1227 = vmatprep.subr.mxu0 0.0
        %1228 = vmatpush1.msra.mxu0 0.0
        %1229 = vmatprep.subr.mxu0 %v1204
        %1230 = vmatpush1.msra.mxu0 %v1203
        %1231 = vmatprep.subr.mxu0 %v1202
        %1232 = vmatpush1.msra.mxu0 %v1201
        %1233 = vmatprep.subr.mxu0 %v1200
        %1234 = vmatpush1.msra.mxu0 %v1199
        %1235 = vmatprep.subr.mxu0 %v1198
        %1236 = vmatpush1.msra.mxu0 %v1197
        %1237 = vmatprep.subr.mxu0 0.0
        %1238 = vmatpush2.msra.mxu0 0.0
        %1239 = vmatprep.subr.mxu0 0.0
        %1240 = vmatpush2.msra.mxu0 0.0
        %1241 = vmatprep.subr.mxu0 0.0
        %1242 = vmatpush2.msra.mxu0 0.0
        %1243 = vmatprep.subr.mxu0 0.0
        %1244 = vmatpush2.msra.mxu0 0.0
        %1245 = vmatprep.subr.mxu0 0.0
        %1246 = vmatpush2.msra.mxu0 0.0
        %1247 = vmatprep.subr.mxu0 0.0
        %1248 = vmatpush2.msra.mxu0 0.0
        %1249 = vmatprep.subr.mxu0 0.0
        %1250 = vmatpush2.msra.mxu0 0.0
        %1251 = vmatprep.subr.mxu0 0.0
        %1252 = vmatpush2.msra.mxu0 0.0
        %1253 = vmatprep.subr.mxu0 0.0
        %1254 = vmatpush2.msra.mxu0 0.0
        %1255 = vmatprep.subr.mxu0 0.0
        %1256 = vmatpush2.msra.mxu0 0.0
        %1257 = vmatprep.subr.mxu0 0.0
        %1258 = vmatpush2.msra.mxu0 0.0
        %1259 = vmatprep.subr.mxu0 0.0
        %1260 = vmatpush2.msra.mxu0 0.0
        %1261 = vmatprep.subr.mxu0 0.0
        %1262 = vmatpush2.msra.mxu0 0.0
        %1263 = vmatprep.subr.mxu0 0.0
        %1264 = vmatpush2.msra.mxu0 0.0
        %1265 = vmatprep.subr.mxu0 0.0
        %1266 = vmatpush2.msra.mxu0 0.0
        %1267 = vmatprep.subr.mxu0 0.0
        %1268 = vmatpush2.msra.mxu0 0.0
        %1269 = vmatprep.mubr.f32.mxu0 0.0
        %1270 = vmatmul.mubr.f32.gmra.mxu0 %v956
        %v1271 = vpop.f32.mrf.mxu0
        %v1272 = vadd.f32 %v877, %v1271
        %v1273 = vpop.f32.mrf.mxu0
        %v1274 = vadd.f32 %v877, %v1273
        %1275 = vmatprep.mubr.f32.mxu0 0.0
        %1276 = vmatmul.mubr.f32.gmra.mxu0 %v959
        %v1277 = vpop.f32.mrf.mxu0
        %v1278 = vadd.f32 %v882, %v1277
        %v1279 = vpop.f32.mrf.mxu0
        %v1280 = vadd.f32 %v882, %v1279
        %1281 = vmatprep.mubr.f32.mxu0 0.0
        %1282 = vmatmul.mubr.f32.gmra.mxu0 %v962
        %v1283 = vpop.f32.mrf.mxu0
        %v1284 = vadd.f32 %v887, %v1283
        %v1285 = vpop.f32.mrf.mxu0
        %v1286 = vadd.f32 %v887, %v1285
        %1287 = vmatprep.mubr.f32.mxu0 0.0
        %1288 = vmatmul.mubr.f32.gmra.mxu0 %v965
        %v1289 = vpop.f32.mrf.mxu0
        %v1290 = vadd.f32 %v892, %v1289
        %v1291 = vpop.f32.mrf.mxu0
        %v1292 = vadd.f32 %v892, %v1291
        %1293 = vmatprep.mubr.f32.mxu0 0.0
        %1294 = vmatmul.mubr.f32.gmra.mxu0 %v968
        %v1295 = vpop.f32.mrf.mxu0
        %v1296 = vadd.f32 %v897, %v1295
        %v1297 = vpop.f32.mrf.mxu0
        %v1298 = vadd.f32 %v897, %v1297
        %1299 = vmatprep.mubr.f32.mxu0 0.0
        %1300 = vmatmul.mubr.f32.gmra.mxu0 %v971
        %v1301 = vpop.f32.mrf.mxu0
        %v1302 = vadd.f32 %v902, %v1301
        %v1303 = vpop.f32.mrf.mxu0
        %v1304 = vadd.f32 %v902, %v1303
        %1305 = vmatprep.mubr.f32.mxu0 0.0
        %1306 = vmatmul.mubr.f32.gmra.mxu0 %v974
        %v1307 = vpop.f32.mrf.mxu0
        %v1308 = vadd.f32 %v907, %v1307
        %v1309 = vpop.f32.mrf.mxu0
        %v1310 = vadd.f32 %v907, %v1309
        %1311 = vmatprep.mubr.f32.mxu0 0.0
        %1312 = vmatmul.mubr.f32.gmra.mxu0 %v977
        %v1313 = vpop.f32.mrf.mxu0
        %v1314 = vadd.f32 %v912, %v1313
        %v1315 = vpop.f32.mrf.mxu0
        %v1316 = vadd.f32 %v912, %v1315
        %1317 = vmatprep.mubr.f32.mxu0 0.0
        %1318 = vmatmul.mubr.f32.gmra.mxu0 %v980
        %v1319 = vpop.f32.mrf.mxu0
        %v1320 = vadd.f32 %v917, %v1319
        %v1321 = vpop.f32.mrf.mxu0
        %v1322 = vadd.f32 %v917, %v1321
        %1323 = vmatprep.mubr.f32.mxu0 0.0
        %1324 = vmatmul.mubr.f32.gmra.mxu0 %v983
        %v1325 = vpop.f32.mrf.mxu0
        %v1326 = vadd.f32 %v922, %v1325
        %v1327 = vpop.f32.mrf.mxu0
        %v1328 = vadd.f32 %v922, %v1327
        %1329 = vmatprep.mubr.f32.mxu0 0.0
        %1330 = vmatmul.mubr.f32.gmra.mxu0 %v986
        %v1331 = vpop.f32.mrf.mxu0
        %v1332 = vadd.f32 %v927, %v1331
        %v1333 = vpop.f32.mrf.mxu0
        %v1334 = vadd.f32 %v927, %v1333
        %1335 = vmatprep.mubr.f32.mxu0 0.0
        %1336 = vmatmul.mubr.f32.gmra.mxu0 %v989
        %v1337 = vpop.f32.mrf.mxu0
        %v1338 = vadd.f32 %v932, %v1337
        %v1339 = vpop.f32.mrf.mxu0
        %v1340 = vadd.f32 %v932, %v1339
        %1341 = vmatprep.mubr.f32.mxu0 0.0
        %1342 = vmatmul.mubr.f32.gmra.mxu0 %v992
        %v1343 = vpop.f32.mrf.mxu0
        %v1344 = vadd.f32 %v937, %v1343
        %v1345 = vpop.f32.mrf.mxu0
        %v1346 = vadd.f32 %v937, %v1345
        %1347 = vmatprep.mubr.f32.mxu0 0.0
        %1348 = vmatmul.mubr.f32.gmra.mxu0 %v995
        %v1349 = vpop.f32.mrf.mxu0
        %v1350 = vadd.f32 %v942, %v1349
        %v1351 = vpop.f32.mrf.mxu0
        %v1352 = vadd.f32 %v942, %v1351
        %1353 = vmatprep.mubr.f32.mxu0 0.0
        %1354 = vmatmul.mubr.f32.gmra.mxu0 %v998
        %v1355 = vpop.f32.mrf.mxu0
        %v1356 = vadd.f32 %v947, %v1355
        %v1357 = vpop.f32.mrf.mxu0
        %v1358 = vadd.f32 %v947, %v1357
        %1359 = vmatprep.mubr.f32.mxu0 0.0
        %1360 = vmatmul.mubr.f32.gmra.mxu0 %v1001
        %v1361 = vpop.f32.mrf.mxu0
        %v1362 = vadd.f32 %v952, %v1361
        %v1363 = vpop.f32.mrf.mxu0
        %v1364 = vadd.f32 %v952, %v1363
        %1365 = vdwg.mxu0
        %s1366 = scalar_lea.vmem %s823, 256 [#allocation3]
        %1367 = vst [vmem:[%s1366] sm:$0xff] %v1272
        %1368 = vst [vmem:[%s1366 + $0x8] sm:$0xff] %v1274
        %1369 = vst [vmem:[%s1366 + $0x10] sm:$0xff] %v1278
        %1370 = vst [vmem:[%s1366 + $0x18] sm:$0xff] %v1280
        %1371 = vst [vmem:[%s1366 + $0x20] sm:$0xff] %v1284
        %1372 = vst [vmem:[%s1366 + $0x28] sm:$0xff] %v1286
        %1373 = vst [vmem:[%s1366 + $0x30] sm:$0xff] %v1290
        %1374 = vst [vmem:[%s1366 + $0x38] sm:$0xff] %v1292
        %1375 = vst [vmem:[%s1366 + $0x40] sm:$0xff] %v1296
        %1376 = vst [vmem:[%s1366 + $0x48] sm:$0xff] %v1298
        %1377 = vst [vmem:[%s1366 + $0x50] sm:$0xff] %v1302
        %1378 = vst [vmem:[%s1366 + $0x58] sm:$0xff] %v1304
        %1379 = vst [vmem:[%s1366 + $0x60] sm:$0xff] %v1308
        %1380 = vst [vmem:[%s1366 + $0x68] sm:$0xff] %v1310
        %1381 = vst [vmem:[%s1366 + $0x70] sm:$0xff] %v1314
        %1382 = vst [vmem:[%s1366 + $0x78] sm:$0xff] %v1316
        %1383 = vst [vmem:[%s1366 + $0x80] sm:$0xff] %v1320
        %1384 = vst [vmem:[%s1366 + $0x88] sm:$0xff] %v1322
        %1385 = vst [vmem:[%s1366 + $0x90] sm:$0xff] %v1326
        %1386 = vst [vmem:[%s1366 + $0x98] sm:$0xff] %v1328
        %1387 = vst [vmem:[%s1366 + $0xa0] sm:$0xff] %v1332
        %1388 = vst [vmem:[%s1366 + $0xa8] sm:$0xff] %v1334
        %1389 = vst [vmem:[%s1366 + $0xb0] sm:$0xff] %v1338
        %1390 = vst [vmem:[%s1366 + $0xb8] sm:$0xff] %v1340
        %1391 = vst [vmem:[%s1366 + $0xc0] sm:$0xff] %v1344
        %1392 = vst [vmem:[%s1366 + $0xc8] sm:$0xff] %v1346
        %1393 = vst [vmem:[%s1366 + $0xd0] sm:$0xff] %v1350
        %1394 = vst [vmem:[%s1366 + $0xd8] sm:$0xff] %v1352
        %1395 = vst [vmem:[%s1366 + $0xe0] sm:$0xff] %v1356
        %1396 = vst [vmem:[%s1366 + $0xe8] sm:$0xff] %v1358
        %1397 = vst [vmem:[%s1366 + $0xf0] sm:$0xff] %v1362
        %1398 = vst [vmem:[%s1366 + $0xf8] sm:$0xff] %v1364
        %s1399 = scalar_lea.vmem %s804, 128 [#allocation2]
        %v1400 = vld [vmem:[%s1399] sm:$0xff]
        %v1401 = vld [vmem:[%s1399 + $0x8] sm:$0xff]
        %v1402 = vld [vmem:[%s1399 + $0x10] sm:$0xff]
        %v1403 = vld [vmem:[%s1399 + $0x18] sm:$0xff]
        %v1404 = vld [vmem:[%s1399 + $0x20] sm:$0xff]
        %v1405 = vld [vmem:[%s1399 + $0x28] sm:$0xff]
        %v1406 = vld [vmem:[%s1399 + $0x30] sm:$0xff]
        %v1407 = vld [vmem:[%s1399 + $0x38] sm:$0xff]
        %1408 = vmatprep.subr.mxu0 0.0
        %1409 = vmatpush1.msra.mxu0 0.0
        %1410 = vmatprep.subr.mxu0 0.0
        %1411 = vmatpush1.msra.mxu0 0.0
        %1412 = vmatprep.subr.mxu0 0.0
        %1413 = vmatpush1.msra.mxu0 0.0
        %1414 = vmatprep.subr.mxu0 0.0
        %1415 = vmatpush1.msra.mxu0 0.0
        %1416 = vmatprep.subr.mxu0 0.0
        %1417 = vmatpush1.msra.mxu0 0.0
        %1418 = vmatprep.subr.mxu0 0.0
        %1419 = vmatpush1.msra.mxu0 0.0
        %1420 = vmatprep.subr.mxu0 0.0
        %1421 = vmatpush1.msra.mxu0 0.0
        %1422 = vmatprep.subr.mxu0 0.0
        %1423 = vmatpush1.msra.mxu0 0.0
        %1424 = vmatprep.subr.mxu0 0.0
        %1425 = vmatpush1.msra.mxu0 0.0
        %1426 = vmatprep.subr.mxu0 0.0
        %1427 = vmatpush1.msra.mxu0 0.0
        %1428 = vmatprep.subr.mxu0 0.0
        %1429 = vmatpush1.msra.mxu0 0.0
        %1430 = vmatprep.subr.mxu0 0.0
        %1431 = vmatpush1.msra.mxu0 0.0
        %1432 = vmatprep.subr.mxu0 %v1407
        %1433 = vmatpush1.msra.mxu0 %v1406
        %1434 = vmatprep.subr.mxu0 %v1405
        %1435 = vmatpush1.msra.mxu0 %v1404
        %1436 = vmatprep.subr.mxu0 %v1403
        %1437 = vmatpush1.msra.mxu0 %v1402
        %1438 = vmatprep.subr.mxu0 %v1401
        %1439 = vmatpush1.msra.mxu0 %v1400
        %1440 = vmatprep.subr.mxu0 0.0
        %1441 = vmatpush2.msra.mxu0 0.0
        %1442 = vmatprep.subr.mxu0 0.0
        %1443 = vmatpush2.msra.mxu0 0.0
        %1444 = vmatprep.subr.mxu0 0.0
        %1445 = vmatpush2.msra.mxu0 0.0
        %1446 = vmatprep.subr.mxu0 0.0
        %1447 = vmatpush2.msra.mxu0 0.0
        %1448 = vmatprep.subr.mxu0 0.0
        %1449 = vmatpush2.msra.mxu0 0.0
        %1450 = vmatprep.subr.mxu0 0.0
        %1451 = vmatpush2.msra.mxu0 0.0
        %1452 = vmatprep.subr.mxu0 0.0
        %1453 = vmatpush2.msra.mxu0 0.0
        %1454 = vmatprep.subr.mxu0 0.0
        %1455 = vmatpush2.msra.mxu0 0.0
        %1456 = vmatprep.subr.mxu0 0.0
        %1457 = vmatpush2.msra.mxu0 0.0
        %1458 = vmatprep.subr.mxu0 0.0
        %1459 = vmatpush2.msra.mxu0 0.0
        %1460 = vmatprep.subr.mxu0 0.0
        %1461 = vmatpush2.msra.mxu0 0.0
        %1462 = vmatprep.subr.mxu0 0.0
        %1463 = vmatpush2.msra.mxu0 0.0
        %1464 = vmatprep.subr.mxu0 0.0
        %1465 = vmatpush2.msra.mxu0 0.0
        %1466 = vmatprep.subr.mxu0 0.0
        %1467 = vmatpush2.msra.mxu0 0.0
        %1468 = vmatprep.subr.mxu0 0.0
        %1469 = vmatpush2.msra.mxu0 0.0
        %1470 = vmatprep.subr.mxu0 0.0
        %1471 = vmatpush2.msra.mxu0 0.0
        %1472 = vmatprep.mubr.f32.mxu0 0.0
        %1473 = vmatmul.mubr.f32.gmra.mxu0 %v956
        %v1474 = vpop.f32.mrf.mxu0
        %v1475 = vadd.f32 %v877, %v1474
        %v1476 = vpop.f32.mrf.mxu0
        %v1477 = vadd.f32 %v877, %v1476
        %1478 = vmatprep.mubr.f32.mxu0 0.0
        %1479 = vmatmul.mubr.f32.gmra.mxu0 %v959
        %v1480 = vpop.f32.mrf.mxu0
        %v1481 = vadd.f32 %v882, %v1480
        %v1482 = vpop.f32.mrf.mxu0
        %v1483 = vadd.f32 %v882, %v1482
        %1484 = vmatprep.mubr.f32.mxu0 0.0
        %1485 = vmatmul.mubr.f32.gmra.mxu0 %v962
        %v1486 = vpop.f32.mrf.mxu0
        %v1487 = vadd.f32 %v887, %v1486
        %v1488 = vpop.f32.mrf.mxu0
        %v1489 = vadd.f32 %v887, %v1488
        %1490 = vmatprep.mubr.f32.mxu0 0.0
        %1491 = vmatmul.mubr.f32.gmra.mxu0 %v965
        %v1492 = vpop.f32.mrf.mxu0
        %v1493 = vadd.f32 %v892, %v1492
        %v1494 = vpop.f32.mrf.mxu0
        %v1495 = vadd.f32 %v892, %v1494
        %1496 = vmatprep.mubr.f32.mxu0 0.0
        %1497 = vmatmul.mubr.f32.gmra.mxu0 %v968
        %v1498 = vpop.f32.mrf.mxu0
        %v1499 = vadd.f32 %v897, %v1498
        %v1500 = vpop.f32.mrf.mxu0
        %v1501 = vadd.f32 %v897, %v1500
        %1502 = vmatprep.mubr.f32.mxu0 0.0
        %1503 = vmatmul.mubr.f32.gmra.mxu0 %v971
        %v1504 = vpop.f32.mrf.mxu0
        %v1505 = vadd.f32 %v902, %v1504
        %v1506 = vpop.f32.mrf.mxu0
        %v1507 = vadd.f32 %v902, %v1506
        %1508 = vmatprep.mubr.f32.mxu0 0.0
        %1509 = vmatmul.mubr.f32.gmra.mxu0 %v974
        %v1510 = vpop.f32.mrf.mxu0
        %v1511 = vadd.f32 %v907, %v1510
        %v1512 = vpop.f32.mrf.mxu0
        %v1513 = vadd.f32 %v907, %v1512
        %1514 = vmatprep.mubr.f32.mxu0 0.0
        %1515 = vmatmul.mubr.f32.gmra.mxu0 %v977
        %v1516 = vpop.f32.mrf.mxu0
        %v1517 = vadd.f32 %v912, %v1516
        %v1518 = vpop.f32.mrf.mxu0
        %v1519 = vadd.f32 %v912, %v1518
        %1520 = vmatprep.mubr.f32.mxu0 0.0
        %1521 = vmatmul.mubr.f32.gmra.mxu0 %v980
        %v1522 = vpop.f32.mrf.mxu0
        %v1523 = vadd.f32 %v917, %v1522
        %v1524 = vpop.f32.mrf.mxu0
        %v1525 = vadd.f32 %v917, %v1524
        %1526 = vmatprep.mubr.f32.mxu0 0.0
        %1527 = vmatmul.mubr.f32.gmra.mxu0 %v983
        %v1528 = vpop.f32.mrf.mxu0
        %v1529 = vadd.f32 %v922, %v1528
        %v1530 = vpop.f32.mrf.mxu0
        %v1531 = vadd.f32 %v922, %v1530
        %1532 = vmatprep.mubr.f32.mxu0 0.0
        %1533 = vmatmul.mubr.f32.gmra.mxu0 %v986
        %v1534 = vpop.f32.mrf.mxu0
        %v1535 = vadd.f32 %v927, %v1534
        %v1536 = vpop.f32.mrf.mxu0
        %v1537 = vadd.f32 %v927, %v1536
        %1538 = vmatprep.mubr.f32.mxu0 0.0
        %1539 = vmatmul.mubr.f32.gmra.mxu0 %v989
        %v1540 = vpop.f32.mrf.mxu0
        %v1541 = vadd.f32 %v932, %v1540
        %v1542 = vpop.f32.mrf.mxu0
        %v1543 = vadd.f32 %v932, %v1542
        %1544 = vmatprep.mubr.f32.mxu0 0.0
        %1545 = vmatmul.mubr.f32.gmra.mxu0 %v992
        %v1546 = vpop.f32.mrf.mxu0
        %v1547 = vadd.f32 %v937, %v1546
        %v1548 = vpop.f32.mrf.mxu0
        %v1549 = vadd.f32 %v937, %v1548
        %1550 = vmatprep.mubr.f32.mxu0 0.0
        %1551 = vmatmul.mubr.f32.gmra.mxu0 %v995
        %v1552 = vpop.f32.mrf.mxu0
        %v1553 = vadd.f32 %v942, %v1552
        %v1554 = vpop.f32.mrf.mxu0
        %v1555 = vadd.f32 %v942, %v1554
        %1556 = vmatprep.mubr.f32.mxu0 0.0
        %1557 = vmatmul.mubr.f32.gmra.mxu0 %v998
        %v1558 = vpop.f32.mrf.mxu0
        %v1559 = vadd.f32 %v947, %v1558
        %v1560 = vpop.f32.mrf.mxu0
        %v1561 = vadd.f32 %v947, %v1560
        %1562 = vmatprep.mubr.f32.mxu0 0.0
        %1563 = vmatmul.mubr.f32.gmra.mxu0 %v1001
        %v1564 = vpop.f32.mrf.mxu0
        %v1565 = vadd.f32 %v952, %v1564
        %v1566 = vpop.f32.mrf.mxu0
        %v1567 = vadd.f32 %v952, %v1566
        %1568 = vdwg.mxu0
        %s1569 = scalar_lea.vmem %s823, 512 [#allocation3]
        %1570 = vst [vmem:[%s1569] sm:$0xff] %v1475
        %1571 = vst [vmem:[%s1569 + $0x8] sm:$0xff] %v1477
        %1572 = vst [vmem:[%s1569 + $0x10] sm:$0xff] %v1481
        %1573 = vst [vmem:[%s1569 + $0x18] sm:$0xff] %v1483
        %1574 = vst [vmem:[%s1569 + $0x20] sm:$0xff] %v1487
        %1575 = vst [vmem:[%s1569 + $0x28] sm:$0xff] %v1489
        %1576 = vst [vmem:[%s1569 + $0x30] sm:$0xff] %v1493
        %1577 = vst [vmem:[%s1569 + $0x38] sm:$0xff] %v1495
        %1578 = vst [vmem:[%s1569 + $0x40] sm:$0xff] %v1499
        %1579 = vst [vmem:[%s1569 + $0x48] sm:$0xff] %v1501
        %1580 = vst [vmem:[%s1569 + $0x50] sm:$0xff] %v1505
        %1581 = vst [vmem:[%s1569 + $0x58] sm:$0xff] %v1507
        %1582 = vst [vmem:[%s1569 + $0x60] sm:$0xff] %v1511
        %1583 = vst [vmem:[%s1569 + $0x68] sm:$0xff] %v1513
        %1584 = vst [vmem:[%s1569 + $0x70] sm:$0xff] %v1517
        %1585 = vst [vmem:[%s1569 + $0x78] sm:$0xff] %v1519
        %1586 = vst [vmem:[%s1569 + $0x80] sm:$0xff] %v1523
        %1587 = vst [vmem:[%s1569 + $0x88] sm:$0xff] %v1525
        %1588 = vst [vmem:[%s1569 + $0x90] sm:$0xff] %v1529
        %1589 = vst [vmem:[%s1569 + $0x98] sm:$0xff] %v1531
        %1590 = vst [vmem:[%s1569 + $0xa0] sm:$0xff] %v1535
        %1591 = vst [vmem:[%s1569 + $0xa8] sm:$0xff] %v1537
        %1592 = vst [vmem:[%s1569 + $0xb0] sm:$0xff] %v1541
        %1593 = vst [vmem:[%s1569 + $0xb8] sm:$0xff] %v1543
        %1594 = vst [vmem:[%s1569 + $0xc0] sm:$0xff] %v1547
        %1595 = vst [vmem:[%s1569 + $0xc8] sm:$0xff] %v1549
        %1596 = vst [vmem:[%s1569 + $0xd0] sm:$0xff] %v1553
        %1597 = vst [vmem:[%s1569 + $0xd8] sm:$0xff] %v1555
        %1598 = vst [vmem:[%s1569 + $0xe0] sm:$0xff] %v1559
        %1599 = vst [vmem:[%s1569 + $0xe8] sm:$0xff] %v1561
        %1600 = vst [vmem:[%s1569 + $0xf0] sm:$0xff] %v1565
        %1601 = vst [vmem:[%s1569 + $0xf8] sm:$0xff] %v1567
        %s1602 = scalar_lea.vmem %s804, 192 [#allocation2]
        %v1603 = vld [vmem:[%s1602] sm:$0xff]
        %v1604 = vld [vmem:[%s1602 + $0x8] sm:$0xff]
        %v1605 = vld [vmem:[%s1602 + $0x10] sm:$0xff]
        %v1606 = vld [vmem:[%s1602 + $0x18] sm:$0xff]
        %v1607 = vld [vmem:[%s1602 + $0x20] sm:$0xff]
        %v1608 = vld [vmem:[%s1602 + $0x28] sm:$0xff]
        %v1609 = vld [vmem:[%s1602 + $0x30] sm:$0xff]
        %v1610 = vld [vmem:[%s1602 + $0x38] sm:$0xff]
        %1611 = vmatprep.subr.mxu0 0.0
        %1612 = vmatpush1.msra.mxu0 0.0
        %1613 = vmatprep.subr.mxu0 0.0
        %1614 = vmatpush1.msra.mxu0 0.0
        %1615 = vmatprep.subr.mxu0 0.0
        %1616 = vmatpush1.msra.mxu0 0.0
        %1617 = vmatprep.subr.mxu0 0.0
        %1618 = vmatpush1.msra.mxu0 0.0
        %1619 = vmatprep.subr.mxu0 0.0
        %1620 = vmatpush1.msra.mxu0 0.0
        %1621 = vmatprep.subr.mxu0 0.0
        %1622 = vmatpush1.msra.mxu0 0.0
        %1623 = vmatprep.subr.mxu0 0.0
        %1624 = vmatpush1.msra.mxu0 0.0
        %1625 = vmatprep.subr.mxu0 0.0
        %1626 = vmatpush1.msra.mxu0 0.0
        %1627 = vmatprep.subr.mxu0 0.0
        %1628 = vmatpush1.msra.mxu0 0.0
        %1629 = vmatprep.subr.mxu0 0.0
        %1630 = vmatpush1.msra.mxu0 0.0
        %1631 = vmatprep.subr.mxu0 0.0
        %1632 = vmatpush1.msra.mxu0 0.0
        %1633 = vmatprep.subr.mxu0 0.0
        %1634 = vmatpush1.msra.mxu0 0.0
        %1635 = vmatprep.subr.mxu0 %v1610
        %1636 = vmatpush1.msra.mxu0 %v1609
        %1637 = vmatprep.subr.mxu0 %v1608
        %1638 = vmatpush1.msra.mxu0 %v1607
        %1639 = vmatprep.subr.mxu0 %v1606
        %1640 = vmatpush1.msra.mxu0 %v1605
        %1641 = vmatprep.subr.mxu0 %v1604
        %1642 = vmatpush1.msra.mxu0 %v1603
        %1643 = vmatprep.subr.mxu0 0.0
        %1644 = vmatpush2.msra.mxu0 0.0
        %1645 = vmatprep.subr.mxu0 0.0
        %1646 = vmatpush2.msra.mxu0 0.0
        %1647 = vmatprep.subr.mxu0 0.0
        %1648 = vmatpush2.msra.mxu0 0.0
        %1649 = vmatprep.subr.mxu0 0.0
        %1650 = vmatpush2.msra.mxu0 0.0
        %1651 = vmatprep.subr.mxu0 0.0
        %1652 = vmatpush2.msra.mxu0 0.0
        %1653 = vmatprep.subr.mxu0 0.0
        %1654 = vmatpush2.msra.mxu0 0.0
        %1655 = vmatprep.subr.mxu0 0.0
        %1656 = vmatpush2.msra.mxu0 0.0
        %1657 = vmatprep.subr.mxu0 0.0
        %1658 = vmatpush2.msra.mxu0 0.0
        %1659 = vmatprep.subr.mxu0 0.0
        %1660 = vmatpush2.msra.mxu0 0.0
        %1661 = vmatprep.subr.mxu0 0.0
        %1662 = vmatpush2.msra.mxu0 0.0
        %1663 = vmatprep.subr.mxu0 0.0
        %1664 = vmatpush2.msra.mxu0 0.0
        %1665 = vmatprep.subr.mxu0 0.0
        %1666 = vmatpush2.msra.mxu0 0.0
        %1667 = vmatprep.subr.mxu0 0.0
        %1668 = vmatpush2.msra.mxu0 0.0
        %1669 = vmatprep.subr.mxu0 0.0
        %1670 = vmatpush2.msra.mxu0 0.0
        %1671 = vmatprep.subr.mxu0 0.0
        %1672 = vmatpush2.msra.mxu0 0.0
        %1673 = vmatprep.subr.mxu0 0.0
        %1674 = vmatpush2.msra.mxu0 0.0
        %1675 = vmatprep.mubr.f32.mxu0 0.0
        %1676 = vmatmul.mubr.f32.gmra.mxu0 %v956
        %v1677 = vpop.f32.mrf.mxu0
        %v1678 = vadd.f32 %v877, %v1677
        %v1679 = vpop.f32.mrf.mxu0
        %v1680 = vadd.f32 %v877, %v1679
        %1681 = vmatprep.mubr.f32.mxu0 0.0
        %1682 = vmatmul.mubr.f32.gmra.mxu0 %v959
        %v1683 = vpop.f32.mrf.mxu0
        %v1684 = vadd.f32 %v882, %v1683
        %v1685 = vpop.f32.mrf.mxu0
        %v1686 = vadd.f32 %v882, %v1685
        %1687 = vmatprep.mubr.f32.mxu0 0.0
        %1688 = vmatmul.mubr.f32.gmra.mxu0 %v962
        %v1689 = vpop.f32.mrf.mxu0
        %v1690 = vadd.f32 %v887, %v1689
        %v1691 = vpop.f32.mrf.mxu0
        %v1692 = vadd.f32 %v887, %v1691
        %1693 = vmatprep.mubr.f32.mxu0 0.0
        %1694 = vmatmul.mubr.f32.gmra.mxu0 %v965
        %v1695 = vpop.f32.mrf.mxu0
        %v1696 = vadd.f32 %v892, %v1695
        %v1697 = vpop.f32.mrf.mxu0
        %v1698 = vadd.f32 %v892, %v1697
        %1699 = vmatprep.mubr.f32.mxu0 0.0
        %1700 = vmatmul.mubr.f32.gmra.mxu0 %v968
        %v1701 = vpop.f32.mrf.mxu0
        %v1702 = vadd.f32 %v897, %v1701
        %v1703 = vpop.f32.mrf.mxu0
        %v1704 = vadd.f32 %v897, %v1703
        %1705 = vmatprep.mubr.f32.mxu0 0.0
        %1706 = vmatmul.mubr.f32.gmra.mxu0 %v971
        %v1707 = vpop.f32.mrf.mxu0
        %v1708 = vadd.f32 %v902, %v1707
        %v1709 = vpop.f32.mrf.mxu0
        %v1710 = vadd.f32 %v902, %v1709
        %1711 = vmatprep.mubr.f32.mxu0 0.0
        %1712 = vmatmul.mubr.f32.gmra.mxu0 %v974
        %v1713 = vpop.f32.mrf.mxu0
        %v1714 = vadd.f32 %v907, %v1713
        %v1715 = vpop.f32.mrf.mxu0
        %v1716 = vadd.f32 %v907, %v1715
        %1717 = vmatprep.mubr.f32.mxu0 0.0
        %1718 = vmatmul.mubr.f32.gmra.mxu0 %v977
        %v1719 = vpop.f32.mrf.mxu0
        %v1720 = vadd.f32 %v912, %v1719
        %v1721 = vpop.f32.mrf.mxu0
        %v1722 = vadd.f32 %v912, %v1721
        %1723 = vmatprep.mubr.f32.mxu0 0.0
        %1724 = vmatmul.mubr.f32.gmra.mxu0 %v980
        %v1725 = vpop.f32.mrf.mxu0
        %v1726 = vadd.f32 %v917, %v1725
        %v1727 = vpop.f32.mrf.mxu0
        %v1728 = vadd.f32 %v917, %v1727
        %1729 = vmatprep.mubr.f32.mxu0 0.0
        %1730 = vmatmul.mubr.f32.gmra.mxu0 %v983
        %v1731 = vpop.f32.mrf.mxu0
        %v1732 = vadd.f32 %v922, %v1731
        %v1733 = vpop.f32.mrf.mxu0
        %v1734 = vadd.f32 %v922, %v1733
        %1735 = vmatprep.mubr.f32.mxu0 0.0
        %1736 = vmatmul.mubr.f32.gmra.mxu0 %v986
        %v1737 = vpop.f32.mrf.mxu0
        %v1738 = vadd.f32 %v927, %v1737
        %v1739 = vpop.f32.mrf.mxu0
        %v1740 = vadd.f32 %v927, %v1739
        %1741 = vmatprep.mubr.f32.mxu0 0.0
        %1742 = vmatmul.mubr.f32.gmra.mxu0 %v989
        %v1743 = vpop.f32.mrf.mxu0
        %v1744 = vadd.f32 %v932, %v1743
        %v1745 = vpop.f32.mrf.mxu0
        %v1746 = vadd.f32 %v932, %v1745
        %1747 = vmatprep.mubr.f32.mxu0 0.0
        %1748 = vmatmul.mubr.f32.gmra.mxu0 %v992
        %v1749 = vpop.f32.mrf.mxu0
        %v1750 = vadd.f32 %v937, %v1749
        %v1751 = vpop.f32.mrf.mxu0
        %v1752 = vadd.f32 %v937, %v1751
        %1753 = vmatprep.mubr.f32.mxu0 0.0
        %1754 = vmatmul.mubr.f32.gmra.mxu0 %v995
        %v1755 = vpop.f32.mrf.mxu0
        %v1756 = vadd.f32 %v942, %v1755
        %v1757 = vpop.f32.mrf.mxu0
        %v1758 = vadd.f32 %v942, %v1757
        %1759 = vmatprep.mubr.f32.mxu0 0.0
        %1760 = vmatmul.mubr.f32.gmra.mxu0 %v998
        %v1761 = vpop.f32.mrf.mxu0
        %v1762 = vadd.f32 %v947, %v1761
        %v1763 = vpop.f32.mrf.mxu0
        %v1764 = vadd.f32 %v947, %v1763
        %1765 = vmatprep.mubr.f32.mxu0 0.0
        %1766 = vmatmul.mubr.f32.gmra.mxu0 %v1001
        %v1767 = vpop.f32.mrf.mxu0
        %v1768 = vadd.f32 %v952, %v1767
        %v1769 = vpop.f32.mrf.mxu0
        %v1770 = vadd.f32 %v952, %v1769
        %1771 = vdwg.mxu0
        %s1772 = scalar_lea.vmem %s823, 768 [#allocation3]
        %1773 = vst [vmem:[%s1772] sm:$0xff] %v1678
        %1774 = vst [vmem:[%s1772 + $0x8] sm:$0xff] %v1680
        %1775 = vst [vmem:[%s1772 + $0x10] sm:$0xff] %v1684
        %1776 = vst [vmem:[%s1772 + $0x18] sm:$0xff] %v1686
        %1777 = vst [vmem:[%s1772 + $0x20] sm:$0xff] %v1690
        %1778 = vst [vmem:[%s1772 + $0x28] sm:$0xff] %v1692
        %1779 = vst [vmem:[%s1772 + $0x30] sm:$0xff] %v1696
        %1780 = vst [vmem:[%s1772 + $0x38] sm:$0xff] %v1698
        %1781 = vst [vmem:[%s1772 + $0x40] sm:$0xff] %v1702
        %1782 = vst [vmem:[%s1772 + $0x48] sm:$0xff] %v1704
        %1783 = vst [vmem:[%s1772 + $0x50] sm:$0xff] %v1708
        %1784 = vst [vmem:[%s1772 + $0x58] sm:$0xff] %v1710
        %1785 = vst [vmem:[%s1772 + $0x60] sm:$0xff] %v1714
        %1786 = vst [vmem:[%s1772 + $0x68] sm:$0xff] %v1716
        %1787 = vst [vmem:[%s1772 + $0x70] sm:$0xff] %v1720
        %1788 = vst [vmem:[%s1772 + $0x78] sm:$0xff] %v1722
        %1789 = vst [vmem:[%s1772 + $0x80] sm:$0xff] %v1726
        %1790 = vst [vmem:[%s1772 + $0x88] sm:$0xff] %v1728
        %1791 = vst [vmem:[%s1772 + $0x90] sm:$0xff] %v1732
        %1792 = vst [vmem:[%s1772 + $0x98] sm:$0xff] %v1734
        %1793 = vst [vmem:[%s1772 + $0xa0] sm:$0xff] %v1738
        %1794 = vst [vmem:[%s1772 + $0xa8] sm:$0xff] %v1740
        %1795 = vst [vmem:[%s1772 + $0xb0] sm:$0xff] %v1744
        %1796 = vst [vmem:[%s1772 + $0xb8] sm:$0xff] %v1746
        %1797 = vst [vmem:[%s1772 + $0xc0] sm:$0xff] %v1750
        %1798 = vst [vmem:[%s1772 + $0xc8] sm:$0xff] %v1752
        %1799 = vst [vmem:[%s1772 + $0xd0] sm:$0xff] %v1756
        %1800 = vst [vmem:[%s1772 + $0xd8] sm:$0xff] %v1758
        %1801 = vst [vmem:[%s1772 + $0xe0] sm:$0xff] %v1762
        %1802 = vst [vmem:[%s1772 + $0xe8] sm:$0xff] %v1764
        %1803 = vst [vmem:[%s1772 + $0xf0] sm:$0xff] %v1768
        %1804 = vst [vmem:[%s1772 + $0xf8] sm:$0xff] %v1770
        %s1805 = scalar_lea.vmem %s804, 256 [#allocation2]
        %v1806 = vld [vmem:[%s1805] sm:$0xff]
        %v1807 = vld [vmem:[%s1805 + $0x8] sm:$0xff]
        %v1808 = vld [vmem:[%s1805 + $0x10] sm:$0xff]
        %v1809 = vld [vmem:[%s1805 + $0x18] sm:$0xff]
        %v1810 = vld [vmem:[%s1805 + $0x20] sm:$0xff]
        %v1811 = vld [vmem:[%s1805 + $0x28] sm:$0xff]
        %v1812 = vld [vmem:[%s1805 + $0x30] sm:$0xff]
        %v1813 = vld [vmem:[%s1805 + $0x38] sm:$0xff]
        %1814 = vmatprep.subr.mxu0 0.0
        %1815 = vmatpush1.msra.mxu0 0.0
        %1816 = vmatprep.subr.mxu0 0.0
        %1817 = vmatpush1.msra.mxu0 0.0
        %1818 = vmatprep.subr.mxu0 0.0
        %1819 = vmatpush1.msra.mxu0 0.0
        %1820 = vmatprep.subr.mxu0 0.0
        %1821 = vmatpush1.msra.mxu0 0.0
        %1822 = vmatprep.subr.mxu0 0.0
        %1823 = vmatpush1.msra.mxu0 0.0
        %1824 = vmatprep.subr.mxu0 0.0
        %1825 = vmatpush1.msra.mxu0 0.0
        %1826 = vmatprep.subr.mxu0 0.0
        %1827 = vmatpush1.msra.mxu0 0.0
        %1828 = vmatprep.subr.mxu0 0.0
        %1829 = vmatpush1.msra.mxu0 0.0
        %1830 = vmatprep.subr.mxu0 0.0
        %1831 = vmatpush1.msra.mxu0 0.0
        %1832 = vmatprep.subr.mxu0 0.0
        %1833 = vmatpush1.msra.mxu0 0.0
        %1834 = vmatprep.subr.mxu0 0.0
        %1835 = vmatpush1.msra.mxu0 0.0
        %1836 = vmatprep.subr.mxu0 0.0
        %1837 = vmatpush1.msra.mxu0 0.0
        %1838 = vmatprep.subr.mxu0 %v1813
        %1839 = vmatpush1.msra.mxu0 %v1812
        %1840 = vmatprep.subr.mxu0 %v1811
        %1841 = vmatpush1.msra.mxu0 %v1810
        %1842 = vmatprep.subr.mxu0 %v1809
        %1843 = vmatpush1.msra.mxu0 %v1808
        %1844 = vmatprep.subr.mxu0 %v1807
        %1845 = vmatpush1.msra.mxu0 %v1806
        %1846 = vmatprep.subr.mxu0 0.0
        %1847 = vmatpush2.msra.mxu0 0.0
        %1848 = vmatprep.subr.mxu0 0.0
        %1849 = vmatpush2.msra.mxu0 0.0
        %1850 = vmatprep.subr.mxu0 0.0
        %1851 = vmatpush2.msra.mxu0 0.0
        %1852 = vmatprep.subr.mxu0 0.0
        %1853 = vmatpush2.msra.mxu0 0.0
        %1854 = vmatprep.subr.mxu0 0.0
        %1855 = vmatpush2.msra.mxu0 0.0
        %1856 = vmatprep.subr.mxu0 0.0
        %1857 = vmatpush2.msra.mxu0 0.0
        %1858 = vmatprep.subr.mxu0 0.0
        %1859 = vmatpush2.msra.mxu0 0.0
        %1860 = vmatprep.subr.mxu0 0.0
        %1861 = vmatpush2.msra.mxu0 0.0
        %1862 = vmatprep.subr.mxu0 0.0
        %1863 = vmatpush2.msra.mxu0 0.0
        %1864 = vmatprep.subr.mxu0 0.0
        %1865 = vmatpush2.msra.mxu0 0.0
        %1866 = vmatprep.subr.mxu0 0.0
        %1867 = vmatpush2.msra.mxu0 0.0
        %1868 = vmatprep.subr.mxu0 0.0
        %1869 = vmatpush2.msra.mxu0 0.0
        %1870 = vmatprep.subr.mxu0 0.0
        %1871 = vmatpush2.msra.mxu0 0.0
        %1872 = vmatprep.subr.mxu0 0.0
        %1873 = vmatpush2.msra.mxu0 0.0
        %1874 = vmatprep.subr.mxu0 0.0
        %1875 = vmatpush2.msra.mxu0 0.0
        %1876 = vmatprep.subr.mxu0 0.0
        %1877 = vmatpush2.msra.mxu0 0.0
        %1878 = vmatprep.mubr.f32.mxu0 0.0
        %1879 = vmatmul.mubr.f32.gmra.mxu0 %v956
        %v1880 = vpop.f32.mrf.mxu0
        %v1881 = vadd.f32 %v877, %v1880
        %v1882 = vpop.f32.mrf.mxu0
        %v1883 = vadd.f32 %v877, %v1882
        %1884 = vmatprep.mubr.f32.mxu0 0.0
        %1885 = vmatmul.mubr.f32.gmra.mxu0 %v959
        %v1886 = vpop.f32.mrf.mxu0
        %v1887 = vadd.f32 %v882, %v1886
        %v1888 = vpop.f32.mrf.mxu0
        %v1889 = vadd.f32 %v882, %v1888
        %1890 = vmatprep.mubr.f32.mxu0 0.0
        %1891 = vmatmul.mubr.f32.gmra.mxu0 %v962
        %v1892 = vpop.f32.mrf.mxu0
        %v1893 = vadd.f32 %v887, %v1892
        %v1894 = vpop.f32.mrf.mxu0
        %v1895 = vadd.f32 %v887, %v1894
        %1896 = vmatprep.mubr.f32.mxu0 0.0
        %1897 = vmatmul.mubr.f32.gmra.mxu0 %v965
        %v1898 = vpop.f32.mrf.mxu0
        %v1899 = vadd.f32 %v892, %v1898
        %v1900 = vpop.f32.mrf.mxu0
        %v1901 = vadd.f32 %v892, %v1900
        %1902 = vmatprep.mubr.f32.mxu0 0.0
        %1903 = vmatmul.mubr.f32.gmra.mxu0 %v968
        %v1904 = vpop.f32.mrf.mxu0
        %v1905 = vadd.f32 %v897, %v1904
        %v1906 = vpop.f32.mrf.mxu0
        %v1907 = vadd.f32 %v897, %v1906
        %1908 = vmatprep.mubr.f32.mxu0 0.0
        %1909 = vmatmul.mubr.f32.gmra.mxu0 %v971
        %v1910 = vpop.f32.mrf.mxu0
        %v1911 = vadd.f32 %v902, %v1910
        %v1912 = vpop.f32.mrf.mxu0
        %v1913 = vadd.f32 %v902, %v1912
        %1914 = vmatprep.mubr.f32.mxu0 0.0
        %1915 = vmatmul.mubr.f32.gmra.mxu0 %v974
        %v1916 = vpop.f32.mrf.mxu0
        %v1917 = vadd.f32 %v907, %v1916
        %v1918 = vpop.f32.mrf.mxu0
        %v1919 = vadd.f32 %v907, %v1918
        %1920 = vmatprep.mubr.f32.mxu0 0.0
        %1921 = vmatmul.mubr.f32.gmra.mxu0 %v977
        %v1922 = vpop.f32.mrf.mxu0
        %v1923 = vadd.f32 %v912, %v1922
        %v1924 = vpop.f32.mrf.mxu0
        %v1925 = vadd.f32 %v912, %v1924
        %1926 = vmatprep.mubr.f32.mxu0 0.0
        %1927 = vmatmul.mubr.f32.gmra.mxu0 %v980
        %v1928 = vpop.f32.mrf.mxu0
        %v1929 = vadd.f32 %v917, %v1928
        %v1930 = vpop.f32.mrf.mxu0
        %v1931 = vadd.f32 %v917, %v1930
        %1932 = vmatprep.mubr.f32.mxu0 0.0
        %1933 = vmatmul.mubr.f32.gmra.mxu0 %v983
        %v1934 = vpop.f32.mrf.mxu0
        %v1935 = vadd.f32 %v922, %v1934
        %v1936 = vpop.f32.mrf.mxu0
        %v1937 = vadd.f32 %v922, %v1936
        %1938 = vmatprep.mubr.f32.mxu0 0.0
        %1939 = vmatmul.mubr.f32.gmra.mxu0 %v986
        %v1940 = vpop.f32.mrf.mxu0
        %v1941 = vadd.f32 %v927, %v1940
        %v1942 = vpop.f32.mrf.mxu0
        %v1943 = vadd.f32 %v927, %v1942
        %1944 = vmatprep.mubr.f32.mxu0 0.0
        %1945 = vmatmul.mubr.f32.gmra.mxu0 %v989
        %v1946 = vpop.f32.mrf.mxu0
        %v1947 = vadd.f32 %v932, %v1946
        %v1948 = vpop.f32.mrf.mxu0
        %v1949 = vadd.f32 %v932, %v1948
        %1950 = vmatprep.mubr.f32.mxu0 0.0
        %1951 = vmatmul.mubr.f32.gmra.mxu0 %v992
        %v1952 = vpop.f32.mrf.mxu0
        %v1953 = vadd.f32 %v937, %v1952
        %v1954 = vpop.f32.mrf.mxu0
        %v1955 = vadd.f32 %v937, %v1954
        %1956 = vmatprep.mubr.f32.mxu0 0.0
        %1957 = vmatmul.mubr.f32.gmra.mxu0 %v995
        %v1958 = vpop.f32.mrf.mxu0
        %v1959 = vadd.f32 %v942, %v1958
        %v1960 = vpop.f32.mrf.mxu0
        %v1961 = vadd.f32 %v942, %v1960
        %1962 = vmatprep.mubr.f32.mxu0 0.0
        %1963 = vmatmul.mubr.f32.gmra.mxu0 %v998
        %v1964 = vpop.f32.mrf.mxu0
        %v1965 = vadd.f32 %v947, %v1964
        %v1966 = vpop.f32.mrf.mxu0
        %v1967 = vadd.f32 %v947, %v1966
        %1968 = vmatprep.mubr.f32.mxu0 0.0
        %1969 = vmatmul.mubr.f32.gmra.mxu0 %v1001
        %v1970 = vpop.f32.mrf.mxu0
        %v1971 = vadd.f32 %v952, %v1970
        %v1972 = vpop.f32.mrf.mxu0
        %v1973 = vadd.f32 %v952, %v1972
        %1974 = vdwg.mxu0
        %s1975 = scalar_lea.vmem %s823, 1024 [#allocation3]
        %1976 = vst [vmem:[%s1975] sm:$0xff] %v1881
        %1977 = vst [vmem:[%s1975 + $0x8] sm:$0xff] %v1883
        %1978 = vst [vmem:[%s1975 + $0x10] sm:$0xff] %v1887
        %1979 = vst [vmem:[%s1975 + $0x18] sm:$0xff] %v1889
        %1980 = vst [vmem:[%s1975 + $0x20] sm:$0xff] %v1893
        %1981 = vst [vmem:[%s1975 + $0x28] sm:$0xff] %v1895
        %1982 = vst [vmem:[%s1975 + $0x30] sm:$0xff] %v1899
        %1983 = vst [vmem:[%s1975 + $0x38] sm:$0xff] %v1901
        %1984 = vst [vmem:[%s1975 + $0x40] sm:$0xff] %v1905
        %1985 = vst [vmem:[%s1975 + $0x48] sm:$0xff] %v1907
        %1986 = vst [vmem:[%s1975 + $0x50] sm:$0xff] %v1911
        %1987 = vst [vmem:[%s1975 + $0x58] sm:$0xff] %v1913
        %1988 = vst [vmem:[%s1975 + $0x60] sm:$0xff] %v1917
        %1989 = vst [vmem:[%s1975 + $0x68] sm:$0xff] %v1919
        %1990 = vst [vmem:[%s1975 + $0x70] sm:$0xff] %v1923
        %1991 = vst [vmem:[%s1975 + $0x78] sm:$0xff] %v1925
        %1992 = vst [vmem:[%s1975 + $0x80] sm:$0xff] %v1929
        %1993 = vst [vmem:[%s1975 + $0x88] sm:$0xff] %v1931
        %1994 = vst [vmem:[%s1975 + $0x90] sm:$0xff] %v1935
        %1995 = vst [vmem:[%s1975 + $0x98] sm:$0xff] %v1937
        %1996 = vst [vmem:[%s1975 + $0xa0] sm:$0xff] %v1941
        %1997 = vst [vmem:[%s1975 + $0xa8] sm:$0xff] %v1943
        %1998 = vst [vmem:[%s1975 + $0xb0] sm:$0xff] %v1947
        %1999 = vst [vmem:[%s1975 + $0xb8] sm:$0xff] %v1949
        %2000 = vst [vmem:[%s1975 + $0xc0] sm:$0xff] %v1953
        %2001 = vst [vmem:[%s1975 + $0xc8] sm:$0xff] %v1955
        %2002 = vst [vmem:[%s1975 + $0xd0] sm:$0xff] %v1959
        %2003 = vst [vmem:[%s1975 + $0xd8] sm:$0xff] %v1961
        %2004 = vst [vmem:[%s1975 + $0xe0] sm:$0xff] %v1965
        %2005 = vst [vmem:[%s1975 + $0xe8] sm:$0xff] %v1967
        %2006 = vst [vmem:[%s1975 + $0xf0] sm:$0xff] %v1971
        %2007 = vst [vmem:[%s1975 + $0xf8] sm:$0xff] %v1973
        %s2008 = scalar_lea.vmem %s804, 320 [#allocation2]
        %v2009 = vld [vmem:[%s2008] sm:$0xff]
        %v2010 = vld [vmem:[%s2008 + $0x8] sm:$0xff]
        %v2011 = vld [vmem:[%s2008 + $0x10] sm:$0xff]
        %v2012 = vld [vmem:[%s2008 + $0x18] sm:$0xff]
        %v2013 = vld [vmem:[%s2008 + $0x20] sm:$0xff]
        %v2014 = vld [vmem:[%s2008 + $0x28] sm:$0xff]
        %v2015 = vld [vmem:[%s2008 + $0x30] sm:$0xff]
        %v2016 = vld [vmem:[%s2008 + $0x38] sm:$0xff]
        %2017 = vmatprep.subr.mxu0 0.0
        %2018 = vmatpush1.msra.mxu0 0.0
        %2019 = vmatprep.subr.mxu0 0.0
        %2020 = vmatpush1.msra.mxu0 0.0
        %2021 = vmatprep.subr.mxu0 0.0
        %2022 = vmatpush1.msra.mxu0 0.0
        %2023 = vmatprep.subr.mxu0 0.0
        %2024 = vmatpush1.msra.mxu0 0.0
        %2025 = vmatprep.subr.mxu0 0.0
        %2026 = vmatpush1.msra.mxu0 0.0
        %2027 = vmatprep.subr.mxu0 0.0
        %2028 = vmatpush1.msra.mxu0 0.0
        %2029 = vmatprep.subr.mxu0 0.0
        %2030 = vmatpush1.msra.mxu0 0.0
        %2031 = vmatprep.subr.mxu0 0.0
        %2032 = vmatpush1.msra.mxu0 0.0
        %2033 = vmatprep.subr.mxu0 0.0
        %2034 = vmatpush1.msra.mxu0 0.0
        %2035 = vmatprep.subr.mxu0 0.0
        %2036 = vmatpush1.msra.mxu0 0.0
        %2037 = vmatprep.subr.mxu0 0.0
        %2038 = vmatpush1.msra.mxu0 0.0
        %2039 = vmatprep.subr.mxu0 0.0
        %2040 = vmatpush1.msra.mxu0 0.0
        %2041 = vmatprep.subr.mxu0 %v2016
        %2042 = vmatpush1.msra.mxu0 %v2015
        %2043 = vmatprep.subr.mxu0 %v2014
        %2044 = vmatpush1.msra.mxu0 %v2013
        %2045 = vmatprep.subr.mxu0 %v2012
        %2046 = vmatpush1.msra.mxu0 %v2011
        %2047 = vmatprep.subr.mxu0 %v2010
        %2048 = vmatpush1.msra.mxu0 %v2009
        %2049 = vmatprep.subr.mxu0 0.0
        %2050 = vmatpush2.msra.mxu0 0.0
        %2051 = vmatprep.subr.mxu0 0.0
        %2052 = vmatpush2.msra.mxu0 0.0
        %2053 = vmatprep.subr.mxu0 0.0
        %2054 = vmatpush2.msra.mxu0 0.0
        %2055 = vmatprep.subr.mxu0 0.0
        %2056 = vmatpush2.msra.mxu0 0.0
        %2057 = vmatprep.subr.mxu0 0.0
        %2058 = vmatpush2.msra.mxu0 0.0
        %2059 = vmatprep.subr.mxu0 0.0
        %2060 = vmatpush2.msra.mxu0 0.0
        %2061 = vmatprep.subr.mxu0 0.0
        %2062 = vmatpush2.msra.mxu0 0.0
        %2063 = vmatprep.subr.mxu0 0.0
        %2064 = vmatpush2.msra.mxu0 0.0
        %2065 = vmatprep.subr.mxu0 0.0
        %2066 = vmatpush2.msra.mxu0 0.0
        %2067 = vmatprep.subr.mxu0 0.0
        %2068 = vmatpush2.msra.mxu0 0.0
        %2069 = vmatprep.subr.mxu0 0.0
        %2070 = vmatpush2.msra.mxu0 0.0
        %2071 = vmatprep.subr.mxu0 0.0
        %2072 = vmatpush2.msra.mxu0 0.0
        %2073 = vmatprep.subr.mxu0 0.0
        %2074 = vmatpush2.msra.mxu0 0.0
        %2075 = vmatprep.subr.mxu0 0.0
        %2076 = vmatpush2.msra.mxu0 0.0
        %2077 = vmatprep.subr.mxu0 0.0
        %2078 = vmatpush2.msra.mxu0 0.0
        %2079 = vmatprep.subr.mxu0 0.0
        %2080 = vmatpush2.msra.mxu0 0.0
        %2081 = vmatprep.mubr.f32.mxu0 0.0
        %2082 = vmatmul.mubr.f32.gmra.mxu0 %v956
        %v2083 = vpop.f32.mrf.mxu0
        %v2084 = vadd.f32 %v877, %v2083
        %v2085 = vpop.f32.mrf.mxu0
        %v2086 = vadd.f32 %v877, %v2085
        %2087 = vmatprep.mubr.f32.mxu0 0.0
        %2088 = vmatmul.mubr.f32.gmra.mxu0 %v959
        %v2089 = vpop.f32.mrf.mxu0
        %v2090 = vadd.f32 %v882, %v2089
        %v2091 = vpop.f32.mrf.mxu0
        %v2092 = vadd.f32 %v882, %v2091
        %2093 = vmatprep.mubr.f32.mxu0 0.0
        %2094 = vmatmul.mubr.f32.gmra.mxu0 %v962
        %v2095 = vpop.f32.mrf.mxu0
        %v2096 = vadd.f32 %v887, %v2095
        %v2097 = vpop.f32.mrf.mxu0
        %v2098 = vadd.f32 %v887, %v2097
        %2099 = vmatprep.mubr.f32.mxu0 0.0
        %2100 = vmatmul.mubr.f32.gmra.mxu0 %v965
        %v2101 = vpop.f32.mrf.mxu0
        %v2102 = vadd.f32 %v892, %v2101
        %v2103 = vpop.f32.mrf.mxu0
        %v2104 = vadd.f32 %v892, %v2103
        %2105 = vmatprep.mubr.f32.mxu0 0.0
        %2106 = vmatmul.mubr.f32.gmra.mxu0 %v968
        %v2107 = vpop.f32.mrf.mxu0
        %v2108 = vadd.f32 %v897, %v2107
        %v2109 = vpop.f32.mrf.mxu0
        %v2110 = vadd.f32 %v897, %v2109
        %2111 = vmatprep.mubr.f32.mxu0 0.0
        %2112 = vmatmul.mubr.f32.gmra.mxu0 %v971
        %v2113 = vpop.f32.mrf.mxu0
        %v2114 = vadd.f32 %v902, %v2113
        %v2115 = vpop.f32.mrf.mxu0
        %v2116 = vadd.f32 %v902, %v2115
        %2117 = vmatprep.mubr.f32.mxu0 0.0
        %2118 = vmatmul.mubr.f32.gmra.mxu0 %v974
        %v2119 = vpop.f32.mrf.mxu0
        %v2120 = vadd.f32 %v907, %v2119
        %v2121 = vpop.f32.mrf.mxu0
        %v2122 = vadd.f32 %v907, %v2121
        %2123 = vmatprep.mubr.f32.mxu0 0.0
        %2124 = vmatmul.mubr.f32.gmra.mxu0 %v977
        %v2125 = vpop.f32.mrf.mxu0
        %v2126 = vadd.f32 %v912, %v2125
        %v2127 = vpop.f32.mrf.mxu0
        %v2128 = vadd.f32 %v912, %v2127
        %2129 = vmatprep.mubr.f32.mxu0 0.0
        %2130 = vmatmul.mubr.f32.gmra.mxu0 %v980
        %v2131 = vpop.f32.mrf.mxu0
        %v2132 = vadd.f32 %v917, %v2131
        %v2133 = vpop.f32.mrf.mxu0
        %v2134 = vadd.f32 %v917, %v2133
        %2135 = vmatprep.mubr.f32.mxu0 0.0
        %2136 = vmatmul.mubr.f32.gmra.mxu0 %v983
        %v2137 = vpop.f32.mrf.mxu0
        %v2138 = vadd.f32 %v922, %v2137
        %v2139 = vpop.f32.mrf.mxu0
        %v2140 = vadd.f32 %v922, %v2139
        %2141 = vmatprep.mubr.f32.mxu0 0.0
        %2142 = vmatmul.mubr.f32.gmra.mxu0 %v986
        %v2143 = vpop.f32.mrf.mxu0
        %v2144 = vadd.f32 %v927, %v2143
        %v2145 = vpop.f32.mrf.mxu0
        %v2146 = vadd.f32 %v927, %v2145
        %2147 = vmatprep.mubr.f32.mxu0 0.0
        %2148 = vmatmul.mubr.f32.gmra.mxu0 %v989
        %v2149 = vpop.f32.mrf.mxu0
        %v2150 = vadd.f32 %v932, %v2149
        %v2151 = vpop.f32.mrf.mxu0
        %v2152 = vadd.f32 %v932, %v2151
        %2153 = vmatprep.mubr.f32.mxu0 0.0
        %2154 = vmatmul.mubr.f32.gmra.mxu0 %v992
        %v2155 = vpop.f32.mrf.mxu0
        %v2156 = vadd.f32 %v937, %v2155
        %v2157 = vpop.f32.mrf.mxu0
        %v2158 = vadd.f32 %v937, %v2157
        %2159 = vmatprep.mubr.f32.mxu0 0.0
        %2160 = vmatmul.mubr.f32.gmra.mxu0 %v995
        %v2161 = vpop.f32.mrf.mxu0
        %v2162 = vadd.f32 %v942, %v2161
        %v2163 = vpop.f32.mrf.mxu0
        %v2164 = vadd.f32 %v942, %v2163
        %2165 = vmatprep.mubr.f32.mxu0 0.0
        %2166 = vmatmul.mubr.f32.gmra.mxu0 %v998
        %v2167 = vpop.f32.mrf.mxu0
        %v2168 = vadd.f32 %v947, %v2167
        %v2169 = vpop.f32.mrf.mxu0
        %v2170 = vadd.f32 %v947, %v2169
        %2171 = vmatprep.mubr.f32.mxu0 0.0
        %2172 = vmatmul.mubr.f32.gmra.mxu0 %v1001
        %v2173 = vpop.f32.mrf.mxu0
        %v2174 = vadd.f32 %v952, %v2173
        %v2175 = vpop.f32.mrf.mxu0
        %v2176 = vadd.f32 %v952, %v2175
        %2177 = vdwg.mxu0
        %s2178 = scalar_lea.vmem %s823, 1280 [#allocation3]
        %2179 = vst [vmem:[%s2178] sm:$0xff] %v2084
        %2180 = vst [vmem:[%s2178 + $0x8] sm:$0xff] %v2086
        %2181 = vst [vmem:[%s2178 + $0x10] sm:$0xff] %v2090
        %2182 = vst [vmem:[%s2178 + $0x18] sm:$0xff] %v2092
        %2183 = vst [vmem:[%s2178 + $0x20] sm:$0xff] %v2096
        %2184 = vst [vmem:[%s2178 + $0x28] sm:$0xff] %v2098
        %2185 = vst [vmem:[%s2178 + $0x30] sm:$0xff] %v2102
        %2186 = vst [vmem:[%s2178 + $0x38] sm:$0xff] %v2104
        %2187 = vst [vmem:[%s2178 + $0x40] sm:$0xff] %v2108
        %2188 = vst [vmem:[%s2178 + $0x48] sm:$0xff] %v2110
        %2189 = vst [vmem:[%s2178 + $0x50] sm:$0xff] %v2114
        %2190 = vst [vmem:[%s2178 + $0x58] sm:$0xff] %v2116
        %2191 = vst [vmem:[%s2178 + $0x60] sm:$0xff] %v2120
        %2192 = vst [vmem:[%s2178 + $0x68] sm:$0xff] %v2122
        %2193 = vst [vmem:[%s2178 + $0x70] sm:$0xff] %v2126
        %2194 = vst [vmem:[%s2178 + $0x78] sm:$0xff] %v2128
        %2195 = vst [vmem:[%s2178 + $0x80] sm:$0xff] %v2132
        %2196 = vst [vmem:[%s2178 + $0x88] sm:$0xff] %v2134
        %2197 = vst [vmem:[%s2178 + $0x90] sm:$0xff] %v2138
        %2198 = vst [vmem:[%s2178 + $0x98] sm:$0xff] %v2140
        %2199 = vst [vmem:[%s2178 + $0xa0] sm:$0xff] %v2144
        %2200 = vst [vmem:[%s2178 + $0xa8] sm:$0xff] %v2146
        %2201 = vst [vmem:[%s2178 + $0xb0] sm:$0xff] %v2150
        %2202 = vst [vmem:[%s2178 + $0xb8] sm:$0xff] %v2152
        %2203 = vst [vmem:[%s2178 + $0xc0] sm:$0xff] %v2156
        %2204 = vst [vmem:[%s2178 + $0xc8] sm:$0xff] %v2158
        %2205 = vst [vmem:[%s2178 + $0xd0] sm:$0xff] %v2162
        %2206 = vst [vmem:[%s2178 + $0xd8] sm:$0xff] %v2164
        %2207 = vst [vmem:[%s2178 + $0xe0] sm:$0xff] %v2168
        %2208 = vst [vmem:[%s2178 + $0xe8] sm:$0xff] %v2170
        %2209 = vst [vmem:[%s2178 + $0xf0] sm:$0xff] %v2174
        %2210 = vst [vmem:[%s2178 + $0xf8] sm:$0xff] %v2176
        %s2211 = scalar_lea.vmem %s804, 384 [#allocation2]
        %v2212 = vld [vmem:[%s2211] sm:$0xff]
        %v2213 = vld [vmem:[%s2211 + $0x8] sm:$0xff]
        %v2214 = vld [vmem:[%s2211 + $0x10] sm:$0xff]
        %v2215 = vld [vmem:[%s2211 + $0x18] sm:$0xff]
        %v2216 = vld [vmem:[%s2211 + $0x20] sm:$0xff]
        %v2217 = vld [vmem:[%s2211 + $0x28] sm:$0xff]
        %v2218 = vld [vmem:[%s2211 + $0x30] sm:$0xff]
        %v2219 = vld [vmem:[%s2211 + $0x38] sm:$0xff]
        %2220 = vmatprep.subr.mxu0 0.0
        %2221 = vmatpush1.msra.mxu0 0.0
        %2222 = vmatprep.subr.mxu0 0.0
        %2223 = vmatpush1.msra.mxu0 0.0
        %2224 = vmatprep.subr.mxu0 0.0
        %2225 = vmatpush1.msra.mxu0 0.0
        %2226 = vmatprep.subr.mxu0 0.0
        %2227 = vmatpush1.msra.mxu0 0.0
        %2228 = vmatprep.subr.mxu0 0.0
        %2229 = vmatpush1.msra.mxu0 0.0
        %2230 = vmatprep.subr.mxu0 0.0
        %2231 = vmatpush1.msra.mxu0 0.0
        %2232 = vmatprep.subr.mxu0 0.0
        %2233 = vmatpush1.msra.mxu0 0.0
        %2234 = vmatprep.subr.mxu0 0.0
        %2235 = vmatpush1.msra.mxu0 0.0
        %2236 = vmatprep.subr.mxu0 0.0
        %2237 = vmatpush1.msra.mxu0 0.0
        %2238 = vmatprep.subr.mxu0 0.0
        %2239 = vmatpush1.msra.mxu0 0.0
        %2240 = vmatprep.subr.mxu0 0.0
        %2241 = vmatpush1.msra.mxu0 0.0
        %2242 = vmatprep.subr.mxu0 0.0
        %2243 = vmatpush1.msra.mxu0 0.0
        %2244 = vmatprep.subr.mxu0 %v2219
        %2245 = vmatpush1.msra.mxu0 %v2218
        %2246 = vmatprep.subr.mxu0 %v2217
        %2247 = vmatpush1.msra.mxu0 %v2216
        %2248 = vmatprep.subr.mxu0 %v2215
        %2249 = vmatpush1.msra.mxu0 %v2214
        %2250 = vmatprep.subr.mxu0 %v2213
        %2251 = vmatpush1.msra.mxu0 %v2212
        %2252 = vmatprep.subr.mxu0 0.0
        %2253 = vmatpush2.msra.mxu0 0.0
        %2254 = vmatprep.subr.mxu0 0.0
        %2255 = vmatpush2.msra.mxu0 0.0
        %2256 = vmatprep.subr.mxu0 0.0
        %2257 = vmatpush2.msra.mxu0 0.0
        %2258 = vmatprep.subr.mxu0 0.0
        %2259 = vmatpush2.msra.mxu0 0.0
        %2260 = vmatprep.subr.mxu0 0.0
        %2261 = vmatpush2.msra.mxu0 0.0
        %2262 = vmatprep.subr.mxu0 0.0
        %2263 = vmatpush2.msra.mxu0 0.0
        %2264 = vmatprep.subr.mxu0 0.0
        %2265 = vmatpush2.msra.mxu0 0.0
        %2266 = vmatprep.subr.mxu0 0.0
        %2267 = vmatpush2.msra.mxu0 0.0
        %2268 = vmatprep.subr.mxu0 0.0
        %2269 = vmatpush2.msra.mxu0 0.0
        %2270 = vmatprep.subr.mxu0 0.0
        %2271 = vmatpush2.msra.mxu0 0.0
        %2272 = vmatprep.subr.mxu0 0.0
        %2273 = vmatpush2.msra.mxu0 0.0
        %2274 = vmatprep.subr.mxu0 0.0
        %2275 = vmatpush2.msra.mxu0 0.0
        %2276 = vmatprep.subr.mxu0 0.0
        %2277 = vmatpush2.msra.mxu0 0.0
        %2278 = vmatprep.subr.mxu0 0.0
        %2279 = vmatpush2.msra.mxu0 0.0
        %2280 = vmatprep.subr.mxu0 0.0
        %2281 = vmatpush2.msra.mxu0 0.0
        %2282 = vmatprep.subr.mxu0 0.0
        %2283 = vmatpush2.msra.mxu0 0.0
        %2284 = vmatprep.mubr.f32.mxu0 0.0
        %2285 = vmatmul.mubr.f32.gmra.mxu0 %v956
        %v2286 = vpop.f32.mrf.mxu0
        %v2287 = vadd.f32 %v877, %v2286
        %v2288 = vpop.f32.mrf.mxu0
        %v2289 = vadd.f32 %v877, %v2288
        %2290 = vmatprep.mubr.f32.mxu0 0.0
        %2291 = vmatmul.mubr.f32.gmra.mxu0 %v959
        %v2292 = vpop.f32.mrf.mxu0
        %v2293 = vadd.f32 %v882, %v2292
        %v2294 = vpop.f32.mrf.mxu0
        %v2295 = vadd.f32 %v882, %v2294
        %2296 = vmatprep.mubr.f32.mxu0 0.0
        %2297 = vmatmul.mubr.f32.gmra.mxu0 %v962
        %v2298 = vpop.f32.mrf.mxu0
        %v2299 = vadd.f32 %v887, %v2298
        %v2300 = vpop.f32.mrf.mxu0
        %v2301 = vadd.f32 %v887, %v2300
        %2302 = vmatprep.mubr.f32.mxu0 0.0
        %2303 = vmatmul.mubr.f32.gmra.mxu0 %v965
        %v2304 = vpop.f32.mrf.mxu0
        %v2305 = vadd.f32 %v892, %v2304
        %v2306 = vpop.f32.mrf.mxu0
        %v2307 = vadd.f32 %v892, %v2306
        %2308 = vmatprep.mubr.f32.mxu0 0.0
        %2309 = vmatmul.mubr.f32.gmra.mxu0 %v968
        %v2310 = vpop.f32.mrf.mxu0
        %v2311 = vadd.f32 %v897, %v2310
        %v2312 = vpop.f32.mrf.mxu0
        %v2313 = vadd.f32 %v897, %v2312
        %2314 = vmatprep.mubr.f32.mxu0 0.0
        %2315 = vmatmul.mubr.f32.gmra.mxu0 %v971
        %v2316 = vpop.f32.mrf.mxu0
        %v2317 = vadd.f32 %v902, %v2316
        %v2318 = vpop.f32.mrf.mxu0
        %v2319 = vadd.f32 %v902, %v2318
        %2320 = vmatprep.mubr.f32.mxu0 0.0
        %2321 = vmatmul.mubr.f32.gmra.mxu0 %v974
        %v2322 = vpop.f32.mrf.mxu0
        %v2323 = vadd.f32 %v907, %v2322
        %v2324 = vpop.f32.mrf.mxu0
        %v2325 = vadd.f32 %v907, %v2324
        %2326 = vmatprep.mubr.f32.mxu0 0.0
        %2327 = vmatmul.mubr.f32.gmra.mxu0 %v977
        %v2328 = vpop.f32.mrf.mxu0
        %v2329 = vadd.f32 %v912, %v2328
        %v2330 = vpop.f32.mrf.mxu0
        %v2331 = vadd.f32 %v912, %v2330
        %2332 = vmatprep.mubr.f32.mxu0 0.0
        %2333 = vmatmul.mubr.f32.gmra.mxu0 %v980
        %v2334 = vpop.f32.mrf.mxu0
        %v2335 = vadd.f32 %v917, %v2334
        %v2336 = vpop.f32.mrf.mxu0
        %v2337 = vadd.f32 %v917, %v2336
        %2338 = vmatprep.mubr.f32.mxu0 0.0
        %2339 = vmatmul.mubr.f32.gmra.mxu0 %v983
        %v2340 = vpop.f32.mrf.mxu0
        %v2341 = vadd.f32 %v922, %v2340
        %v2342 = vpop.f32.mrf.mxu0
        %v2343 = vadd.f32 %v922, %v2342
        %2344 = vmatprep.mubr.f32.mxu0 0.0
        %2345 = vmatmul.mubr.f32.gmra.mxu0 %v986
        %v2346 = vpop.f32.mrf.mxu0
        %v2347 = vadd.f32 %v927, %v2346
        %v2348 = vpop.f32.mrf.mxu0
        %v2349 = vadd.f32 %v927, %v2348
        %2350 = vmatprep.mubr.f32.mxu0 0.0
        %2351 = vmatmul.mubr.f32.gmra.mxu0 %v989
        %v2352 = vpop.f32.mrf.mxu0
        %v2353 = vadd.f32 %v932, %v2352
        %v2354 = vpop.f32.mrf.mxu0
        %v2355 = vadd.f32 %v932, %v2354
        %2356 = vmatprep.mubr.f32.mxu0 0.0
        %2357 = vmatmul.mubr.f32.gmra.mxu0 %v992
        %v2358 = vpop.f32.mrf.mxu0
        %v2359 = vadd.f32 %v937, %v2358
        %v2360 = vpop.f32.mrf.mxu0
        %v2361 = vadd.f32 %v937, %v2360
        %2362 = vmatprep.mubr.f32.mxu0 0.0
        %2363 = vmatmul.mubr.f32.gmra.mxu0 %v995
        %v2364 = vpop.f32.mrf.mxu0
        %v2365 = vadd.f32 %v942, %v2364
        %v2366 = vpop.f32.mrf.mxu0
        %v2367 = vadd.f32 %v942, %v2366
        %2368 = vmatprep.mubr.f32.mxu0 0.0
        %2369 = vmatmul.mubr.f32.gmra.mxu0 %v998
        %v2370 = vpop.f32.mrf.mxu0
        %v2371 = vadd.f32 %v947, %v2370
        %v2372 = vpop.f32.mrf.mxu0
        %v2373 = vadd.f32 %v947, %v2372
        %2374 = vmatprep.mubr.f32.mxu0 0.0
        %2375 = vmatmul.mubr.f32.gmra.mxu0 %v1001
        %v2376 = vpop.f32.mrf.mxu0
        %v2377 = vadd.f32 %v952, %v2376
        %v2378 = vpop.f32.mrf.mxu0
        %v2379 = vadd.f32 %v952, %v2378
        %2380 = vdwg.mxu0
        %s2381 = scalar_lea.vmem %s823, 1536 [#allocation3]
        %2382 = vst [vmem:[%s2381] sm:$0xff] %v2287
        %2383 = vst [vmem:[%s2381 + $0x8] sm:$0xff] %v2289
        %2384 = vst [vmem:[%s2381 + $0x10] sm:$0xff] %v2293
        %2385 = vst [vmem:[%s2381 + $0x18] sm:$0xff] %v2295
        %2386 = vst [vmem:[%s2381 + $0x20] sm:$0xff] %v2299
        %2387 = vst [vmem:[%s2381 + $0x28] sm:$0xff] %v2301
        %2388 = vst [vmem:[%s2381 + $0x30] sm:$0xff] %v2305
        %2389 = vst [vmem:[%s2381 + $0x38] sm:$0xff] %v2307
        %2390 = vst [vmem:[%s2381 + $0x40] sm:$0xff] %v2311
        %2391 = vst [vmem:[%s2381 + $0x48] sm:$0xff] %v2313
        %2392 = vst [vmem:[%s2381 + $0x50] sm:$0xff] %v2317
        %2393 = vst [vmem:[%s2381 + $0x58] sm:$0xff] %v2319
        %2394 = vst [vmem:[%s2381 + $0x60] sm:$0xff] %v2323
        %2395 = vst [vmem:[%s2381 + $0x68] sm:$0xff] %v2325
        %2396 = vst [vmem:[%s2381 + $0x70] sm:$0xff] %v2329
        %2397 = vst [vmem:[%s2381 + $0x78] sm:$0xff] %v2331
        %2398 = vst [vmem:[%s2381 + $0x80] sm:$0xff] %v2335
        %2399 = vst [vmem:[%s2381 + $0x88] sm:$0xff] %v2337
        %2400 = vst [vmem:[%s2381 + $0x90] sm:$0xff] %v2341
        %2401 = vst [vmem:[%s2381 + $0x98] sm:$0xff] %v2343
        %2402 = vst [vmem:[%s2381 + $0xa0] sm:$0xff] %v2347
        %2403 = vst [vmem:[%s2381 + $0xa8] sm:$0xff] %v2349
        %2404 = vst [vmem:[%s2381 + $0xb0] sm:$0xff] %v2353
        %2405 = vst [vmem:[%s2381 + $0xb8] sm:$0xff] %v2355
        %2406 = vst [vmem:[%s2381 + $0xc0] sm:$0xff] %v2359
        %2407 = vst [vmem:[%s2381 + $0xc8] sm:$0xff] %v2361
        %2408 = vst [vmem:[%s2381 + $0xd0] sm:$0xff] %v2365
        %2409 = vst [vmem:[%s2381 + $0xd8] sm:$0xff] %v2367
        %2410 = vst [vmem:[%s2381 + $0xe0] sm:$0xff] %v2371
        %2411 = vst [vmem:[%s2381 + $0xe8] sm:$0xff] %v2373
        %2412 = vst [vmem:[%s2381 + $0xf0] sm:$0xff] %v2377
        %2413 = vst [vmem:[%s2381 + $0xf8] sm:$0xff] %v2379
        %s2414 = scalar_lea.vmem %s804, 448 [#allocation2]
        %v2415 = vld [vmem:[%s2414] sm:$0xff]
        %v2416 = vld [vmem:[%s2414 + $0x8] sm:$0xff]
        %v2417 = vld [vmem:[%s2414 + $0x10] sm:$0xff]
        %v2418 = vld [vmem:[%s2414 + $0x18] sm:$0xff]
        %v2419 = vld [vmem:[%s2414 + $0x20] sm:$0xff]
        %v2420 = vld [vmem:[%s2414 + $0x28] sm:$0xff]
        %v2421 = vld [vmem:[%s2414 + $0x30] sm:$0xff]
        %v2422 = vld [vmem:[%s2414 + $0x38] sm:$0xff]
        %2423 = vmatprep.subr.mxu0 0.0
        %2424 = vmatpush1.msra.mxu0 0.0
        %2425 = vmatprep.subr.mxu0 0.0
        %2426 = vmatpush1.msra.mxu0 0.0
        %2427 = vmatprep.subr.mxu0 0.0
        %2428 = vmatpush1.msra.mxu0 0.0
        %2429 = vmatprep.subr.mxu0 0.0
        %2430 = vmatpush1.msra.mxu0 0.0
        %2431 = vmatprep.subr.mxu0 0.0
        %2432 = vmatpush1.msra.mxu0 0.0
        %2433 = vmatprep.subr.mxu0 0.0
        %2434 = vmatpush1.msra.mxu0 0.0
        %2435 = vmatprep.subr.mxu0 0.0
        %2436 = vmatpush1.msra.mxu0 0.0
        %2437 = vmatprep.subr.mxu0 0.0
        %2438 = vmatpush1.msra.mxu0 0.0
        %2439 = vmatprep.subr.mxu0 0.0
        %2440 = vmatpush1.msra.mxu0 0.0
        %2441 = vmatprep.subr.mxu0 0.0
        %2442 = vmatpush1.msra.mxu0 0.0
        %2443 = vmatprep.subr.mxu0 0.0
        %2444 = vmatpush1.msra.mxu0 0.0
        %2445 = vmatprep.subr.mxu0 0.0
        %2446 = vmatpush1.msra.mxu0 0.0
        %2447 = vmatprep.subr.mxu0 %v2422
        %2448 = vmatpush1.msra.mxu0 %v2421
        %2449 = vmatprep.subr.mxu0 %v2420
        %2450 = vmatpush1.msra.mxu0 %v2419
        %2451 = vmatprep.subr.mxu0 %v2418
        %2452 = vmatpush1.msra.mxu0 %v2417
        %2453 = vmatprep.subr.mxu0 %v2416
        %2454 = vmatpush1.msra.mxu0 %v2415
        %2455 = vmatprep.subr.mxu0 0.0
        %2456 = vmatpush2.msra.mxu0 0.0
        %2457 = vmatprep.subr.mxu0 0.0
        %2458 = vmatpush2.msra.mxu0 0.0
        %2459 = vmatprep.subr.mxu0 0.0
        %2460 = vmatpush2.msra.mxu0 0.0
        %2461 = vmatprep.subr.mxu0 0.0
        %2462 = vmatpush2.msra.mxu0 0.0
        %2463 = vmatprep.subr.mxu0 0.0
        %2464 = vmatpush2.msra.mxu0 0.0
        %2465 = vmatprep.subr.mxu0 0.0
        %2466 = vmatpush2.msra.mxu0 0.0
        %2467 = vmatprep.subr.mxu0 0.0
        %2468 = vmatpush2.msra.mxu0 0.0
        %2469 = vmatprep.subr.mxu0 0.0
        %2470 = vmatpush2.msra.mxu0 0.0
        %2471 = vmatprep.subr.mxu0 0.0
        %2472 = vmatpush2.msra.mxu0 0.0
        %2473 = vmatprep.subr.mxu0 0.0
        %2474 = vmatpush2.msra.mxu0 0.0
        %2475 = vmatprep.subr.mxu0 0.0
        %2476 = vmatpush2.msra.mxu0 0.0
        %2477 = vmatprep.subr.mxu0 0.0
        %2478 = vmatpush2.msra.mxu0 0.0
        %2479 = vmatprep.subr.mxu0 0.0
        %2480 = vmatpush2.msra.mxu0 0.0
        %2481 = vmatprep.subr.mxu0 0.0
        %2482 = vmatpush2.msra.mxu0 0.0
        %2483 = vmatprep.subr.mxu0 0.0
        %2484 = vmatpush2.msra.mxu0 0.0
        %2485 = vmatprep.subr.mxu0 0.0
        %2486 = vmatpush2.msra.mxu0 0.0
        %2487 = vmatprep.mubr.f32.mxu0 0.0
        %2488 = vmatmul.mubr.f32.gmra.mxu0 %v956
        %v2489 = vpop.f32.mrf.mxu0
        %v2490 = vadd.f32 %v877, %v2489
        %v2491 = vpop.f32.mrf.mxu0
        %v2492 = vadd.f32 %v877, %v2491
        %2493 = vmatprep.mubr.f32.mxu0 0.0
        %2494 = vmatmul.mubr.f32.gmra.mxu0 %v959
        %v2495 = vpop.f32.mrf.mxu0
        %v2496 = vadd.f32 %v882, %v2495
        %v2497 = vpop.f32.mrf.mxu0
        %v2498 = vadd.f32 %v882, %v2497
        %2499 = vmatprep.mubr.f32.mxu0 0.0
        %2500 = vmatmul.mubr.f32.gmra.mxu0 %v962
        %v2501 = vpop.f32.mrf.mxu0
        %v2502 = vadd.f32 %v887, %v2501
        %v2503 = vpop.f32.mrf.mxu0
        %v2504 = vadd.f32 %v887, %v2503
        %2505 = vmatprep.mubr.f32.mxu0 0.0
        %2506 = vmatmul.mubr.f32.gmra.mxu0 %v965
        %v2507 = vpop.f32.mrf.mxu0
        %v2508 = vadd.f32 %v892, %v2507
        %v2509 = vpop.f32.mrf.mxu0
        %v2510 = vadd.f32 %v892, %v2509
        %2511 = vmatprep.mubr.f32.mxu0 0.0
        %2512 = vmatmul.mubr.f32.gmra.mxu0 %v968
        %v2513 = vpop.f32.mrf.mxu0
        %v2514 = vadd.f32 %v897, %v2513
        %v2515 = vpop.f32.mrf.mxu0
        %v2516 = vadd.f32 %v897, %v2515
        %2517 = vmatprep.mubr.f32.mxu0 0.0
        %2518 = vmatmul.mubr.f32.gmra.mxu0 %v971
        %v2519 = vpop.f32.mrf.mxu0
        %v2520 = vadd.f32 %v902, %v2519
        %v2521 = vpop.f32.mrf.mxu0
        %v2522 = vadd.f32 %v902, %v2521
        %2523 = vmatprep.mubr.f32.mxu0 0.0
        %2524 = vmatmul.mubr.f32.gmra.mxu0 %v974
        %v2525 = vpop.f32.mrf.mxu0
        %v2526 = vadd.f32 %v907, %v2525
        %v2527 = vpop.f32.mrf.mxu0
        %v2528 = vadd.f32 %v907, %v2527
        %2529 = vmatprep.mubr.f32.mxu0 0.0
        %2530 = vmatmul.mubr.f32.gmra.mxu0 %v977
        %v2531 = vpop.f32.mrf.mxu0
        %v2532 = vadd.f32 %v912, %v2531
        %v2533 = vpop.f32.mrf.mxu0
        %v2534 = vadd.f32 %v912, %v2533
        %2535 = vmatprep.mubr.f32.mxu0 0.0
        %2536 = vmatmul.mubr.f32.gmra.mxu0 %v980
        %v2537 = vpop.f32.mrf.mxu0
        %v2538 = vadd.f32 %v917, %v2537
        %v2539 = vpop.f32.mrf.mxu0
        %v2540 = vadd.f32 %v917, %v2539
        %2541 = vmatprep.mubr.f32.mxu0 0.0
        %2542 = vmatmul.mubr.f32.gmra.mxu0 %v983
        %v2543 = vpop.f32.mrf.mxu0
        %v2544 = vadd.f32 %v922, %v2543
        %v2545 = vpop.f32.mrf.mxu0
        %v2546 = vadd.f32 %v922, %v2545
        %2547 = vmatprep.mubr.f32.mxu0 0.0
        %2548 = vmatmul.mubr.f32.gmra.mxu0 %v986
        %v2549 = vpop.f32.mrf.mxu0
        %v2550 = vadd.f32 %v927, %v2549
        %v2551 = vpop.f32.mrf.mxu0
        %v2552 = vadd.f32 %v927, %v2551
        %2553 = vmatprep.mubr.f32.mxu0 0.0
        %2554 = vmatmul.mubr.f32.gmra.mxu0 %v989
        %v2555 = vpop.f32.mrf.mxu0
        %v2556 = vadd.f32 %v932, %v2555
        %v2557 = vpop.f32.mrf.mxu0
        %v2558 = vadd.f32 %v932, %v2557
        %2559 = vmatprep.mubr.f32.mxu0 0.0
        %2560 = vmatmul.mubr.f32.gmra.mxu0 %v992
        %v2561 = vpop.f32.mrf.mxu0
        %v2562 = vadd.f32 %v937, %v2561
        %v2563 = vpop.f32.mrf.mxu0
        %v2564 = vadd.f32 %v937, %v2563
        %2565 = vmatprep.mubr.f32.mxu0 0.0
        %2566 = vmatmul.mubr.f32.gmra.mxu0 %v995
        %v2567 = vpop.f32.mrf.mxu0
        %v2568 = vadd.f32 %v942, %v2567
        %v2569 = vpop.f32.mrf.mxu0
        %v2570 = vadd.f32 %v942, %v2569
        %2571 = vmatprep.mubr.f32.mxu0 0.0
        %2572 = vmatmul.mubr.f32.gmra.mxu0 %v998
        %v2573 = vpop.f32.mrf.mxu0
        %v2574 = vadd.f32 %v947, %v2573
        %v2575 = vpop.f32.mrf.mxu0
        %v2576 = vadd.f32 %v947, %v2575
        %2577 = vmatprep.mubr.f32.mxu0 0.0
        %2578 = vmatmul.mubr.f32.gmra.mxu0 %v1001
        %v2579 = vpop.f32.mrf.mxu0
        %v2580 = vadd.f32 %v952, %v2579
        %v2581 = vpop.f32.mrf.mxu0
        %v2582 = vadd.f32 %v952, %v2581
        %2583 = vdwg.mxu0
        %s2584 = scalar_lea.vmem %s823, 1792 [#allocation3]
        %2585 = vst [vmem:[%s2584] sm:$0xff] %v2490
        %2586 = vst [vmem:[%s2584 + $0x8] sm:$0xff] %v2492
        %2587 = vst [vmem:[%s2584 + $0x10] sm:$0xff] %v2496
        %2588 = vst [vmem:[%s2584 + $0x18] sm:$0xff] %v2498
        %2589 = vst [vmem:[%s2584 + $0x20] sm:$0xff] %v2502
        %2590 = vst [vmem:[%s2584 + $0x28] sm:$0xff] %v2504
        %2591 = vst [vmem:[%s2584 + $0x30] sm:$0xff] %v2508
        %2592 = vst [vmem:[%s2584 + $0x38] sm:$0xff] %v2510
        %2593 = vst [vmem:[%s2584 + $0x40] sm:$0xff] %v2514
        %2594 = vst [vmem:[%s2584 + $0x48] sm:$0xff] %v2516
        %2595 = vst [vmem:[%s2584 + $0x50] sm:$0xff] %v2520
        %2596 = vst [vmem:[%s2584 + $0x58] sm:$0xff] %v2522
        %2597 = vst [vmem:[%s2584 + $0x60] sm:$0xff] %v2526
        %2598 = vst [vmem:[%s2584 + $0x68] sm:$0xff] %v2528
        %2599 = vst [vmem:[%s2584 + $0x70] sm:$0xff] %v2532
        %2600 = vst [vmem:[%s2584 + $0x78] sm:$0xff] %v2534
        %2601 = vst [vmem:[%s2584 + $0x80] sm:$0xff] %v2538
        %2602 = vst [vmem:[%s2584 + $0x88] sm:$0xff] %v2540
        %2603 = vst [vmem:[%s2584 + $0x90] sm:$0xff] %v2544
        %2604 = vst [vmem:[%s2584 + $0x98] sm:$0xff] %v2546
        %2605 = vst [vmem:[%s2584 + $0xa0] sm:$0xff] %v2550
        %2606 = vst [vmem:[%s2584 + $0xa8] sm:$0xff] %v2552
        %2607 = vst [vmem:[%s2584 + $0xb0] sm:$0xff] %v2556
        %2608 = vst [vmem:[%s2584 + $0xb8] sm:$0xff] %v2558
        %2609 = vst [vmem:[%s2584 + $0xc0] sm:$0xff] %v2562
        %2610 = vst [vmem:[%s2584 + $0xc8] sm:$0xff] %v2564
        %2611 = vst [vmem:[%s2584 + $0xd0] sm:$0xff] %v2568
        %2612 = vst [vmem:[%s2584 + $0xd8] sm:$0xff] %v2570
        %2613 = vst [vmem:[%s2584 + $0xe0] sm:$0xff] %v2574
        %2614 = vst [vmem:[%s2584 + $0xe8] sm:$0xff] %v2576
        %2615 = vst [vmem:[%s2584 + $0xf0] sm:$0xff] %v2580
        %2616 = vst [vmem:[%s2584 + $0xf8] sm:$0xff] %v2582
        %s2617 = sand.u32 %s90, 1
        %s2618 = sand.u32 %s90, 1
        %s2619 = smul.addr %s2618, 2048
        %s2620 = scalar_lea.vmem [#allocation3], %s2619
        // Predicated region
        $region99: #{scan_linear.1} parent=93 // pred_check
          %p2621 = pneg %p100
        $region100: #{scan_linear.1} parent=93 // pred_check_branch
          %2623 = sbr.rel (%p2621) target = $region102
        $region101: #{scan_linear.1} parent=93 // pred_region
          %s2624 = smul.u32 2, %s14
          %s2625 = ssub.s32 3, %s2624
          %p2626 = scmp.lt.s32.totalorder %s2625, 2
          %s2627 = scalar_select %p2626, %s2625, 2
          %s2628 = smul.u32 16384, %s2627
          %p2629 = scmp.ne.s32.totalorder 0, %s2628
          %s2630 = smul.addr %s2624, 8
          %s2631 = scalar_lea.vmem %s3, %s2630
          %s2632 = smul.u32 %s2627, 8
          // Predicated region
          $region103: #{scan_linear.1} parent=101 // pred_check
            %p2633 = pneg %p2629
          $region104: #{scan_linear.1} parent=101 // pred_check_branch
            %2635 = sbr.rel (%p2633) target = $region106
          $region105: #{scan_linear.1} parent=101 // pred_region
            %p2636 = scmp.lt.u32.totalorder %s2632, 8
            %p2637 = pneg %p2636
            // Predicated region
            $region107: #{scan_linear.1} parent=105 // pred_check
              _
            $region108: #{scan_linear.1} parent=105 // pred_check_branch
              %2639 = sbr.rel (%p2636) target = $region110
            $region109: #{scan_linear.1} parent=105 // pred_region
              %s2909 = sand.u32 %s2632, 7
              %p2910 = scmp.eq.s32.totalorder %s2909, 0
              // Predicated region
              $region122: #{scan_linear.1} parent=109 // pred_check
                %p2911 = pneg %p2910
              $region123: #{scan_linear.1} parent=109 // pred_check_branch
                %2913 = sbr.rel (%p2911) target = $region125
              $region124: #{scan_linear.1} parent=109 // pred_region
                %s2914 = sshrl.u32 %s2632, 3
                // While loop
                $region126: #{scan_linear.1} parent=124 // loop_pre_header
                  _
                $region127: #{scan_linear.1} parent=124 // loop_header
                  %s2918 = sphi 0, %s2920
                  %p2919 = scmp.ge.s32.totalorder %s2918, %s2914
                  %s2923 = sphi 0, %s3184
                  %s2924 = sphi %s2620, %s3187
                  %s2925 = sphi %s2631, %s3188
                $region128: #{scan_linear.1} parent=124 // loop_header_branch
                  %2922 = sbr.rel (%p2919) target = $region132
                $region129: #{scan_linear.1} parent=124 // loop_body
                  %v2926 = vld [vmem:[%s2924] sm:$0xff]
                  %2927 = vst [vmem:[%s2925] sm:$0xff] %v2926
                  %v2928 = vld [vmem:[%s2924 + $0x10] sm:$0xff]
                  %2929 = vst [vmem:[%s2925 + $0x18] sm:$0xff] %v2928
                  %v2930 = vld [vmem:[%s2924 + $0x20] sm:$0xff]
                  %2931 = vst [vmem:[%s2925 + $0x30] sm:$0xff] %v2930
                  %v2932 = vld [vmem:[%s2924 + $0x30] sm:$0xff]
                  %2933 = vst [vmem:[%s2925 + $0x48] sm:$0xff] %v2932
                  %v2934 = vld [vmem:[%s2924 + $0x40] sm:$0xff]
                  %2935 = vst [vmem:[%s2925 + $0x60] sm:$0xff] %v2934
                  %v2936 = vld [vmem:[%s2924 + $0x50] sm:$0xff]
                  %2937 = vst [vmem:[%s2925 + $0x78] sm:$0xff] %v2936
                  %v2938 = vld [vmem:[%s2924 + $0x60] sm:$0xff]
                  %2939 = vst [vmem:[%s2925 + $0x90] sm:$0xff] %v2938
                  %v2940 = vld [vmem:[%s2924 + $0x70] sm:$0xff]
                  %2941 = vst [vmem:[%s2925 + $0xa8] sm:$0xff] %v2940
                  %v2942 = vld [vmem:[%s2924 + $0x80] sm:$0xff]
                  %2943 = vst [vmem:[%s2925 + $0xc0] sm:$0xff] %v2942
                  %v2944 = vld [vmem:[%s2924 + $0x90] sm:$0xff]
                  %2945 = vst [vmem:[%s2925 + $0xd8] sm:$0xff] %v2944
                  %v2946 = vld [vmem:[%s2924 + $0xa0] sm:$0xff]
                  %2947 = vst [vmem:[%s2925 + $0xf0] sm:$0xff] %v2946
                  %v2948 = vld [vmem:[%s2924 + $0xb0] sm:$0xff]
                  %2949 = vst [vmem:[%s2925 + $0x108] sm:$0xff] %v2948
                  %v2950 = vld [vmem:[%s2924 + $0xc0] sm:$0xff]
                  %2951 = vst [vmem:[%s2925 + $0x120] sm:$0xff] %v2950
                  %v2952 = vld [vmem:[%s2924 + $0xd0] sm:$0xff]
                  %2953 = vst [vmem:[%s2925 + $0x138] sm:$0xff] %v2952
                  %v2954 = vld [vmem:[%s2924 + $0xe0] sm:$0xff]
                  %2955 = vst [vmem:[%s2925 + $0x150] sm:$0xff] %v2954
                  %v2956 = vld [vmem:[%s2924 + $0xf0] sm:$0xff]
                  %2957 = vst [vmem:[%s2925 + $0x168] sm:$0xff] %v2956
                  %v2958 = vld [vmem:[%s2924 + $0x100] sm:$0xff]
                  %2959 = vst [vmem:[%s2925 + $0x180] sm:$0xff] %v2958
                  %v2960 = vld [vmem:[%s2924 + $0x110] sm:$0xff]
                  %2961 = vst [vmem:[%s2925 + $0x198] sm:$0xff] %v2960
                  %v2962 = vld [vmem:[%s2924 + $0x120] sm:$0xff]
                  %2963 = vst [vmem:[%s2925 + $0x1b0] sm:$0xff] %v2962
                  %v2964 = vld [vmem:[%s2924 + $0x130] sm:$0xff]
                  %2965 = vst [vmem:[%s2925 + $0x1c8] sm:$0xff] %v2964
                  %v2966 = vld [vmem:[%s2924 + $0x140] sm:$0xff]
                  %2967 = vst [vmem:[%s2925 + $0x1e0] sm:$0xff] %v2966
                  %v2968 = vld [vmem:[%s2924 + $0x150] sm:$0xff]
                  %2969 = vst [vmem:[%s2925 + $0x1f8] sm:$0xff] %v2968
                  %v2970 = vld [vmem:[%s2924 + $0x160] sm:$0xff]
                  %2971 = vst [vmem:[%s2925 + $0x210] sm:$0xff] %v2970
                  %v2972 = vld [vmem:[%s2924 + $0x170] sm:$0xff]
                  %2973 = vst [vmem:[%s2925 + $0x228] sm:$0xff] %v2972
                  %v2974 = vld [vmem:[%s2924 + $0x180] sm:$0xff]
                  %2975 = vst [vmem:[%s2925 + $0x240] sm:$0xff] %v2974
                  %v2976 = vld [vmem:[%s2924 + $0x190] sm:$0xff]
                  %2977 = vst [vmem:[%s2925 + $0x258] sm:$0xff] %v2976
                  %v2978 = vld [vmem:[%s2924 + $0x1a0] sm:$0xff]
                  %2979 = vst [vmem:[%s2925 + $0x270] sm:$0xff] %v2978
                  %v2980 = vld [vmem:[%s2924 + $0x1b0] sm:$0xff]
                  %2981 = vst [vmem:[%s2925 + $0x288] sm:$0xff] %v2980
                  %v2982 = vld [vmem:[%s2924 + $0x1c0] sm:$0xff]
                  %2983 = vst [vmem:[%s2925 + $0x2a0] sm:$0xff] %v2982
                  %v2984 = vld [vmem:[%s2924 + $0x1d0] sm:$0xff]
                  %2985 = vst [vmem:[%s2925 + $0x2b8] sm:$0xff] %v2984
                  %v2986 = vld [vmem:[%s2924 + $0x1e0] sm:$0xff]
                  %2987 = vst [vmem:[%s2925 + $0x2d0] sm:$0xff] %v2986
                  %v2988 = vld [vmem:[%s2924 + $0x1f0] sm:$0xff]
                  %2989 = vst [vmem:[%s2925 + $0x2e8] sm:$0xff] %v2988
                  %v2990 = vld [vmem:[%s2924 + $0x200] sm:$0xff]
                  %2991 = vst [vmem:[%s2925 + $0x300] sm:$0xff] %v2990
                  %v2992 = vld [vmem:[%s2924 + $0x210] sm:$0xff]
                  %2993 = vst [vmem:[%s2925 + $0x318] sm:$0xff] %v2992
                  %v2994 = vld [vmem:[%s2924 + $0x220] sm:$0xff]
                  %2995 = vst [vmem:[%s2925 + $0x330] sm:$0xff] %v2994
                  %v2996 = vld [vmem:[%s2924 + $0x230] sm:$0xff]
                  %2997 = vst [vmem:[%s2925 + $0x348] sm:$0xff] %v2996
                  %v2998 = vld [vmem:[%s2924 + $0x240] sm:$0xff]
                  %2999 = vst [vmem:[%s2925 + $0x360] sm:$0xff] %v2998
                  %v3000 = vld [vmem:[%s2924 + $0x250] sm:$0xff]
                  %3001 = vst [vmem:[%s2925 + $0x378] sm:$0xff] %v3000
                  %v3002 = vld [vmem:[%s2924 + $0x260] sm:$0xff]
                  %3003 = vst [vmem:[%s2925 + $0x390] sm:$0xff] %v3002
                  %v3004 = vld [vmem:[%s2924 + $0x270] sm:$0xff]
                  %3005 = vst [vmem:[%s2925 + $0x3a8] sm:$0xff] %v3004
                  %v3006 = vld [vmem:[%s2924 + $0x280] sm:$0xff]
                  %3007 = vst [vmem:[%s2925 + $0x3c0] sm:$0xff] %v3006
                  %v3008 = vld [vmem:[%s2924 + $0x290] sm:$0xff]
                  %3009 = vst [vmem:[%s2925 + $0x3d8] sm:$0xff] %v3008
                  %v3010 = vld [vmem:[%s2924 + $0x2a0] sm:$0xff]
                  %3011 = vst [vmem:[%s2925 + $0x3f0] sm:$0xff] %v3010
                  %v3012 = vld [vmem:[%s2924 + $0x2b0] sm:$0xff]
                  %3013 = vst [vmem:[%s2925 + $0x408] sm:$0xff] %v3012
                  %v3014 = vld [vmem:[%s2924 + $0x2c0] sm:$0xff]
                  %3015 = vst [vmem:[%s2925 + $0x420] sm:$0xff] %v3014
                  %v3016 = vld [vmem:[%s2924 + $0x2d0] sm:$0xff]
                  %3017 = vst [vmem:[%s2925 + $0x438] sm:$0xff] %v3016
                  %v3018 = vld [vmem:[%s2924 + $0x2e0] sm:$0xff]
                  %3019 = vst [vmem:[%s2925 + $0x450] sm:$0xff] %v3018
                  %v3020 = vld [vmem:[%s2924 + $0x2f0] sm:$0xff]
                  %3021 = vst [vmem:[%s2925 + $0x468] sm:$0xff] %v3020
                  %v3022 = vld [vmem:[%s2924 + $0x300] sm:$0xff]
                  %3023 = vst [vmem:[%s2925 + $0x480] sm:$0xff] %v3022
                  %v3024 = vld [vmem:[%s2924 + $0x310] sm:$0xff]
                  %3025 = vst [vmem:[%s2925 + $0x498] sm:$0xff] %v3024
                  %v3026 = vld [vmem:[%s2924 + $0x320] sm:$0xff]
                  %3027 = vst [vmem:[%s2925 + $0x4b0] sm:$0xff] %v3026
                  %v3028 = vld [vmem:[%s2924 + $0x330] sm:$0xff]
                  %3029 = vst [vmem:[%s2925 + $0x4c8] sm:$0xff] %v3028
                  %v3030 = vld [vmem:[%s2924 + $0x340] sm:$0xff]
                  %3031 = vst [vmem:[%s2925 + $0x4e0] sm:$0xff] %v3030
                  %v3032 = vld [vmem:[%s2924 + $0x350] sm:$0xff]
                  %3033 = vst [vmem:[%s2925 + $0x4f8] sm:$0xff] %v3032
                  %v3034 = vld [vmem:[%s2924 + $0x360] sm:$0xff]
                  %3035 = vst [vmem:[%s2925 + $0x510] sm:$0xff] %v3034
                  %v3036 = vld [vmem:[%s2924 + $0x370] sm:$0xff]
                  %3037 = vst [vmem:[%s2925 + $0x528] sm:$0xff] %v3036
                  %v3038 = vld [vmem:[%s2924 + $0x380] sm:$0xff]
                  %3039 = vst [vmem:[%s2925 + $0x540] sm:$0xff] %v3038
                  %v3040 = vld [vmem:[%s2924 + $0x390] sm:$0xff]
                  %3041 = vst [vmem:[%s2925 + $0x558] sm:$0xff] %v3040
                  %v3042 = vld [vmem:[%s2924 + $0x3a0] sm:$0xff]
                  %3043 = vst [vmem:[%s2925 + $0x570] sm:$0xff] %v3042
                  %v3044 = vld [vmem:[%s2924 + $0x3b0] sm:$0xff]
                  %3045 = vst [vmem:[%s2925 + $0x588] sm:$0xff] %v3044
                  %v3046 = vld [vmem:[%s2924 + $0x3c0] sm:$0xff]
                  %3047 = vst [vmem:[%s2925 + $0x5a0] sm:$0xff] %v3046
                  %v3048 = vld [vmem:[%s2924 + $0x3d0] sm:$0xff]
                  %3049 = vst [vmem:[%s2925 + $0x5b8] sm:$0xff] %v3048
                  %v3050 = vld [vmem:[%s2924 + $0x3e0] sm:$0xff]
                  %3051 = vst [vmem:[%s2925 + $0x5d0] sm:$0xff] %v3050
                  %v3052 = vld [vmem:[%s2924 + $0x3f0] sm:$0xff]
                  %3053 = vst [vmem:[%s2925 + $0x5e8] sm:$0xff] %v3052
                  %v3054 = vld [vmem:[%s2924 + $0x400] sm:$0xff]
                  %3055 = vst [vmem:[%s2925 + $0x600] sm:$0xff] %v3054
                  %v3056 = vld [vmem:[%s2924 + $0x410] sm:$0xff]
                  %3057 = vst [vmem:[%s2925 + $0x618] sm:$0xff] %v3056
                  %v3058 = vld [vmem:[%s2924 + $0x420] sm:$0xff]
                  %3059 = vst [vmem:[%s2925 + $0x630] sm:$0xff] %v3058
                  %v3060 = vld [vmem:[%s2924 + $0x430] sm:$0xff]
                  %3061 = vst [vmem:[%s2925 + $0x648] sm:$0xff] %v3060
                  %v3062 = vld [vmem:[%s2924 + $0x440] sm:$0xff]
                  %3063 = vst [vmem:[%s2925 + $0x660] sm:$0xff] %v3062
                  %v3064 = vld [vmem:[%s2924 + $0x450] sm:$0xff]
                  %3065 = vst [vmem:[%s2925 + $0x678] sm:$0xff] %v3064
                  %v3066 = vld [vmem:[%s2924 + $0x460] sm:$0xff]
                  %3067 = vst [vmem:[%s2925 + $0x690] sm:$0xff] %v3066
                  %v3068 = vld [vmem:[%s2924 + $0x470] sm:$0xff]
                  %3069 = vst [vmem:[%s2925 + $0x6a8] sm:$0xff] %v3068
                  %v3070 = vld [vmem:[%s2924 + $0x480] sm:$0xff]
                  %3071 = vst [vmem:[%s2925 + $0x6c0] sm:$0xff] %v3070
                  %v3072 = vld [vmem:[%s2924 + $0x490] sm:$0xff]
                  %3073 = vst [vmem:[%s2925 + $0x6d8] sm:$0xff] %v3072
                  %v3074 = vld [vmem:[%s2924 + $0x4a0] sm:$0xff]
                  %3075 = vst [vmem:[%s2925 + $0x6f0] sm:$0xff] %v3074
                  %v3076 = vld [vmem:[%s2924 + $0x4b0] sm:$0xff]
                  %3077 = vst [vmem:[%s2925 + $0x708] sm:$0xff] %v3076
                  %v3078 = vld [vmem:[%s2924 + $0x4c0] sm:$0xff]
                  %3079 = vst [vmem:[%s2925 + $0x720] sm:$0xff] %v3078
                  %v3080 = vld [vmem:[%s2924 + $0x4d0] sm:$0xff]
                  %3081 = vst [vmem:[%s2925 + $0x738] sm:$0xff] %v3080
                  %v3082 = vld [vmem:[%s2924 + $0x4e0] sm:$0xff]
                  %3083 = vst [vmem:[%s2925 + $0x750] sm:$0xff] %v3082
                  %v3084 = vld [vmem:[%s2924 + $0x4f0] sm:$0xff]
                  %3085 = vst [vmem:[%s2925 + $0x768] sm:$0xff] %v3084
                  %v3086 = vld [vmem:[%s2924 + $0x500] sm:$0xff]
                  %3087 = vst [vmem:[%s2925 + $0x780] sm:$0xff] %v3086
                  %v3088 = vld [vmem:[%s2924 + $0x510] sm:$0xff]
                  %3089 = vst [vmem:[%s2925 + $0x798] sm:$0xff] %v3088
                  %v3090 = vld [vmem:[%s2924 + $0x520] sm:$0xff]
                  %3091 = vst [vmem:[%s2925 + $0x7b0] sm:$0xff] %v3090
                  %v3092 = vld [vmem:[%s2924 + $0x530] sm:$0xff]
                  %3093 = vst [vmem:[%s2925 + $0x7c8] sm:$0xff] %v3092
                  %v3094 = vld [vmem:[%s2924 + $0x540] sm:$0xff]
                  %3095 = vst [vmem:[%s2925 + $0x7e0] sm:$0xff] %v3094
                  %v3096 = vld [vmem:[%s2924 + $0x550] sm:$0xff]
                  %3097 = vst [vmem:[%s2925 + $0x7f8] sm:$0xff] %v3096
                  %v3098 = vld [vmem:[%s2924 + $0x560] sm:$0xff]
                  %3099 = vst [vmem:[%s2925 + $0x810] sm:$0xff] %v3098
                  %v3100 = vld [vmem:[%s2924 + $0x570] sm:$0xff]
                  %3101 = vst [vmem:[%s2925 + $0x828] sm:$0xff] %v3100
                  %v3102 = vld [vmem:[%s2924 + $0x580] sm:$0xff]
                  %3103 = vst [vmem:[%s2925 + $0x840] sm:$0xff] %v3102
                  %v3104 = vld [vmem:[%s2924 + $0x590] sm:$0xff]
                  %3105 = vst [vmem:[%s2925 + $0x858] sm:$0xff] %v3104
                  %v3106 = vld [vmem:[%s2924 + $0x5a0] sm:$0xff]
                  %3107 = vst [vmem:[%s2925 + $0x870] sm:$0xff] %v3106
                  %v3108 = vld [vmem:[%s2924 + $0x5b0] sm:$0xff]
                  %3109 = vst [vmem:[%s2925 + $0x888] sm:$0xff] %v3108
                  %v3110 = vld [vmem:[%s2924 + $0x5c0] sm:$0xff]
                  %3111 = vst [vmem:[%s2925 + $0x8a0] sm:$0xff] %v3110
                  %v3112 = vld [vmem:[%s2924 + $0x5d0] sm:$0xff]
                  %3113 = vst [vmem:[%s2925 + $0x8b8] sm:$0xff] %v3112
                  %v3114 = vld [vmem:[%s2924 + $0x5e0] sm:$0xff]
                  %3115 = vst [vmem:[%s2925 + $0x8d0] sm:$0xff] %v3114
                  %v3116 = vld [vmem:[%s2924 + $0x5f0] sm:$0xff]
                  %3117 = vst [vmem:[%s2925 + $0x8e8] sm:$0xff] %v3116
                  %v3118 = vld [vmem:[%s2924 + $0x600] sm:$0xff]
                  %3119 = vst [vmem:[%s2925 + $0x900] sm:$0xff] %v3118
                  %v3120 = vld [vmem:[%s2924 + $0x610] sm:$0xff]
                  %3121 = vst [vmem:[%s2925 + $0x918] sm:$0xff] %v3120
                  %v3122 = vld [vmem:[%s2924 + $0x620] sm:$0xff]
                  %3123 = vst [vmem:[%s2925 + $0x930] sm:$0xff] %v3122
                  %v3124 = vld [vmem:[%s2924 + $0x630] sm:$0xff]
                  %3125 = vst [vmem:[%s2925 + $0x948] sm:$0xff] %v3124
                  %v3126 = vld [vmem:[%s2924 + $0x640] sm:$0xff]
                  %3127 = vst [vmem:[%s2925 + $0x960] sm:$0xff] %v3126
                  %v3128 = vld [vmem:[%s2924 + $0x650] sm:$0xff]
                  %3129 = vst [vmem:[%s2925 + $0x978] sm:$0xff] %v3128
                  %v3130 = vld [vmem:[%s2924 + $0x660] sm:$0xff]
                  %3131 = vst [vmem:[%s2925 + $0x990] sm:$0xff] %v3130
                  %v3132 = vld [vmem:[%s2924 + $0x670] sm:$0xff]
                  %3133 = vst [vmem:[%s2925 + $0x9a8] sm:$0xff] %v3132
                  %v3134 = vld [vmem:[%s2924 + $0x680] sm:$0xff]
                  %3135 = vst [vmem:[%s2925 + $0x9c0] sm:$0xff] %v3134
                  %v3136 = vld [vmem:[%s2924 + $0x690] sm:$0xff]
                  %3137 = vst [vmem:[%s2925 + $0x9d8] sm:$0xff] %v3136
                  %v3138 = vld [vmem:[%s2924 + $0x6a0] sm:$0xff]
                  %3139 = vst [vmem:[%s2925 + $0x9f0] sm:$0xff] %v3138
                  %v3140 = vld [vmem:[%s2924 + $0x6b0] sm:$0xff]
                  %3141 = vst [vmem:[%s2925 + $0xa08] sm:$0xff] %v3140
                  %v3142 = vld [vmem:[%s2924 + $0x6c0] sm:$0xff]
                  %3143 = vst [vmem:[%s2925 + $0xa20] sm:$0xff] %v3142
                  %v3144 = vld [vmem:[%s2924 + $0x6d0] sm:$0xff]
                  %3145 = vst [vmem:[%s2925 + $0xa38] sm:$0xff] %v3144
                  %v3146 = vld [vmem:[%s2924 + $0x6e0] sm:$0xff]
                  %3147 = vst [vmem:[%s2925 + $0xa50] sm:$0xff] %v3146
                  %v3148 = vld [vmem:[%s2924 + $0x6f0] sm:$0xff]
                  %3149 = vst [vmem:[%s2925 + $0xa68] sm:$0xff] %v3148
                  %v3150 = vld [vmem:[%s2924 + $0x700] sm:$0xff]
                  %3151 = vst [vmem:[%s2925 + $0xa80] sm:$0xff] %v3150
                  %v3152 = vld [vmem:[%s2924 + $0x710] sm:$0xff]
                  %3153 = vst [vmem:[%s2925 + $0xa98] sm:$0xff] %v3152
                  %v3154 = vld [vmem:[%s2924 + $0x720] sm:$0xff]
                  %3155 = vst [vmem:[%s2925 + $0xab0] sm:$0xff] %v3154
                  %v3156 = vld [vmem:[%s2924 + $0x730] sm:$0xff]
                  %3157 = vst [vmem:[%s2925 + $0xac8] sm:$0xff] %v3156
                  %v3158 = vld [vmem:[%s2924 + $0x740] sm:$0xff]
                  %3159 = vst [vmem:[%s2925 + $0xae0] sm:$0xff] %v3158
                  %v3160 = vld [vmem:[%s2924 + $0x750] sm:$0xff]
                  %3161 = vst [vmem:[%s2925 + $0xaf8] sm:$0xff] %v3160
                  %v3162 = vld [vmem:[%s2924 + $0x760] sm:$0xff]
                  %3163 = vst [vmem:[%s2925 + $0xb10] sm:$0xff] %v3162
                  %v3164 = vld [vmem:[%s2924 + $0x770] sm:$0xff]
                  %3165 = vst [vmem:[%s2925 + $0xb28] sm:$0xff] %v3164
                  %v3166 = vld [vmem:[%s2924 + $0x780] sm:$0xff]
                  %3167 = vst [vmem:[%s2925 + $0xb40] sm:$0xff] %v3166
                  %v3168 = vld [vmem:[%s2924 + $0x790] sm:$0xff]
                  %3169 = vst [vmem:[%s2925 + $0xb58] sm:$0xff] %v3168
                  %v3170 = vld [vmem:[%s2924 + $0x7a0] sm:$0xff]
                  %3171 = vst [vmem:[%s2925 + $0xb70] sm:$0xff] %v3170
                  %v3172 = vld [vmem:[%s2924 + $0x7b0] sm:$0xff]
                  %3173 = vst [vmem:[%s2925 + $0xb88] sm:$0xff] %v3172
                  %v3174 = vld [vmem:[%s2924 + $0x7c0] sm:$0xff]
                  %3175 = vst [vmem:[%s2925 + $0xba0] sm:$0xff] %v3174
                  %v3176 = vld [vmem:[%s2924 + $0x7d0] sm:$0xff]
                  %3177 = vst [vmem:[%s2925 + $0xbb8] sm:$0xff] %v3176
                  %v3178 = vld [vmem:[%s2924 + $0x7e0] sm:$0xff]
                  %3179 = vst [vmem:[%s2925 + $0xbd0] sm:$0xff] %v3178
                  %v3180 = vld [vmem:[%s2924 + $0x7f0] sm:$0xff]
                  %3181 = vst [vmem:[%s2925 + $0xbe8] sm:$0xff] %v3180
                  %s3182 = sadd.s32 1, %s2923
                  %p3183 = scmp.ge.s32.totalorder %s3182, %s2914
                  %s3184 = scalar_select %p3183, 0, %s3182
                  %s3185 = smul.u32 %s3184, 8
                  %s3186 = smul.u32 %s3184, 8
                  %s3187 = scalar_lea.vmem %s2620, %s3185 [#allocation3]
                  %s3188 = scalar_lea.vmem %s2631, %s3186
                $region130: #{scan_linear.1} parent=124 // loop_footer
                  %s2920 = sadd.s32 %s2918, 1
                $region131: #{scan_linear.1} parent=124 // loop_footer_branch
                  %2917 = sbr.rel target = $region127
                $region132: #{scan_linear.1} parent=124 // loop_exit
                  _
              $region125: #{scan_linear.1} parent=109 // pred_fallthru
                _
              %p3189 = pneg %p2910
              // Predicated region
              $region133: #{scan_linear.1} parent=109 // pred_check
                _
              $region134: #{scan_linear.1} parent=109 // pred_check_branch
                %3191 = sbr.rel (%p2910) target = $region136
              $region135: #{scan_linear.1} parent=109 // pred_region
                %s3192 = sand.u32 %s2632, 7
                %s3193 = ssub.s32 %s2632, %s3192
                %s3194 = scalar_lea.vmem %s2620, %s3193 [#allocation3]
                %s3195 = ssub.s32 %s2632, %s3192
                %s3196 = scalar_lea.vmem %s2631, %s3195
                %s3197 = sshrl.u32 %s2632, 3
                // While loop
                $region137: #{scan_linear.1} parent=135 // loop_pre_header
                  _
                $region138: #{scan_linear.1} parent=135 // loop_header
                  %s3201 = sphi 0, %s3203
                  %p3202 = scmp.ge.s32.totalorder %s3201, %s3197
                  %s3206 = sphi 0, %s3467
                  %s3207 = sphi %s2620, %s3470
                  %s3208 = sphi %s2631, %s3471
                $region139: #{scan_linear.1} parent=135 // loop_header_branch
                  %3205 = sbr.rel (%p3202) target = $region143
                $region140: #{scan_linear.1} parent=135 // loop_body
                  %v3209 = vld [vmem:[%s3207] sm:$0xff]
                  %3210 = vst [vmem:[%s3208] sm:$0xff] %v3209
                  %v3211 = vld [vmem:[%s3207 + $0x10] sm:$0xff]
                  %3212 = vst [vmem:[%s3208 + $0x18] sm:$0xff] %v3211
                  %v3213 = vld [vmem:[%s3207 + $0x20] sm:$0xff]
                  %3214 = vst [vmem:[%s3208 + $0x30] sm:$0xff] %v3213
                  %v3215 = vld [vmem:[%s3207 + $0x30] sm:$0xff]
                  %3216 = vst [vmem:[%s3208 + $0x48] sm:$0xff] %v3215
                  %v3217 = vld [vmem:[%s3207 + $0x40] sm:$0xff]
                  %3218 = vst [vmem:[%s3208 + $0x60] sm:$0xff] %v3217
                  %v3219 = vld [vmem:[%s3207 + $0x50] sm:$0xff]
                  %3220 = vst [vmem:[%s3208 + $0x78] sm:$0xff] %v3219
                  %v3221 = vld [vmem:[%s3207 + $0x60] sm:$0xff]
                  %3222 = vst [vmem:[%s3208 + $0x90] sm:$0xff] %v3221
                  %v3223 = vld [vmem:[%s3207 + $0x70] sm:$0xff]
                  %3224 = vst [vmem:[%s3208 + $0xa8] sm:$0xff] %v3223
                  %v3225 = vld [vmem:[%s3207 + $0x80] sm:$0xff]
                  %3226 = vst [vmem:[%s3208 + $0xc0] sm:$0xff] %v3225
                  %v3227 = vld [vmem:[%s3207 + $0x90] sm:$0xff]
                  %3228 = vst [vmem:[%s3208 + $0xd8] sm:$0xff] %v3227
                  %v3229 = vld [vmem:[%s3207 + $0xa0] sm:$0xff]
                  %3230 = vst [vmem:[%s3208 + $0xf0] sm:$0xff] %v3229
                  %v3231 = vld [vmem:[%s3207 + $0xb0] sm:$0xff]
                  %3232 = vst [vmem:[%s3208 + $0x108] sm:$0xff] %v3231
                  %v3233 = vld [vmem:[%s3207 + $0xc0] sm:$0xff]
                  %3234 = vst [vmem:[%s3208 + $0x120] sm:$0xff] %v3233
                  %v3235 = vld [vmem:[%s3207 + $0xd0] sm:$0xff]
                  %3236 = vst [vmem:[%s3208 + $0x138] sm:$0xff] %v3235
                  %v3237 = vld [vmem:[%s3207 + $0xe0] sm:$0xff]
                  %3238 = vst [vmem:[%s3208 + $0x150] sm:$0xff] %v3237
                  %v3239 = vld [vmem:[%s3207 + $0xf0] sm:$0xff]
                  %3240 = vst [vmem:[%s3208 + $0x168] sm:$0xff] %v3239
                  %v3241 = vld [vmem:[%s3207 + $0x100] sm:$0xff]
                  %3242 = vst [vmem:[%s3208 + $0x180] sm:$0xff] %v3241
                  %v3243 = vld [vmem:[%s3207 + $0x110] sm:$0xff]
                  %3244 = vst [vmem:[%s3208 + $0x198] sm:$0xff] %v3243
                  %v3245 = vld [vmem:[%s3207 + $0x120] sm:$0xff]
                  %3246 = vst [vmem:[%s3208 + $0x1b0] sm:$0xff] %v3245
                  %v3247 = vld [vmem:[%s3207 + $0x130] sm:$0xff]
                  %3248 = vst [vmem:[%s3208 + $0x1c8] sm:$0xff] %v3247
                  %v3249 = vld [vmem:[%s3207 + $0x140] sm:$0xff]
                  %3250 = vst [vmem:[%s3208 + $0x1e0] sm:$0xff] %v3249
                  %v3251 = vld [vmem:[%s3207 + $0x150] sm:$0xff]
                  %3252 = vst [vmem:[%s3208 + $0x1f8] sm:$0xff] %v3251
                  %v3253 = vld [vmem:[%s3207 + $0x160] sm:$0xff]
                  %3254 = vst [vmem:[%s3208 + $0x210] sm:$0xff] %v3253
                  %v3255 = vld [vmem:[%s3207 + $0x170] sm:$0xff]
                  %3256 = vst [vmem:[%s3208 + $0x228] sm:$0xff] %v3255
                  %v3257 = vld [vmem:[%s3207 + $0x180] sm:$0xff]
                  %3258 = vst [vmem:[%s3208 + $0x240] sm:$0xff] %v3257
                  %v3259 = vld [vmem:[%s3207 + $0x190] sm:$0xff]
                  %3260 = vst [vmem:[%s3208 + $0x258] sm:$0xff] %v3259
                  %v3261 = vld [vmem:[%s3207 + $0x1a0] sm:$0xff]
                  %3262 = vst [vmem:[%s3208 + $0x270] sm:$0xff] %v3261
                  %v3263 = vld [vmem:[%s3207 + $0x1b0] sm:$0xff]
                  %3264 = vst [vmem:[%s3208 + $0x288] sm:$0xff] %v3263
                  %v3265 = vld [vmem:[%s3207 + $0x1c0] sm:$0xff]
                  %3266 = vst [vmem:[%s3208 + $0x2a0] sm:$0xff] %v3265
                  %v3267 = vld [vmem:[%s3207 + $0x1d0] sm:$0xff]
                  %3268 = vst [vmem:[%s3208 + $0x2b8] sm:$0xff] %v3267
                  %v3269 = vld [vmem:[%s3207 + $0x1e0] sm:$0xff]
                  %3270 = vst [vmem:[%s3208 + $0x2d0] sm:$0xff] %v3269
                  %v3271 = vld [vmem:[%s3207 + $0x1f0] sm:$0xff]
                  %3272 = vst [vmem:[%s3208 + $0x2e8] sm:$0xff] %v3271
                  %v3273 = vld [vmem:[%s3207 + $0x200] sm:$0xff]
                  %3274 = vst [vmem:[%s3208 + $0x300] sm:$0xff] %v3273
                  %v3275 = vld [vmem:[%s3207 + $0x210] sm:$0xff]
                  %3276 = vst [vmem:[%s3208 + $0x318] sm:$0xff] %v3275
                  %v3277 = vld [vmem:[%s3207 + $0x220] sm:$0xff]
                  %3278 = vst [vmem:[%s3208 + $0x330] sm:$0xff] %v3277
                  %v3279 = vld [vmem:[%s3207 + $0x230] sm:$0xff]
                  %3280 = vst [vmem:[%s3208 + $0x348] sm:$0xff] %v3279
                  %v3281 = vld [vmem:[%s3207 + $0x240] sm:$0xff]
                  %3282 = vst [vmem:[%s3208 + $0x360] sm:$0xff] %v3281
                  %v3283 = vld [vmem:[%s3207 + $0x250] sm:$0xff]
                  %3284 = vst [vmem:[%s3208 + $0x378] sm:$0xff] %v3283
                  %v3285 = vld [vmem:[%s3207 + $0x260] sm:$0xff]
                  %3286 = vst [vmem:[%s3208 + $0x390] sm:$0xff] %v3285
                  %v3287 = vld [vmem:[%s3207 + $0x270] sm:$0xff]
                  %3288 = vst [vmem:[%s3208 + $0x3a8] sm:$0xff] %v3287
                  %v3289 = vld [vmem:[%s3207 + $0x280] sm:$0xff]
                  %3290 = vst [vmem:[%s3208 + $0x3c0] sm:$0xff] %v3289
                  %v3291 = vld [vmem:[%s3207 + $0x290] sm:$0xff]
                  %3292 = vst [vmem:[%s3208 + $0x3d8] sm:$0xff] %v3291
                  %v3293 = vld [vmem:[%s3207 + $0x2a0] sm:$0xff]
                  %3294 = vst [vmem:[%s3208 + $0x3f0] sm:$0xff] %v3293
                  %v3295 = vld [vmem:[%s3207 + $0x2b0] sm:$0xff]
                  %3296 = vst [vmem:[%s3208 + $0x408] sm:$0xff] %v3295
                  %v3297 = vld [vmem:[%s3207 + $0x2c0] sm:$0xff]
                  %3298 = vst [vmem:[%s3208 + $0x420] sm:$0xff] %v3297
                  %v3299 = vld [vmem:[%s3207 + $0x2d0] sm:$0xff]
                  %3300 = vst [vmem:[%s3208 + $0x438] sm:$0xff] %v3299
                  %v3301 = vld [vmem:[%s3207 + $0x2e0] sm:$0xff]
                  %3302 = vst [vmem:[%s3208 + $0x450] sm:$0xff] %v3301
                  %v3303 = vld [vmem:[%s3207 + $0x2f0] sm:$0xff]
                  %3304 = vst [vmem:[%s3208 + $0x468] sm:$0xff] %v3303
                  %v3305 = vld [vmem:[%s3207 + $0x300] sm:$0xff]
                  %3306 = vst [vmem:[%s3208 + $0x480] sm:$0xff] %v3305
                  %v3307 = vld [vmem:[%s3207 + $0x310] sm:$0xff]
                  %3308 = vst [vmem:[%s3208 + $0x498] sm:$0xff] %v3307
                  %v3309 = vld [vmem:[%s3207 + $0x320] sm:$0xff]
                  %3310 = vst [vmem:[%s3208 + $0x4b0] sm:$0xff] %v3309
                  %v3311 = vld [vmem:[%s3207 + $0x330] sm:$0xff]
                  %3312 = vst [vmem:[%s3208 + $0x4c8] sm:$0xff] %v3311
                  %v3313 = vld [vmem:[%s3207 + $0x340] sm:$0xff]
                  %3314 = vst [vmem:[%s3208 + $0x4e0] sm:$0xff] %v3313
                  %v3315 = vld [vmem:[%s3207 + $0x350] sm:$0xff]
                  %3316 = vst [vmem:[%s3208 + $0x4f8] sm:$0xff] %v3315
                  %v3317 = vld [vmem:[%s3207 + $0x360] sm:$0xff]
                  %3318 = vst [vmem:[%s3208 + $0x510] sm:$0xff] %v3317
                  %v3319 = vld [vmem:[%s3207 + $0x370] sm:$0xff]
                  %3320 = vst [vmem:[%s3208 + $0x528] sm:$0xff] %v3319
                  %v3321 = vld [vmem:[%s3207 + $0x380] sm:$0xff]
                  %3322 = vst [vmem:[%s3208 + $0x540] sm:$0xff] %v3321
                  %v3323 = vld [vmem:[%s3207 + $0x390] sm:$0xff]
                  %3324 = vst [vmem:[%s3208 + $0x558] sm:$0xff] %v3323
                  %v3325 = vld [vmem:[%s3207 + $0x3a0] sm:$0xff]
                  %3326 = vst [vmem:[%s3208 + $0x570] sm:$0xff] %v3325
                  %v3327 = vld [vmem:[%s3207 + $0x3b0] sm:$0xff]
                  %3328 = vst [vmem:[%s3208 + $0x588] sm:$0xff] %v3327
                  %v3329 = vld [vmem:[%s3207 + $0x3c0] sm:$0xff]
                  %3330 = vst [vmem:[%s3208 + $0x5a0] sm:$0xff] %v3329
                  %v3331 = vld [vmem:[%s3207 + $0x3d0] sm:$0xff]
                  %3332 = vst [vmem:[%s3208 + $0x5b8] sm:$0xff] %v3331
                  %v3333 = vld [vmem:[%s3207 + $0x3e0] sm:$0xff]
                  %3334 = vst [vmem:[%s3208 + $0x5d0] sm:$0xff] %v3333
                  %v3335 = vld [vmem:[%s3207 + $0x3f0] sm:$0xff]
                  %3336 = vst [vmem:[%s3208 + $0x5e8] sm:$0xff] %v3335
                  %v3337 = vld [vmem:[%s3207 + $0x400] sm:$0xff]
                  %3338 = vst [vmem:[%s3208 + $0x600] sm:$0xff] %v3337
                  %v3339 = vld [vmem:[%s3207 + $0x410] sm:$0xff]
                  %3340 = vst [vmem:[%s3208 + $0x618] sm:$0xff] %v3339
                  %v3341 = vld [vmem:[%s3207 + $0x420] sm:$0xff]
                  %3342 = vst [vmem:[%s3208 + $0x630] sm:$0xff] %v3341
                  %v3343 = vld [vmem:[%s3207 + $0x430] sm:$0xff]
                  %3344 = vst [vmem:[%s3208 + $0x648] sm:$0xff] %v3343
                  %v3345 = vld [vmem:[%s3207 + $0x440] sm:$0xff]
                  %3346 = vst [vmem:[%s3208 + $0x660] sm:$0xff] %v3345
                  %v3347 = vld [vmem:[%s3207 + $0x450] sm:$0xff]
                  %3348 = vst [vmem:[%s3208 + $0x678] sm:$0xff] %v3347
                  %v3349 = vld [vmem:[%s3207 + $0x460] sm:$0xff]
                  %3350 = vst [vmem:[%s3208 + $0x690] sm:$0xff] %v3349
                  %v3351 = vld [vmem:[%s3207 + $0x470] sm:$0xff]
                  %3352 = vst [vmem:[%s3208 + $0x6a8] sm:$0xff] %v3351
                  %v3353 = vld [vmem:[%s3207 + $0x480] sm:$0xff]
                  %3354 = vst [vmem:[%s3208 + $0x6c0] sm:$0xff] %v3353
                  %v3355 = vld [vmem:[%s3207 + $0x490] sm:$0xff]
                  %3356 = vst [vmem:[%s3208 + $0x6d8] sm:$0xff] %v3355
                  %v3357 = vld [vmem:[%s3207 + $0x4a0] sm:$0xff]
                  %3358 = vst [vmem:[%s3208 + $0x6f0] sm:$0xff] %v3357
                  %v3359 = vld [vmem:[%s3207 + $0x4b0] sm:$0xff]
                  %3360 = vst [vmem:[%s3208 + $0x708] sm:$0xff] %v3359
                  %v3361 = vld [vmem:[%s3207 + $0x4c0] sm:$0xff]
                  %3362 = vst [vmem:[%s3208 + $0x720] sm:$0xff] %v3361
                  %v3363 = vld [vmem:[%s3207 + $0x4d0] sm:$0xff]
                  %3364 = vst [vmem:[%s3208 + $0x738] sm:$0xff] %v3363
                  %v3365 = vld [vmem:[%s3207 + $0x4e0] sm:$0xff]
                  %3366 = vst [vmem:[%s3208 + $0x750] sm:$0xff] %v3365
                  %v3367 = vld [vmem:[%s3207 + $0x4f0] sm:$0xff]
                  %3368 = vst [vmem:[%s3208 + $0x768] sm:$0xff] %v3367
                  %v3369 = vld [vmem:[%s3207 + $0x500] sm:$0xff]
                  %3370 = vst [vmem:[%s3208 + $0x780] sm:$0xff] %v3369
                  %v3371 = vld [vmem:[%s3207 + $0x510] sm:$0xff]
                  %3372 = vst [vmem:[%s3208 + $0x798] sm:$0xff] %v3371
                  %v3373 = vld [vmem:[%s3207 + $0x520] sm:$0xff]
                  %3374 = vst [vmem:[%s3208 + $0x7b0] sm:$0xff] %v3373
                  %v3375 = vld [vmem:[%s3207 + $0x530] sm:$0xff]
                  %3376 = vst [vmem:[%s3208 + $0x7c8] sm:$0xff] %v3375
                  %v3377 = vld [vmem:[%s3207 + $0x540] sm:$0xff]
                  %3378 = vst [vmem:[%s3208 + $0x7e0] sm:$0xff] %v3377
                  %v3379 = vld [vmem:[%s3207 + $0x550] sm:$0xff]
                  %3380 = vst [vmem:[%s3208 + $0x7f8] sm:$0xff] %v3379
                  %v3381 = vld [vmem:[%s3207 + $0x560] sm:$0xff]
                  %3382 = vst [vmem:[%s3208 + $0x810] sm:$0xff] %v3381
                  %v3383 = vld [vmem:[%s3207 + $0x570] sm:$0xff]
                  %3384 = vst [vmem:[%s3208 + $0x828] sm:$0xff] %v3383
                  %v3385 = vld [vmem:[%s3207 + $0x580] sm:$0xff]
                  %3386 = vst [vmem:[%s3208 + $0x840] sm:$0xff] %v3385
                  %v3387 = vld [vmem:[%s3207 + $0x590] sm:$0xff]
                  %3388 = vst [vmem:[%s3208 + $0x858] sm:$0xff] %v3387
                  %v3389 = vld [vmem:[%s3207 + $0x5a0] sm:$0xff]
                  %3390 = vst [vmem:[%s3208 + $0x870] sm:$0xff] %v3389
                  %v3391 = vld [vmem:[%s3207 + $0x5b0] sm:$0xff]
                  %3392 = vst [vmem:[%s3208 + $0x888] sm:$0xff] %v3391
                  %v3393 = vld [vmem:[%s3207 + $0x5c0] sm:$0xff]
                  %3394 = vst [vmem:[%s3208 + $0x8a0] sm:$0xff] %v3393
                  %v3395 = vld [vmem:[%s3207 + $0x5d0] sm:$0xff]
                  %3396 = vst [vmem:[%s3208 + $0x8b8] sm:$0xff] %v3395
                  %v3397 = vld [vmem:[%s3207 + $0x5e0] sm:$0xff]
                  %3398 = vst [vmem:[%s3208 + $0x8d0] sm:$0xff] %v3397
                  %v3399 = vld [vmem:[%s3207 + $0x5f0] sm:$0xff]
                  %3400 = vst [vmem:[%s3208 + $0x8e8] sm:$0xff] %v3399
                  %v3401 = vld [vmem:[%s3207 + $0x600] sm:$0xff]
                  %3402 = vst [vmem:[%s3208 + $0x900] sm:$0xff] %v3401
                  %v3403 = vld [vmem:[%s3207 + $0x610] sm:$0xff]
                  %3404 = vst [vmem:[%s3208 + $0x918] sm:$0xff] %v3403
                  %v3405 = vld [vmem:[%s3207 + $0x620] sm:$0xff]
                  %3406 = vst [vmem:[%s3208 + $0x930] sm:$0xff] %v3405
                  %v3407 = vld [vmem:[%s3207 + $0x630] sm:$0xff]
                  %3408 = vst [vmem:[%s3208 + $0x948] sm:$0xff] %v3407
                  %v3409 = vld [vmem:[%s3207 + $0x640] sm:$0xff]
                  %3410 = vst [vmem:[%s3208 + $0x960] sm:$0xff] %v3409
                  %v3411 = vld [vmem:[%s3207 + $0x650] sm:$0xff]
                  %3412 = vst [vmem:[%s3208 + $0x978] sm:$0xff] %v3411
                  %v3413 = vld [vmem:[%s3207 + $0x660] sm:$0xff]
                  %3414 = vst [vmem:[%s3208 + $0x990] sm:$0xff] %v3413
                  %v3415 = vld [vmem:[%s3207 + $0x670] sm:$0xff]
                  %3416 = vst [vmem:[%s3208 + $0x9a8] sm:$0xff] %v3415
                  %v3417 = vld [vmem:[%s3207 + $0x680] sm:$0xff]
                  %3418 = vst [vmem:[%s3208 + $0x9c0] sm:$0xff] %v3417
                  %v3419 = vld [vmem:[%s3207 + $0x690] sm:$0xff]
                  %3420 = vst [vmem:[%s3208 + $0x9d8] sm:$0xff] %v3419
                  %v3421 = vld [vmem:[%s3207 + $0x6a0] sm:$0xff]
                  %3422 = vst [vmem:[%s3208 + $0x9f0] sm:$0xff] %v3421
                  %v3423 = vld [vmem:[%s3207 + $0x6b0] sm:$0xff]
                  %3424 = vst [vmem:[%s3208 + $0xa08] sm:$0xff] %v3423
                  %v3425 = vld [vmem:[%s3207 + $0x6c0] sm:$0xff]
                  %3426 = vst [vmem:[%s3208 + $0xa20] sm:$0xff] %v3425
                  %v3427 = vld [vmem:[%s3207 + $0x6d0] sm:$0xff]
                  %3428 = vst [vmem:[%s3208 + $0xa38] sm:$0xff] %v3427
                  %v3429 = vld [vmem:[%s3207 + $0x6e0] sm:$0xff]
                  %3430 = vst [vmem:[%s3208 + $0xa50] sm:$0xff] %v3429
                  %v3431 = vld [vmem:[%s3207 + $0x6f0] sm:$0xff]
                  %3432 = vst [vmem:[%s3208 + $0xa68] sm:$0xff] %v3431
                  %v3433 = vld [vmem:[%s3207 + $0x700] sm:$0xff]
                  %3434 = vst [vmem:[%s3208 + $0xa80] sm:$0xff] %v3433
                  %v3435 = vld [vmem:[%s3207 + $0x710] sm:$0xff]
                  %3436 = vst [vmem:[%s3208 + $0xa98] sm:$0xff] %v3435
                  %v3437 = vld [vmem:[%s3207 + $0x720] sm:$0xff]
                  %3438 = vst [vmem:[%s3208 + $0xab0] sm:$0xff] %v3437
                  %v3439 = vld [vmem:[%s3207 + $0x730] sm:$0xff]
                  %3440 = vst [vmem:[%s3208 + $0xac8] sm:$0xff] %v3439
                  %v3441 = vld [vmem:[%s3207 + $0x740] sm:$0xff]
                  %3442 = vst [vmem:[%s3208 + $0xae0] sm:$0xff] %v3441
                  %v3443 = vld [vmem:[%s3207 + $0x750] sm:$0xff]
                  %3444 = vst [vmem:[%s3208 + $0xaf8] sm:$0xff] %v3443
                  %v3445 = vld [vmem:[%s3207 + $0x760] sm:$0xff]
                  %3446 = vst [vmem:[%s3208 + $0xb10] sm:$0xff] %v3445
                  %v3447 = vld [vmem:[%s3207 + $0x770] sm:$0xff]
                  %3448 = vst [vmem:[%s3208 + $0xb28] sm:$0xff] %v3447
                  %v3449 = vld [vmem:[%s3207 + $0x780] sm:$0xff]
                  %3450 = vst [vmem:[%s3208 + $0xb40] sm:$0xff] %v3449
                  %v3451 = vld [vmem:[%s3207 + $0x790] sm:$0xff]
                  %3452 = vst [vmem:[%s3208 + $0xb58] sm:$0xff] %v3451
                  %v3453 = vld [vmem:[%s3207 + $0x7a0] sm:$0xff]
                  %3454 = vst [vmem:[%s3208 + $0xb70] sm:$0xff] %v3453
                  %v3455 = vld [vmem:[%s3207 + $0x7b0] sm:$0xff]
                  %3456 = vst [vmem:[%s3208 + $0xb88] sm:$0xff] %v3455
                  %v3457 = vld [vmem:[%s3207 + $0x7c0] sm:$0xff]
                  %3458 = vst [vmem:[%s3208 + $0xba0] sm:$0xff] %v3457
                  %v3459 = vld [vmem:[%s3207 + $0x7d0] sm:$0xff]
                  %3460 = vst [vmem:[%s3208 + $0xbb8] sm:$0xff] %v3459
                  %v3461 = vld [vmem:[%s3207 + $0x7e0] sm:$0xff]
                  %3462 = vst [vmem:[%s3208 + $0xbd0] sm:$0xff] %v3461
                  %v3463 = vld [vmem:[%s3207 + $0x7f0] sm:$0xff]
                  %3464 = vst [vmem:[%s3208 + $0xbe8] sm:$0xff] %v3463
                  %s3465 = sadd.s32 1, %s3206
                  %p3466 = scmp.ge.s32.totalorder %s3465, %s3197
                  %s3467 = scalar_select %p3466, 0, %s3465
                  %s3468 = smul.u32 %s3467, 8
                  %s3469 = smul.u32 %s3467, 8
                  %s3470 = scalar_lea.vmem %s2620, %s3468 [#allocation3]
                  %s3471 = scalar_lea.vmem %s2631, %s3469
                $region141: #{scan_linear.1} parent=135 // loop_footer
                  %s3203 = sadd.s32 %s3201, 1
                $region142: #{scan_linear.1} parent=135 // loop_footer_branch
                  %3200 = sbr.rel target = $region138
                $region143: #{scan_linear.1} parent=135 // loop_exit
                  _
                %s3472 = sshll.u32 1, %s3192
                %s3473 = ssub.s32 %s3472, 1
                loop: start=0, step=1, limit=1
                $region144: #{scan_linear.1} parent=135 // loop_pre_header
                  _
                $region145: #{scan_linear.1} parent=135 // loop_header
                  %s3475 = sphi 0, %s3479
                  %p3476 = scmp.ge.s32.totalorder %s3475, 1
                  %s3480 = sphi %s3194, %s3194
                  %s3481 = sphi %s3196, %s3196
                $region146: #{scan_linear.1} parent=135 // loop_header_branch
                  %3478 = sbr.rel (%p3476) target = $region150
                $region147: #{scan_linear.1} parent=135 // loop_body
                  %v3482 = vld [vmem:[%s3480] sm:%s3473]
                  %3483 = vst [vmem:[%s3481] sm:%s3473] %v3482
                  %v3484 = vld [vmem:[%s3480 + $0x10] sm:%s3473]
                  %3485 = vst [vmem:[%s3481 + $0x18] sm:%s3473] %v3484
                  %v3486 = vld [vmem:[%s3480 + $0x20] sm:%s3473]
                  %3487 = vst [vmem:[%s3481 + $0x30] sm:%s3473] %v3486
                  %v3488 = vld [vmem:[%s3480 + $0x30] sm:%s3473]
                  %3489 = vst [vmem:[%s3481 + $0x48] sm:%s3473] %v3488
                  %v3490 = vld [vmem:[%s3480 + $0x40] sm:%s3473]
                  %3491 = vst [vmem:[%s3481 + $0x60] sm:%s3473] %v3490
                  %v3492 = vld [vmem:[%s3480 + $0x50] sm:%s3473]
                  %3493 = vst [vmem:[%s3481 + $0x78] sm:%s3473] %v3492
                  %v3494 = vld [vmem:[%s3480 + $0x60] sm:%s3473]
                  %3495 = vst [vmem:[%s3481 + $0x90] sm:%s3473] %v3494
                  %v3496 = vld [vmem:[%s3480 + $0x70] sm:%s3473]
                  %3497 = vst [vmem:[%s3481 + $0xa8] sm:%s3473] %v3496
                  %v3498 = vld [vmem:[%s3480 + $0x80] sm:%s3473]
                  %3499 = vst [vmem:[%s3481 + $0xc0] sm:%s3473] %v3498
                  %v3500 = vld [vmem:[%s3480 + $0x90] sm:%s3473]
                  %3501 = vst [vmem:[%s3481 + $0xd8] sm:%s3473] %v3500
                  %v3502 = vld [vmem:[%s3480 + $0xa0] sm:%s3473]
                  %3503 = vst [vmem:[%s3481 + $0xf0] sm:%s3473] %v3502
                  %v3504 = vld [vmem:[%s3480 + $0xb0] sm:%s3473]
                  %3505 = vst [vmem:[%s3481 + $0x108] sm:%s3473] %v3504
                  %v3506 = vld [vmem:[%s3480 + $0xc0] sm:%s3473]
                  %3507 = vst [vmem:[%s3481 + $0x120] sm:%s3473] %v3506
                  %v3508 = vld [vmem:[%s3480 + $0xd0] sm:%s3473]
                  %3509 = vst [vmem:[%s3481 + $0x138] sm:%s3473] %v3508
                  %v3510 = vld [vmem:[%s3480 + $0xe0] sm:%s3473]
                  %3511 = vst [vmem:[%s3481 + $0x150] sm:%s3473] %v3510
                  %v3512 = vld [vmem:[%s3480 + $0xf0] sm:%s3473]
                  %3513 = vst [vmem:[%s3481 + $0x168] sm:%s3473] %v3512
                  %v3514 = vld [vmem:[%s3480 + $0x100] sm:%s3473]
                  %3515 = vst [vmem:[%s3481 + $0x180] sm:%s3473] %v3514
                  %v3516 = vld [vmem:[%s3480 + $0x110] sm:%s3473]
                  %3517 = vst [vmem:[%s3481 + $0x198] sm:%s3473] %v3516
                  %v3518 = vld [vmem:[%s3480 + $0x120] sm:%s3473]
                  %3519 = vst [vmem:[%s3481 + $0x1b0] sm:%s3473] %v3518
                  %v3520 = vld [vmem:[%s3480 + $0x130] sm:%s3473]
                  %3521 = vst [vmem:[%s3481 + $0x1c8] sm:%s3473] %v3520
                  %v3522 = vld [vmem:[%s3480 + $0x140] sm:%s3473]
                  %3523 = vst [vmem:[%s3481 + $0x1e0] sm:%s3473] %v3522
                  %v3524 = vld [vmem:[%s3480 + $0x150] sm:%s3473]
                  %3525 = vst [vmem:[%s3481 + $0x1f8] sm:%s3473] %v3524
                  %v3526 = vld [vmem:[%s3480 + $0x160] sm:%s3473]
                  %3527 = vst [vmem:[%s3481 + $0x210] sm:%s3473] %v3526
                  %v3528 = vld [vmem:[%s3480 + $0x170] sm:%s3473]
                  %3529 = vst [vmem:[%s3481 + $0x228] sm:%s3473] %v3528
                  %v3530 = vld [vmem:[%s3480 + $0x180] sm:%s3473]
                  %3531 = vst [vmem:[%s3481 + $0x240] sm:%s3473] %v3530
                  %v3532 = vld [vmem:[%s3480 + $0x190] sm:%s3473]
                  %3533 = vst [vmem:[%s3481 + $0x258] sm:%s3473] %v3532
                  %v3534 = vld [vmem:[%s3480 + $0x1a0] sm:%s3473]
                  %3535 = vst [vmem:[%s3481 + $0x270] sm:%s3473] %v3534
                  %v3536 = vld [vmem:[%s3480 + $0x1b0] sm:%s3473]
                  %3537 = vst [vmem:[%s3481 + $0x288] sm:%s3473] %v3536
                  %v3538 = vld [vmem:[%s3480 + $0x1c0] sm:%s3473]
                  %3539 = vst [vmem:[%s3481 + $0x2a0] sm:%s3473] %v3538
                  %v3540 = vld [vmem:[%s3480 + $0x1d0] sm:%s3473]
                  %3541 = vst [vmem:[%s3481 + $0x2b8] sm:%s3473] %v3540
                  %v3542 = vld [vmem:[%s3480 + $0x1e0] sm:%s3473]
                  %3543 = vst [vmem:[%s3481 + $0x2d0] sm:%s3473] %v3542
                  %v3544 = vld [vmem:[%s3480 + $0x1f0] sm:%s3473]
                  %3545 = vst [vmem:[%s3481 + $0x2e8] sm:%s3473] %v3544
                  %v3546 = vld [vmem:[%s3480 + $0x200] sm:%s3473]
                  %3547 = vst [vmem:[%s3481 + $0x300] sm:%s3473] %v3546
                  %v3548 = vld [vmem:[%s3480 + $0x210] sm:%s3473]
                  %3549 = vst [vmem:[%s3481 + $0x318] sm:%s3473] %v3548
                  %v3550 = vld [vmem:[%s3480 + $0x220] sm:%s3473]
                  %3551 = vst [vmem:[%s3481 + $0x330] sm:%s3473] %v3550
                  %v3552 = vld [vmem:[%s3480 + $0x230] sm:%s3473]
                  %3553 = vst [vmem:[%s3481 + $0x348] sm:%s3473] %v3552
                  %v3554 = vld [vmem:[%s3480 + $0x240] sm:%s3473]
                  %3555 = vst [vmem:[%s3481 + $0x360] sm:%s3473] %v3554
                  %v3556 = vld [vmem:[%s3480 + $0x250] sm:%s3473]
                  %3557 = vst [vmem:[%s3481 + $0x378] sm:%s3473] %v3556
                  %v3558 = vld [vmem:[%s3480 + $0x260] sm:%s3473]
                  %3559 = vst [vmem:[%s3481 + $0x390] sm:%s3473] %v3558
                  %v3560 = vld [vmem:[%s3480 + $0x270] sm:%s3473]
                  %3561 = vst [vmem:[%s3481 + $0x3a8] sm:%s3473] %v3560
                  %v3562 = vld [vmem:[%s3480 + $0x280] sm:%s3473]
                  %3563 = vst [vmem:[%s3481 + $0x3c0] sm:%s3473] %v3562
                  %v3564 = vld [vmem:[%s3480 + $0x290] sm:%s3473]
                  %3565 = vst [vmem:[%s3481 + $0x3d8] sm:%s3473] %v3564
                  %v3566 = vld [vmem:[%s3480 + $0x2a0] sm:%s3473]
                  %3567 = vst [vmem:[%s3481 + $0x3f0] sm:%s3473] %v3566
                  %v3568 = vld [vmem:[%s3480 + $0x2b0] sm:%s3473]
                  %3569 = vst [vmem:[%s3481 + $0x408] sm:%s3473] %v3568
                  %v3570 = vld [vmem:[%s3480 + $0x2c0] sm:%s3473]
                  %3571 = vst [vmem:[%s3481 + $0x420] sm:%s3473] %v3570
                  %v3572 = vld [vmem:[%s3480 + $0x2d0] sm:%s3473]
                  %3573 = vst [vmem:[%s3481 + $0x438] sm:%s3473] %v3572
                  %v3574 = vld [vmem:[%s3480 + $0x2e0] sm:%s3473]
                  %3575 = vst [vmem:[%s3481 + $0x450] sm:%s3473] %v3574
                  %v3576 = vld [vmem:[%s3480 + $0x2f0] sm:%s3473]
                  %3577 = vst [vmem:[%s3481 + $0x468] sm:%s3473] %v3576
                  %v3578 = vld [vmem:[%s3480 + $0x300] sm:%s3473]
                  %3579 = vst [vmem:[%s3481 + $0x480] sm:%s3473] %v3578
                  %v3580 = vld [vmem:[%s3480 + $0x310] sm:%s3473]
                  %3581 = vst [vmem:[%s3481 + $0x498] sm:%s3473] %v3580
                  %v3582 = vld [vmem:[%s3480 + $0x320] sm:%s3473]
                  %3583 = vst [vmem:[%s3481 + $0x4b0] sm:%s3473] %v3582
                  %v3584 = vld [vmem:[%s3480 + $0x330] sm:%s3473]
                  %3585 = vst [vmem:[%s3481 + $0x4c8] sm:%s3473] %v3584
                  %v3586 = vld [vmem:[%s3480 + $0x340] sm:%s3473]
                  %3587 = vst [vmem:[%s3481 + $0x4e0] sm:%s3473] %v3586
                  %v3588 = vld [vmem:[%s3480 + $0x350] sm:%s3473]
                  %3589 = vst [vmem:[%s3481 + $0x4f8] sm:%s3473] %v3588
                  %v3590 = vld [vmem:[%s3480 + $0x360] sm:%s3473]
                  %3591 = vst [vmem:[%s3481 + $0x510] sm:%s3473] %v3590
                  %v3592 = vld [vmem:[%s3480 + $0x370] sm:%s3473]
                  %3593 = vst [vmem:[%s3481 + $0x528] sm:%s3473] %v3592
                  %v3594 = vld [vmem:[%s3480 + $0x380] sm:%s3473]
                  %3595 = vst [vmem:[%s3481 + $0x540] sm:%s3473] %v3594
                  %v3596 = vld [vmem:[%s3480 + $0x390] sm:%s3473]
                  %3597 = vst [vmem:[%s3481 + $0x558] sm:%s3473] %v3596
                  %v3598 = vld [vmem:[%s3480 + $0x3a0] sm:%s3473]
                  %3599 = vst [vmem:[%s3481 + $0x570] sm:%s3473] %v3598
                  %v3600 = vld [vmem:[%s3480 + $0x3b0] sm:%s3473]
                  %3601 = vst [vmem:[%s3481 + $0x588] sm:%s3473] %v3600
                  %v3602 = vld [vmem:[%s3480 + $0x3c0] sm:%s3473]
                  %3603 = vst [vmem:[%s3481 + $0x5a0] sm:%s3473] %v3602
                  %v3604 = vld [vmem:[%s3480 + $0x3d0] sm:%s3473]
                  %3605 = vst [vmem:[%s3481 + $0x5b8] sm:%s3473] %v3604
                  %v3606 = vld [vmem:[%s3480 + $0x3e0] sm:%s3473]
                  %3607 = vst [vmem:[%s3481 + $0x5d0] sm:%s3473] %v3606
                  %v3608 = vld [vmem:[%s3480 + $0x3f0] sm:%s3473]
                  %3609 = vst [vmem:[%s3481 + $0x5e8] sm:%s3473] %v3608
                  %v3610 = vld [vmem:[%s3480 + $0x400] sm:%s3473]
                  %3611 = vst [vmem:[%s3481 + $0x600] sm:%s3473] %v3610
                  %v3612 = vld [vmem:[%s3480 + $0x410] sm:%s3473]
                  %3613 = vst [vmem:[%s3481 + $0x618] sm:%s3473] %v3612
                  %v3614 = vld [vmem:[%s3480 + $0x420] sm:%s3473]
                  %3615 = vst [vmem:[%s3481 + $0x630] sm:%s3473] %v3614
                  %v3616 = vld [vmem:[%s3480 + $0x430] sm:%s3473]
                  %3617 = vst [vmem:[%s3481 + $0x648] sm:%s3473] %v3616
                  %v3618 = vld [vmem:[%s3480 + $0x440] sm:%s3473]
                  %3619 = vst [vmem:[%s3481 + $0x660] sm:%s3473] %v3618
                  %v3620 = vld [vmem:[%s3480 + $0x450] sm:%s3473]
                  %3621 = vst [vmem:[%s3481 + $0x678] sm:%s3473] %v3620
                  %v3622 = vld [vmem:[%s3480 + $0x460] sm:%s3473]
                  %3623 = vst [vmem:[%s3481 + $0x690] sm:%s3473] %v3622
                  %v3624 = vld [vmem:[%s3480 + $0x470] sm:%s3473]
                  %3625 = vst [vmem:[%s3481 + $0x6a8] sm:%s3473] %v3624
                  %v3626 = vld [vmem:[%s3480 + $0x480] sm:%s3473]
                  %3627 = vst [vmem:[%s3481 + $0x6c0] sm:%s3473] %v3626
                  %v3628 = vld [vmem:[%s3480 + $0x490] sm:%s3473]
                  %3629 = vst [vmem:[%s3481 + $0x6d8] sm:%s3473] %v3628
                  %v3630 = vld [vmem:[%s3480 + $0x4a0] sm:%s3473]
                  %3631 = vst [vmem:[%s3481 + $0x6f0] sm:%s3473] %v3630
                  %v3632 = vld [vmem:[%s3480 + $0x4b0] sm:%s3473]
                  %3633 = vst [vmem:[%s3481 + $0x708] sm:%s3473] %v3632
                  %v3634 = vld [vmem:[%s3480 + $0x4c0] sm:%s3473]
                  %3635 = vst [vmem:[%s3481 + $0x720] sm:%s3473] %v3634
                  %v3636 = vld [vmem:[%s3480 + $0x4d0] sm:%s3473]
                  %3637 = vst [vmem:[%s3481 + $0x738] sm:%s3473] %v3636
                  %v3638 = vld [vmem:[%s3480 + $0x4e0] sm:%s3473]
                  %3639 = vst [vmem:[%s3481 + $0x750] sm:%s3473] %v3638
                  %v3640 = vld [vmem:[%s3480 + $0x4f0] sm:%s3473]
                  %3641 = vst [vmem:[%s3481 + $0x768] sm:%s3473] %v3640
                  %v3642 = vld [vmem:[%s3480 + $0x500] sm:%s3473]
                  %3643 = vst [vmem:[%s3481 + $0x780] sm:%s3473] %v3642
                  %v3644 = vld [vmem:[%s3480 + $0x510] sm:%s3473]
                  %3645 = vst [vmem:[%s3481 + $0x798] sm:%s3473] %v3644
                  %v3646 = vld [vmem:[%s3480 + $0x520] sm:%s3473]
                  %3647 = vst [vmem:[%s3481 + $0x7b0] sm:%s3473] %v3646
                  %v3648 = vld [vmem:[%s3480 + $0x530] sm:%s3473]
                  %3649 = vst [vmem:[%s3481 + $0x7c8] sm:%s3473] %v3648
                  %v3650 = vld [vmem:[%s3480 + $0x540] sm:%s3473]
                  %3651 = vst [vmem:[%s3481 + $0x7e0] sm:%s3473] %v3650
                  %v3652 = vld [vmem:[%s3480 + $0x550] sm:%s3473]
                  %3653 = vst [vmem:[%s3481 + $0x7f8] sm:%s3473] %v3652
                  %v3654 = vld [vmem:[%s3480 + $0x560] sm:%s3473]
                  %3655 = vst [vmem:[%s3481 + $0x810] sm:%s3473] %v3654
                  %v3656 = vld [vmem:[%s3480 + $0x570] sm:%s3473]
                  %3657 = vst [vmem:[%s3481 + $0x828] sm:%s3473] %v3656
                  %v3658 = vld [vmem:[%s3480 + $0x580] sm:%s3473]
                  %3659 = vst [vmem:[%s3481 + $0x840] sm:%s3473] %v3658
                  %v3660 = vld [vmem:[%s3480 + $0x590] sm:%s3473]
                  %3661 = vst [vmem:[%s3481 + $0x858] sm:%s3473] %v3660
                  %v3662 = vld [vmem:[%s3480 + $0x5a0] sm:%s3473]
                  %3663 = vst [vmem:[%s3481 + $0x870] sm:%s3473] %v3662
                  %v3664 = vld [vmem:[%s3480 + $0x5b0] sm:%s3473]
                  %3665 = vst [vmem:[%s3481 + $0x888] sm:%s3473] %v3664
                  %v3666 = vld [vmem:[%s3480 + $0x5c0] sm:%s3473]
                  %3667 = vst [vmem:[%s3481 + $0x8a0] sm:%s3473] %v3666
                  %v3668 = vld [vmem:[%s3480 + $0x5d0] sm:%s3473]
                  %3669 = vst [vmem:[%s3481 + $0x8b8] sm:%s3473] %v3668
                  %v3670 = vld [vmem:[%s3480 + $0x5e0] sm:%s3473]
                  %3671 = vst [vmem:[%s3481 + $0x8d0] sm:%s3473] %v3670
                  %v3672 = vld [vmem:[%s3480 + $0x5f0] sm:%s3473]
                  %3673 = vst [vmem:[%s3481 + $0x8e8] sm:%s3473] %v3672
                  %v3674 = vld [vmem:[%s3480 + $0x600] sm:%s3473]
                  %3675 = vst [vmem:[%s3481 + $0x900] sm:%s3473] %v3674
                  %v3676 = vld [vmem:[%s3480 + $0x610] sm:%s3473]
                  %3677 = vst [vmem:[%s3481 + $0x918] sm:%s3473] %v3676
                  %v3678 = vld [vmem:[%s3480 + $0x620] sm:%s3473]
                  %3679 = vst [vmem:[%s3481 + $0x930] sm:%s3473] %v3678
                  %v3680 = vld [vmem:[%s3480 + $0x630] sm:%s3473]
                  %3681 = vst [vmem:[%s3481 + $0x948] sm:%s3473] %v3680
                  %v3682 = vld [vmem:[%s3480 + $0x640] sm:%s3473]
                  %3683 = vst [vmem:[%s3481 + $0x960] sm:%s3473] %v3682
                  %v3684 = vld [vmem:[%s3480 + $0x650] sm:%s3473]
                  %3685 = vst [vmem:[%s3481 + $0x978] sm:%s3473] %v3684
                  %v3686 = vld [vmem:[%s3480 + $0x660] sm:%s3473]
                  %3687 = vst [vmem:[%s3481 + $0x990] sm:%s3473] %v3686
                  %v3688 = vld [vmem:[%s3480 + $0x670] sm:%s3473]
                  %3689 = vst [vmem:[%s3481 + $0x9a8] sm:%s3473] %v3688
                  %v3690 = vld [vmem:[%s3480 + $0x680] sm:%s3473]
                  %3691 = vst [vmem:[%s3481 + $0x9c0] sm:%s3473] %v3690
                  %v3692 = vld [vmem:[%s3480 + $0x690] sm:%s3473]
                  %3693 = vst [vmem:[%s3481 + $0x9d8] sm:%s3473] %v3692
                  %v3694 = vld [vmem:[%s3480 + $0x6a0] sm:%s3473]
                  %3695 = vst [vmem:[%s3481 + $0x9f0] sm:%s3473] %v3694
                  %v3696 = vld [vmem:[%s3480 + $0x6b0] sm:%s3473]
                  %3697 = vst [vmem:[%s3481 + $0xa08] sm:%s3473] %v3696
                  %v3698 = vld [vmem:[%s3480 + $0x6c0] sm:%s3473]
                  %3699 = vst [vmem:[%s3481 + $0xa20] sm:%s3473] %v3698
                  %v3700 = vld [vmem:[%s3480 + $0x6d0] sm:%s3473]
                  %3701 = vst [vmem:[%s3481 + $0xa38] sm:%s3473] %v3700
                  %v3702 = vld [vmem:[%s3480 + $0x6e0] sm:%s3473]
                  %3703 = vst [vmem:[%s3481 + $0xa50] sm:%s3473] %v3702
                  %v3704 = vld [vmem:[%s3480 + $0x6f0] sm:%s3473]
                  %3705 = vst [vmem:[%s3481 + $0xa68] sm:%s3473] %v3704
                  %v3706 = vld [vmem:[%s3480 + $0x700] sm:%s3473]
                  %3707 = vst [vmem:[%s3481 + $0xa80] sm:%s3473] %v3706
                  %v3708 = vld [vmem:[%s3480 + $0x710] sm:%s3473]
                  %3709 = vst [vmem:[%s3481 + $0xa98] sm:%s3473] %v3708
                  %v3710 = vld [vmem:[%s3480 + $0x720] sm:%s3473]
                  %3711 = vst [vmem:[%s3481 + $0xab0] sm:%s3473] %v3710
                  %v3712 = vld [vmem:[%s3480 + $0x730] sm:%s3473]
                  %3713 = vst [vmem:[%s3481 + $0xac8] sm:%s3473] %v3712
                  %v3714 = vld [vmem:[%s3480 + $0x740] sm:%s3473]
                  %3715 = vst [vmem:[%s3481 + $0xae0] sm:%s3473] %v3714
                  %v3716 = vld [vmem:[%s3480 + $0x750] sm:%s3473]
                  %3717 = vst [vmem:[%s3481 + $0xaf8] sm:%s3473] %v3716
                  %v3718 = vld [vmem:[%s3480 + $0x760] sm:%s3473]
                  %3719 = vst [vmem:[%s3481 + $0xb10] sm:%s3473] %v3718
                  %v3720 = vld [vmem:[%s3480 + $0x770] sm:%s3473]
                  %3721 = vst [vmem:[%s3481 + $0xb28] sm:%s3473] %v3720
                  %v3722 = vld [vmem:[%s3480 + $0x780] sm:%s3473]
                  %3723 = vst [vmem:[%s3481 + $0xb40] sm:%s3473] %v3722
                  %v3724 = vld [vmem:[%s3480 + $0x790] sm:%s3473]
                  %3725 = vst [vmem:[%s3481 + $0xb58] sm:%s3473] %v3724
                  %v3726 = vld [vmem:[%s3480 + $0x7a0] sm:%s3473]
                  %3727 = vst [vmem:[%s3481 + $0xb70] sm:%s3473] %v3726
                  %v3728 = vld [vmem:[%s3480 + $0x7b0] sm:%s3473]
                  %3729 = vst [vmem:[%s3481 + $0xb88] sm:%s3473] %v3728
                  %v3730 = vld [vmem:[%s3480 + $0x7c0] sm:%s3473]
                  %3731 = vst [vmem:[%s3481 + $0xba0] sm:%s3473] %v3730
                  %v3732 = vld [vmem:[%s3480 + $0x7d0] sm:%s3473]
                  %3733 = vst [vmem:[%s3481 + $0xbb8] sm:%s3473] %v3732
                  %v3734 = vld [vmem:[%s3480 + $0x7e0] sm:%s3473]
                  %3735 = vst [vmem:[%s3481 + $0xbd0] sm:%s3473] %v3734
                  %v3736 = vld [vmem:[%s3480 + $0x7f0] sm:%s3473]
                  %3737 = vst [vmem:[%s3481 + $0xbe8] sm:%s3473] %v3736
                $region148: #{scan_linear.1} parent=135 // loop_footer
                  %s3479 = sadd.s32 1, %s3475
                $region149: #{scan_linear.1} parent=135 // loop_footer_branch
                  %3474 = sbr.rel target = $region145
                $region150: #{scan_linear.1} parent=135 // loop_exit
                  _
              $region136: #{scan_linear.1} parent=109 // pred_fallthru
                _
            $region110: #{scan_linear.1} parent=105 // pred_fallthru
              _
            // Predicated region
            $region111: #{scan_linear.1} parent=105 // pred_check
              %p2640 = pneg %p2636
            $region112: #{scan_linear.1} parent=105 // pred_check_branch
              %2642 = sbr.rel (%p2640) target = $region114
            $region113: #{scan_linear.1} parent=105 // pred_region
              %s2643 = sshll.u32 1, %s2632
              %s2644 = ssub.s32 %s2643, 1
              loop: start=0, step=1, limit=1
              $region115: #{scan_linear.1} parent=113 // loop_pre_header
                _
              $region116: #{scan_linear.1} parent=113 // loop_header
                %s2646 = sphi 0, %s2650
                %p2647 = scmp.ge.s32.totalorder %s2646, 1
                %s2651 = sphi %s2620, %s2620
                %s2652 = sphi %s2631, %s2631
              $region117: #{scan_linear.1} parent=113 // loop_header_branch
                %2649 = sbr.rel (%p2647) target = $region121
              $region118: #{scan_linear.1} parent=113 // loop_body
                %v2653 = vld [vmem:[%s2651] sm:%s2644]
                %2654 = vst [vmem:[%s2652] sm:%s2644] %v2653
                %v2655 = vld [vmem:[%s2651 + $0x10] sm:%s2644]
                %2656 = vst [vmem:[%s2652 + $0x18] sm:%s2644] %v2655
                %v2657 = vld [vmem:[%s2651 + $0x20] sm:%s2644]
                %2658 = vst [vmem:[%s2652 + $0x30] sm:%s2644] %v2657
                %v2659 = vld [vmem:[%s2651 + $0x30] sm:%s2644]
                %2660 = vst [vmem:[%s2652 + $0x48] sm:%s2644] %v2659
                %v2661 = vld [vmem:[%s2651 + $0x40] sm:%s2644]
                %2662 = vst [vmem:[%s2652 + $0x60] sm:%s2644] %v2661
                %v2663 = vld [vmem:[%s2651 + $0x50] sm:%s2644]
                %2664 = vst [vmem:[%s2652 + $0x78] sm:%s2644] %v2663
                %v2665 = vld [vmem:[%s2651 + $0x60] sm:%s2644]
                %2666 = vst [vmem:[%s2652 + $0x90] sm:%s2644] %v2665
                %v2667 = vld [vmem:[%s2651 + $0x70] sm:%s2644]
                %2668 = vst [vmem:[%s2652 + $0xa8] sm:%s2644] %v2667
                %v2669 = vld [vmem:[%s2651 + $0x80] sm:%s2644]
                %2670 = vst [vmem:[%s2652 + $0xc0] sm:%s2644] %v2669
                %v2671 = vld [vmem:[%s2651 + $0x90] sm:%s2644]
                %2672 = vst [vmem:[%s2652 + $0xd8] sm:%s2644] %v2671
                %v2673 = vld [vmem:[%s2651 + $0xa0] sm:%s2644]
                %2674 = vst [vmem:[%s2652 + $0xf0] sm:%s2644] %v2673
                %v2675 = vld [vmem:[%s2651 + $0xb0] sm:%s2644]
                %2676 = vst [vmem:[%s2652 + $0x108] sm:%s2644] %v2675
                %v2677 = vld [vmem:[%s2651 + $0xc0] sm:%s2644]
                %2678 = vst [vmem:[%s2652 + $0x120] sm:%s2644] %v2677
                %v2679 = vld [vmem:[%s2651 + $0xd0] sm:%s2644]
                %2680 = vst [vmem:[%s2652 + $0x138] sm:%s2644] %v2679
                %v2681 = vld [vmem:[%s2651 + $0xe0] sm:%s2644]
                %2682 = vst [vmem:[%s2652 + $0x150] sm:%s2644] %v2681
                %v2683 = vld [vmem:[%s2651 + $0xf0] sm:%s2644]
                %2684 = vst [vmem:[%s2652 + $0x168] sm:%s2644] %v2683
                %v2685 = vld [vmem:[%s2651 + $0x100] sm:%s2644]
                %2686 = vst [vmem:[%s2652 + $0x180] sm:%s2644] %v2685
                %v2687 = vld [vmem:[%s2651 + $0x110] sm:%s2644]
                %2688 = vst [vmem:[%s2652 + $0x198] sm:%s2644] %v2687
                %v2689 = vld [vmem:[%s2651 + $0x120] sm:%s2644]
                %2690 = vst [vmem:[%s2652 + $0x1b0] sm:%s2644] %v2689
                %v2691 = vld [vmem:[%s2651 + $0x130] sm:%s2644]
                %2692 = vst [vmem:[%s2652 + $0x1c8] sm:%s2644] %v2691
                %v2693 = vld [vmem:[%s2651 + $0x140] sm:%s2644]
                %2694 = vst [vmem:[%s2652 + $0x1e0] sm:%s2644] %v2693
                %v2695 = vld [vmem:[%s2651 + $0x150] sm:%s2644]
                %2696 = vst [vmem:[%s2652 + $0x1f8] sm:%s2644] %v2695
                %v2697 = vld [vmem:[%s2651 + $0x160] sm:%s2644]
                %2698 = vst [vmem:[%s2652 + $0x210] sm:%s2644] %v2697
                %v2699 = vld [vmem:[%s2651 + $0x170] sm:%s2644]
                %2700 = vst [vmem:[%s2652 + $0x228] sm:%s2644] %v2699
                %v2701 = vld [vmem:[%s2651 + $0x180] sm:%s2644]
                %2702 = vst [vmem:[%s2652 + $0x240] sm:%s2644] %v2701
                %v2703 = vld [vmem:[%s2651 + $0x190] sm:%s2644]
                %2704 = vst [vmem:[%s2652 + $0x258] sm:%s2644] %v2703
                %v2705 = vld [vmem:[%s2651 + $0x1a0] sm:%s2644]
                %2706 = vst [vmem:[%s2652 + $0x270] sm:%s2644] %v2705
                %v2707 = vld [vmem:[%s2651 + $0x1b0] sm:%s2644]
                %2708 = vst [vmem:[%s2652 + $0x288] sm:%s2644] %v2707
                %v2709 = vld [vmem:[%s2651 + $0x1c0] sm:%s2644]
                %2710 = vst [vmem:[%s2652 + $0x2a0] sm:%s2644] %v2709
                %v2711 = vld [vmem:[%s2651 + $0x1d0] sm:%s2644]
                %2712 = vst [vmem:[%s2652 + $0x2b8] sm:%s2644] %v2711
                %v2713 = vld [vmem:[%s2651 + $0x1e0] sm:%s2644]
                %2714 = vst [vmem:[%s2652 + $0x2d0] sm:%s2644] %v2713
                %v2715 = vld [vmem:[%s2651 + $0x1f0] sm:%s2644]
                %2716 = vst [vmem:[%s2652 + $0x2e8] sm:%s2644] %v2715
                %v2717 = vld [vmem:[%s2651 + $0x200] sm:%s2644]
                %2718 = vst [vmem:[%s2652 + $0x300] sm:%s2644] %v2717
                %v2719 = vld [vmem:[%s2651 + $0x210] sm:%s2644]
                %2720 = vst [vmem:[%s2652 + $0x318] sm:%s2644] %v2719
                %v2721 = vld [vmem:[%s2651 + $0x220] sm:%s2644]
                %2722 = vst [vmem:[%s2652 + $0x330] sm:%s2644] %v2721
                %v2723 = vld [vmem:[%s2651 + $0x230] sm:%s2644]
                %2724 = vst [vmem:[%s2652 + $0x348] sm:%s2644] %v2723
                %v2725 = vld [vmem:[%s2651 + $0x240] sm:%s2644]
                %2726 = vst [vmem:[%s2652 + $0x360] sm:%s2644] %v2725
                %v2727 = vld [vmem:[%s2651 + $0x250] sm:%s2644]
                %2728 = vst [vmem:[%s2652 + $0x378] sm:%s2644] %v2727
                %v2729 = vld [vmem:[%s2651 + $0x260] sm:%s2644]
                %2730 = vst [vmem:[%s2652 + $0x390] sm:%s2644] %v2729
                %v2731 = vld [vmem:[%s2651 + $0x270] sm:%s2644]
                %2732 = vst [vmem:[%s2652 + $0x3a8] sm:%s2644] %v2731
                %v2733 = vld [vmem:[%s2651 + $0x280] sm:%s2644]
                %2734 = vst [vmem:[%s2652 + $0x3c0] sm:%s2644] %v2733
                %v2735 = vld [vmem:[%s2651 + $0x290] sm:%s2644]
                %2736 = vst [vmem:[%s2652 + $0x3d8] sm:%s2644] %v2735
                %v2737 = vld [vmem:[%s2651 + $0x2a0] sm:%s2644]
                %2738 = vst [vmem:[%s2652 + $0x3f0] sm:%s2644] %v2737
                %v2739 = vld [vmem:[%s2651 + $0x2b0] sm:%s2644]
                %2740 = vst [vmem:[%s2652 + $0x408] sm:%s2644] %v2739
                %v2741 = vld [vmem:[%s2651 + $0x2c0] sm:%s2644]
                %2742 = vst [vmem:[%s2652 + $0x420] sm:%s2644] %v2741
                %v2743 = vld [vmem:[%s2651 + $0x2d0] sm:%s2644]
                %2744 = vst [vmem:[%s2652 + $0x438] sm:%s2644] %v2743
                %v2745 = vld [vmem:[%s2651 + $0x2e0] sm:%s2644]
                %2746 = vst [vmem:[%s2652 + $0x450] sm:%s2644] %v2745
                %v2747 = vld [vmem:[%s2651 + $0x2f0] sm:%s2644]
                %2748 = vst [vmem:[%s2652 + $0x468] sm:%s2644] %v2747
                %v2749 = vld [vmem:[%s2651 + $0x300] sm:%s2644]
                %2750 = vst [vmem:[%s2652 + $0x480] sm:%s2644] %v2749
                %v2751 = vld [vmem:[%s2651 + $0x310] sm:%s2644]
                %2752 = vst [vmem:[%s2652 + $0x498] sm:%s2644] %v2751
                %v2753 = vld [vmem:[%s2651 + $0x320] sm:%s2644]
                %2754 = vst [vmem:[%s2652 + $0x4b0] sm:%s2644] %v2753
                %v2755 = vld [vmem:[%s2651 + $0x330] sm:%s2644]
                %2756 = vst [vmem:[%s2652 + $0x4c8] sm:%s2644] %v2755
                %v2757 = vld [vmem:[%s2651 + $0x340] sm:%s2644]
                %2758 = vst [vmem:[%s2652 + $0x4e0] sm:%s2644] %v2757
                %v2759 = vld [vmem:[%s2651 + $0x350] sm:%s2644]
                %2760 = vst [vmem:[%s2652 + $0x4f8] sm:%s2644] %v2759
                %v2761 = vld [vmem:[%s2651 + $0x360] sm:%s2644]
                %2762 = vst [vmem:[%s2652 + $0x510] sm:%s2644] %v2761
                %v2763 = vld [vmem:[%s2651 + $0x370] sm:%s2644]
                %2764 = vst [vmem:[%s2652 + $0x528] sm:%s2644] %v2763
                %v2765 = vld [vmem:[%s2651 + $0x380] sm:%s2644]
                %2766 = vst [vmem:[%s2652 + $0x540] sm:%s2644] %v2765
                %v2767 = vld [vmem:[%s2651 + $0x390] sm:%s2644]
                %2768 = vst [vmem:[%s2652 + $0x558] sm:%s2644] %v2767
                %v2769 = vld [vmem:[%s2651 + $0x3a0] sm:%s2644]
                %2770 = vst [vmem:[%s2652 + $0x570] sm:%s2644] %v2769
                %v2771 = vld [vmem:[%s2651 + $0x3b0] sm:%s2644]
                %2772 = vst [vmem:[%s2652 + $0x588] sm:%s2644] %v2771
                %v2773 = vld [vmem:[%s2651 + $0x3c0] sm:%s2644]
                %2774 = vst [vmem:[%s2652 + $0x5a0] sm:%s2644] %v2773
                %v2775 = vld [vmem:[%s2651 + $0x3d0] sm:%s2644]
                %2776 = vst [vmem:[%s2652 + $0x5b8] sm:%s2644] %v2775
                %v2777 = vld [vmem:[%s2651 + $0x3e0] sm:%s2644]
                %2778 = vst [vmem:[%s2652 + $0x5d0] sm:%s2644] %v2777
                %v2779 = vld [vmem:[%s2651 + $0x3f0] sm:%s2644]
                %2780 = vst [vmem:[%s2652 + $0x5e8] sm:%s2644] %v2779
                %v2781 = vld [vmem:[%s2651 + $0x400] sm:%s2644]
                %2782 = vst [vmem:[%s2652 + $0x600] sm:%s2644] %v2781
                %v2783 = vld [vmem:[%s2651 + $0x410] sm:%s2644]
                %2784 = vst [vmem:[%s2652 + $0x618] sm:%s2644] %v2783
                %v2785 = vld [vmem:[%s2651 + $0x420] sm:%s2644]
                %2786 = vst [vmem:[%s2652 + $0x630] sm:%s2644] %v2785
                %v2787 = vld [vmem:[%s2651 + $0x430] sm:%s2644]
                %2788 = vst [vmem:[%s2652 + $0x648] sm:%s2644] %v2787
                %v2789 = vld [vmem:[%s2651 + $0x440] sm:%s2644]
                %2790 = vst [vmem:[%s2652 + $0x660] sm:%s2644] %v2789
                %v2791 = vld [vmem:[%s2651 + $0x450] sm:%s2644]
                %2792 = vst [vmem:[%s2652 + $0x678] sm:%s2644] %v2791
                %v2793 = vld [vmem:[%s2651 + $0x460] sm:%s2644]
                %2794 = vst [vmem:[%s2652 + $0x690] sm:%s2644] %v2793
                %v2795 = vld [vmem:[%s2651 + $0x470] sm:%s2644]
                %2796 = vst [vmem:[%s2652 + $0x6a8] sm:%s2644] %v2795
                %v2797 = vld [vmem:[%s2651 + $0x480] sm:%s2644]
                %2798 = vst [vmem:[%s2652 + $0x6c0] sm:%s2644] %v2797
                %v2799 = vld [vmem:[%s2651 + $0x490] sm:%s2644]
                %2800 = vst [vmem:[%s2652 + $0x6d8] sm:%s2644] %v2799
                %v2801 = vld [vmem:[%s2651 + $0x4a0] sm:%s2644]
                %2802 = vst [vmem:[%s2652 + $0x6f0] sm:%s2644] %v2801
                %v2803 = vld [vmem:[%s2651 + $0x4b0] sm:%s2644]
                %2804 = vst [vmem:[%s2652 + $0x708] sm:%s2644] %v2803
                %v2805 = vld [vmem:[%s2651 + $0x4c0] sm:%s2644]
                %2806 = vst [vmem:[%s2652 + $0x720] sm:%s2644] %v2805
                %v2807 = vld [vmem:[%s2651 + $0x4d0] sm:%s2644]
                %2808 = vst [vmem:[%s2652 + $0x738] sm:%s2644] %v2807
                %v2809 = vld [vmem:[%s2651 + $0x4e0] sm:%s2644]
                %2810 = vst [vmem:[%s2652 + $0x750] sm:%s2644] %v2809
                %v2811 = vld [vmem:[%s2651 + $0x4f0] sm:%s2644]
                %2812 = vst [vmem:[%s2652 + $0x768] sm:%s2644] %v2811
                %v2813 = vld [vmem:[%s2651 + $0x500] sm:%s2644]
                %2814 = vst [vmem:[%s2652 + $0x780] sm:%s2644] %v2813
                %v2815 = vld [vmem:[%s2651 + $0x510] sm:%s2644]
                %2816 = vst [vmem:[%s2652 + $0x798] sm:%s2644] %v2815
                %v2817 = vld [vmem:[%s2651 + $0x520] sm:%s2644]
                %2818 = vst [vmem:[%s2652 + $0x7b0] sm:%s2644] %v2817
                %v2819 = vld [vmem:[%s2651 + $0x530] sm:%s2644]
                %2820 = vst [vmem:[%s2652 + $0x7c8] sm:%s2644] %v2819
                %v2821 = vld [vmem:[%s2651 + $0x540] sm:%s2644]
                %2822 = vst [vmem:[%s2652 + $0x7e0] sm:%s2644] %v2821
                %v2823 = vld [vmem:[%s2651 + $0x550] sm:%s2644]
                %2824 = vst [vmem:[%s2652 + $0x7f8] sm:%s2644] %v2823
                %v2825 = vld [vmem:[%s2651 + $0x560] sm:%s2644]
                %2826 = vst [vmem:[%s2652 + $0x810] sm:%s2644] %v2825
                %v2827 = vld [vmem:[%s2651 + $0x570] sm:%s2644]
                %2828 = vst [vmem:[%s2652 + $0x828] sm:%s2644] %v2827
                %v2829 = vld [vmem:[%s2651 + $0x580] sm:%s2644]
                %2830 = vst [vmem:[%s2652 + $0x840] sm:%s2644] %v2829
                %v2831 = vld [vmem:[%s2651 + $0x590] sm:%s2644]
                %2832 = vst [vmem:[%s2652 + $0x858] sm:%s2644] %v2831
                %v2833 = vld [vmem:[%s2651 + $0x5a0] sm:%s2644]
                %2834 = vst [vmem:[%s2652 + $0x870] sm:%s2644] %v2833
                %v2835 = vld [vmem:[%s2651 + $0x5b0] sm:%s2644]
                %2836 = vst [vmem:[%s2652 + $0x888] sm:%s2644] %v2835
                %v2837 = vld [vmem:[%s2651 + $0x5c0] sm:%s2644]
                %2838 = vst [vmem:[%s2652 + $0x8a0] sm:%s2644] %v2837
                %v2839 = vld [vmem:[%s2651 + $0x5d0] sm:%s2644]
                %2840 = vst [vmem:[%s2652 + $0x8b8] sm:%s2644] %v2839
                %v2841 = vld [vmem:[%s2651 + $0x5e0] sm:%s2644]
                %2842 = vst [vmem:[%s2652 + $0x8d0] sm:%s2644] %v2841
                %v2843 = vld [vmem:[%s2651 + $0x5f0] sm:%s2644]
                %2844 = vst [vmem:[%s2652 + $0x8e8] sm:%s2644] %v2843
                %v2845 = vld [vmem:[%s2651 + $0x600] sm:%s2644]
                %2846 = vst [vmem:[%s2652 + $0x900] sm:%s2644] %v2845
                %v2847 = vld [vmem:[%s2651 + $0x610] sm:%s2644]
                %2848 = vst [vmem:[%s2652 + $0x918] sm:%s2644] %v2847
                %v2849 = vld [vmem:[%s2651 + $0x620] sm:%s2644]
                %2850 = vst [vmem:[%s2652 + $0x930] sm:%s2644] %v2849
                %v2851 = vld [vmem:[%s2651 + $0x630] sm:%s2644]
                %2852 = vst [vmem:[%s2652 + $0x948] sm:%s2644] %v2851
                %v2853 = vld [vmem:[%s2651 + $0x640] sm:%s2644]
                %2854 = vst [vmem:[%s2652 + $0x960] sm:%s2644] %v2853
                %v2855 = vld [vmem:[%s2651 + $0x650] sm:%s2644]
                %2856 = vst [vmem:[%s2652 + $0x978] sm:%s2644] %v2855
                %v2857 = vld [vmem:[%s2651 + $0x660] sm:%s2644]
                %2858 = vst [vmem:[%s2652 + $0x990] sm:%s2644] %v2857
                %v2859 = vld [vmem:[%s2651 + $0x670] sm:%s2644]
                %2860 = vst [vmem:[%s2652 + $0x9a8] sm:%s2644] %v2859
                %v2861 = vld [vmem:[%s2651 + $0x680] sm:%s2644]
                %2862 = vst [vmem:[%s2652 + $0x9c0] sm:%s2644] %v2861
                %v2863 = vld [vmem:[%s2651 + $0x690] sm:%s2644]
                %2864 = vst [vmem:[%s2652 + $0x9d8] sm:%s2644] %v2863
                %v2865 = vld [vmem:[%s2651 + $0x6a0] sm:%s2644]
                %2866 = vst [vmem:[%s2652 + $0x9f0] sm:%s2644] %v2865
                %v2867 = vld [vmem:[%s2651 + $0x6b0] sm:%s2644]
                %2868 = vst [vmem:[%s2652 + $0xa08] sm:%s2644] %v2867
                %v2869 = vld [vmem:[%s2651 + $0x6c0] sm:%s2644]
                %2870 = vst [vmem:[%s2652 + $0xa20] sm:%s2644] %v2869
                %v2871 = vld [vmem:[%s2651 + $0x6d0] sm:%s2644]
                %2872 = vst [vmem:[%s2652 + $0xa38] sm:%s2644] %v2871
                %v2873 = vld [vmem:[%s2651 + $0x6e0] sm:%s2644]
                %2874 = vst [vmem:[%s2652 + $0xa50] sm:%s2644] %v2873
                %v2875 = vld [vmem:[%s2651 + $0x6f0] sm:%s2644]
                %2876 = vst [vmem:[%s2652 + $0xa68] sm:%s2644] %v2875
                %v2877 = vld [vmem:[%s2651 + $0x700] sm:%s2644]
                %2878 = vst [vmem:[%s2652 + $0xa80] sm:%s2644] %v2877
                %v2879 = vld [vmem:[%s2651 + $0x710] sm:%s2644]
                %2880 = vst [vmem:[%s2652 + $0xa98] sm:%s2644] %v2879
                %v2881 = vld [vmem:[%s2651 + $0x720] sm:%s2644]
                %2882 = vst [vmem:[%s2652 + $0xab0] sm:%s2644] %v2881
                %v2883 = vld [vmem:[%s2651 + $0x730] sm:%s2644]
                %2884 = vst [vmem:[%s2652 + $0xac8] sm:%s2644] %v2883
                %v2885 = vld [vmem:[%s2651 + $0x740] sm:%s2644]
                %2886 = vst [vmem:[%s2652 + $0xae0] sm:%s2644] %v2885
                %v2887 = vld [vmem:[%s2651 + $0x750] sm:%s2644]
                %2888 = vst [vmem:[%s2652 + $0xaf8] sm:%s2644] %v2887
                %v2889 = vld [vmem:[%s2651 + $0x760] sm:%s2644]
                %2890 = vst [vmem:[%s2652 + $0xb10] sm:%s2644] %v2889
                %v2891 = vld [vmem:[%s2651 + $0x770] sm:%s2644]
                %2892 = vst [vmem:[%s2652 + $0xb28] sm:%s2644] %v2891
                %v2893 = vld [vmem:[%s2651 + $0x780] sm:%s2644]
                %2894 = vst [vmem:[%s2652 + $0xb40] sm:%s2644] %v2893
                %v2895 = vld [vmem:[%s2651 + $0x790] sm:%s2644]
                %2896 = vst [vmem:[%s2652 + $0xb58] sm:%s2644] %v2895
                %v2897 = vld [vmem:[%s2651 + $0x7a0] sm:%s2644]
                %2898 = vst [vmem:[%s2652 + $0xb70] sm:%s2644] %v2897
                %v2899 = vld [vmem:[%s2651 + $0x7b0] sm:%s2644]
                %2900 = vst [vmem:[%s2652 + $0xb88] sm:%s2644] %v2899
                %v2901 = vld [vmem:[%s2651 + $0x7c0] sm:%s2644]
                %2902 = vst [vmem:[%s2652 + $0xba0] sm:%s2644] %v2901
                %v2903 = vld [vmem:[%s2651 + $0x7d0] sm:%s2644]
                %2904 = vst [vmem:[%s2652 + $0xbb8] sm:%s2644] %v2903
                %v2905 = vld [vmem:[%s2651 + $0x7e0] sm:%s2644]
                %2906 = vst [vmem:[%s2652 + $0xbd0] sm:%s2644] %v2905
                %v2907 = vld [vmem:[%s2651 + $0x7f0] sm:%s2644]
                %2908 = vst [vmem:[%s2652 + $0xbe8] sm:%s2644] %v2907
              $region119: #{scan_linear.1} parent=113 // loop_footer
                %s2650 = sadd.s32 1, %s2646
              $region120: #{scan_linear.1} parent=113 // loop_footer_branch
                %2645 = sbr.rel target = $region116
              $region121: #{scan_linear.1} parent=113 // loop_exit
                _
            $region114: #{scan_linear.1} parent=105 // pred_fallthru
              _
          $region106: #{scan_linear.1} parent=101 // pred_fallthru
            _
          %3738 = vnop
        $region102: #{scan_linear.1} parent=93 // pred_fallthru
          _
      $region94: #{scan_linear.1} parent=5 // pred_fallthru
        _
      %p3739 = scmp.le.s32.totalorder 2, %s9
      // Predicated region
      $region151: #{scan_linear.1} parent=5 // pred_check
        %p3740 = pneg %p3739
      $region152: #{scan_linear.1} parent=5 // pred_check_branch
        %3742 = sbr.rel (%p3740) target = $region154
      $region153: #{scan_linear.1} parent=5 // pred_region
        %s3743 = ssub.s32 %s9, 2
        // Predicated region
        $region155: #{scan_linear.1} parent=153 // pred_check
          %p3744 = pneg %p106
        $region156: #{scan_linear.1} parent=153 // pred_check_branch
          %3746 = sbr.rel (%p3744) target = $region158
        $region157: #{scan_linear.1} parent=153 // pred_region
          %s3747 = sand.u32 %s91, 1
          %s3748 = sand.u32 %s91, 1
          %s3749 = smul.addr %s3748, 2048
          %s3750 = scalar_lea.vmem [#allocation3], %s3749
        $region158: #{scan_linear.1} parent=153 // pred_fallthru
          _
      $region154: #{scan_linear.1} parent=5 // pred_fallthru
        _
    $region6: #{scan_linear.1} parent=1 // loop_footer
      %s13 = sadd.s32 1, %s9
    $region7: #{scan_linear.1} parent=1 // loop_footer_branch
      %8 = sbr.rel target = $region3
    $region8: #{scan_linear.1} parent=1 // loop_exit
      _

</llo_original>
